<compile_context>
chip_gen: v7x
topology: tpu7x:2x2x1
jax: 0.10.0
libtpu: 0.0.40
codegen_flags: <defaults>
</compile_context>

<pallas_src>
import jax
import jax.numpy as jnp
from jax import lax
from jax.experimental import pallas as pl
from jax.experimental.pallas import tpu as pltpu

# ----------------------------- "config" ------------------------------------
INPUT_SIZE = 16      # config.learner_input_size
C1 = 8               # config.learner_conv1_filters
C2 = 8               # config.learner_conv2_filters
FC_FILTERS = C2      # config.learner_fc_filters (must equal conv2 filters)
CLASSES = 10         # config.learner_classes
ALPHA = 0.1          # config.learner_leaky_relu_alpha
N = 2                # batch
EPS = 1e-5

H1 = INPUT_SIZE - 2                  # conv1 output spatial (14)
P1 = (INPUT_SIZE - 3 + 1) // 2       # after pool1 (7)
H2 = P1 - 2                          # conv2 output spatial (5)
P2 = (P1 - 3 + 1) // 2               # after pool2 (2)
FC_IN = FC_FILTERS * P2 * P2         # 32


# ----------------------------- kernel helpers --------------------------------
def _leaky_relu(x):
    return jnp.where(x >= 0, x, ALPHA * x)


def _tree_sum(terms):
    """Balanced-tree sum: breaks the serialized accumulator dependency chain."""
    while len(terms) > 1:
        nxt = [terms[i] + terms[i + 1] for i in range(0, len(terms) - 1, 2)]
        if len(terms) % 2:
            nxt.append(terms[-1])
        terms = nxt
    return terms[0]


def _bn_nhwc(a, gamma, beta):
    """Training-mode BatchNorm2d over (N, H, W) per channel, biased variance.

    Sum and sum-of-squares are fused into one reduction over [a ; a*a]
    (lane-concatenated), halving the cross-sublane reduction traffic.
    """
    cnt = float(a.shape[0] * a.shape[1] * a.shape[2])
    c = a.shape[-1]
    cat = jnp.concatenate([a, a * a], axis=-1)            # (N, H, W, 2C)
    s = jnp.sum(cat, axis=1, keepdims=True)
    s = jnp.sum(s, axis=2, keepdims=True)
    s = jnp.sum(s, axis=0, keepdims=True)                 # (1, 1, 1, 2C)
    mu = s[..., :c] / cnt
    var = s[..., c:] / cnt - mu * mu
    return (a - mu) * lax.rsqrt(var + EPS) * gamma + beta


def _pool2x2(a, hm_ref):
    """2x2 / stride-2 max-pool with floor (drops trailing odd row/col).

    H-pool: leading-dims-only reshape + max (stays in vregs, no stores).
    W-pool: one full store to scratch, then two strided loads (stride=2) on the
    sublane dim and a vector max.  No per-window masked stores.
    """
    n, h, w, c = a.shape
    ph, pw = h // 2, w // 2
    ar = a[:, :2 * ph, :, :].reshape(n, ph, 2, w, c)       # leading dims only
    hm_ref[...] = jnp.maximum(ar[:, :, 0], ar[:, :, 1])    # (n, ph, w, c)
    even = hm_ref[:, :, pl.ds(0, pw, stride=2), :]
    odd = hm_ref[:, :, pl.ds(1, pw, stride=2), :]
    return jnp.maximum(even, odd)                          # (n, ph, pw, c)


# ----------------------------- the kernel -------------------------------------
def learner_kernel(x_ref, w1_ref, b1_ref, w2_ref, b2_ref, wf_ref, bf_ref,
                   g1_ref, be1_ref, g2_ref, be2_ref, gf_ref, bef_ref,
                   o_ref, hm1_ref, hm2_ref):
    x = x_ref[...]                                         # (N, 16, 16, 1)

    # ---------------- conv1: 3x3 valid, Cin=1, 9-tap FMA (tree-summed) -------
    w1 = w1_ref[...]                                       # (9, C1), row = ky*3+kx
    terms = []
    for ky in range(3):
        for kx in range(3):
            r = ky * 3 + kx
            terms.append(x[:, ky:ky + H1, kx:kx + H1, :] * w1[r:r + 1, :])
    a1 = _tree_sum(terms) + b1_ref[...]                    # (N, H1, H1, C1)
    a1 = _bn_nhwc(_leaky_relu(a1), g1_ref[...], be1_ref[...])

    # ---------------- max_pool2d(2) ------------------------------------------
    p1 = _pool2x2(a1, hm1_ref)                             # (N, P1, P1, C1)

    # ---------------- conv2: im2col + MXU matmul ------------------------------
    # 9 shifted slices lane-concatenated -> (N, H2, H2, 9*C1); contract with
    # w2 (9*C1, C2) via 10 independent 2-D dots (one per (n, output-row)).
    patches = jnp.concatenate(
        [p1[:, ky:ky + H2, kx:kx + H2, :] for ky in range(3) for kx in range(3)],
        axis=-1)                                           # (N, H2, H2, 9*C1)
    w2 = w2_ref[...]                                       # (9*C1, C2)
    rows_n = []
    for n in range(N):
        rows_i = [jnp.dot(patches[n, i], w2, preferred_element_type=jnp.float32)
                  for i in range(H2)]                      # each (H2, C2)
        rows_n.append(jnp.stack(rows_i, axis=0))           # (H2, H2, C2)
    a2 = jnp.stack(rows_n, axis=0) + b2_ref[...]           # (N, H2, H2, C2)
    a2 = _bn_nhwc(_leaky_relu(a2), g2_ref[...], be2_ref[...])

    # ---------------- max_pool2d(2) (floor drops last odd row/col) ------------
    p2 = _pool2x2(a2, hm2_ref)                             # (N, P2, P2, C2)

    # ---------------- flatten + single FC matmul ------------------------------
    feat = jnp.concatenate(
        [p2[:, h, w, :] for h in range(P2) for w in range(P2)], axis=-1)  # (N, FC_IN)
    z = jnp.dot(feat, wf_ref[...], preferred_element_type=jnp.float32) + bf_ref[...]

    # ---------------- BatchNorm1d (batch stats) --------------------------------
    mu = jnp.sum(z, axis=0, keepdims=True) / float(N)
    var = jnp.sum(z * z, axis=0, keepdims=True) / float(N) - mu * mu
    z = (z - mu) * lax.rsqrt(var + EPS) * gf_ref[...] + bef_ref[...]

    # ---------------- log_softmax over classes ---------------------------------
    m = jnp.max(z, axis=1, keepdims=True)
    e = jnp.exp(z - m)
    o_ref[...] = z - m - jnp.log(jnp.sum(e, axis=1, keepdims=True))


def learner_forward(x_nchw, params):
    """x_nchw: (N, 1, H, W) float32 (PyTorch layout). Returns (N, CLASSES)."""
    # Cin == 1, so NCHW -> NHWC is a free reshape (no transpose op).
    x_nhwc = x_nchw.reshape(N, INPUT_SIZE, INPUT_SIZE, 1).astype(jnp.float32)
    vmem = lambda: pl.BlockSpec(memory_space=pltpu.MemorySpace.VMEM)
    args = (x_nhwc, params["w1"], params["b1"], params["w2"], params["b2"],
            params["wf"], params["bf"], params["g1"], params["be1"],
            params["g2"], params["be2"], params["gf"], params["bef"])
    # TODO(synk): when running a population of learners / larger batches, add a
    # leading grid axis with dimension_semantics=("parallel",) so both v7x
    # TensorCores are used and per-call dispatch overhead is amortized.
    return pl.pallas_call(
        learner_kernel,
        out_shape=jax.ShapeDtypeStruct((N, CLASSES), jnp.float32),
        in_specs=[vmem() for _ in args],
        out_specs=vmem(),
        scratch_shapes=[
            pltpu.VMEM((N, P1, H1, C1), jnp.float32),   # H-pooled conv1 activations
            pltpu.VMEM((N, P2, H2, C2), jnp.float32),   # H-pooled conv2 activations
        ],
    )(*args)


# ----------------------------- parameter setup -------------------------------
def make_params(key):
    ks = jax.random.split(key, 6)
    # conv1 weight, torch layout (C1, 1, 3, 3) -> kernel layout (9, C1)
    w1_t = jax.random.normal(ks[0], (C1, 1, 3, 3), jnp.float32) * 0.3
    w1 = jnp.transpose(w1_t, (2, 3, 1, 0)).reshape(9 * 1, C1)
    b1 = (jax.random.normal(ks[1], (C1,), jnp.float32) * 0.05).reshape(1, C1)
    # conv2 weight, torch layout (C2, C1, 3, 3) -> (9*C1, C2), row=(ky*3+kx)*C1+cin
    w2_t = jax.random.normal(ks[2], (C2, C1, 3, 3), jnp.float32) * 0.15
    w2 = jnp.transpose(w2_t, (2, 3, 1, 0)).reshape(9 * C1, C2)
    b2 = (jax.random.normal(ks[3], (C2,), jnp.float32) * 0.05).reshape(1, C2)
    # fc weight: kaiming_normal_(a=ALPHA), torch layout (CLASSES, C2, P2, P2)
    gain = (2.0 / (1.0 + ALPHA ** 2)) ** 0.5
    std = gain / (FC_IN ** 0.5)
    wf_t = jax.random.normal(ks[4], (CLASSES, C2, P2, P2), jnp.float32) * std
    # repack to NHWC-flatten order (h, w, c) x classes  (row = (h*P2+w)*C2 + c)
    wf = jnp.transpose(wf_t, (2, 3, 1, 0)).reshape(FC_IN, CLASSES)
    bf = (jax.random.normal(ks[5], (CLASSES,), jnp.float32) * 0.05).reshape(1, CLASSES)
    # BatchNorm affine params (PyTorch default init: weight=1, bias=0)
    return dict(w1=w1, b1=b1, w2=w2, b2=b2, wf=wf, bf=bf,
                g1=jnp.ones((1, C1), jnp.float32), be1=jnp.zeros((1, C1), jnp.float32),
                g2=jnp.ones((1, C2), jnp.float32), be2=jnp.zeros((1, C2), jnp.float32),
                gf=jnp.ones((1, CLASSES), jnp.float32), bef=jnp.zeros((1, CLASSES), jnp.float32))


# ----------------------------- pure-JAX reference ----------------------------
def reference_forward(x_nchw, p):
    x = jnp.transpose(x_nchw, (0, 2, 3, 1)).astype(jnp.float32)

    def bn2d(a, g, b):
        mu = jnp.mean(a, axis=(0, 1, 2), keepdims=True)
        var = jnp.var(a, axis=(0, 1, 2), keepdims=True)
        return (a - mu) / jnp.sqrt(var + EPS) * g.reshape(1, 1, 1, -1) + b.reshape(1, 1, 1, -1)

    def pool2(a):
        return lax.reduce_window(a, -jnp.inf, lax.max, (1, 2, 2, 1), (1, 2, 2, 1), "VALID")

    a = lax.conv_general_dilated(x, p["w1"].reshape(3, 3, 1, C1), (1, 1), "VALID",
                                 dimension_numbers=("NHWC", "HWIO", "NHWC")) + p["b1"].reshape(1, 1, 1, C1)
    a = jnp.where(a >= 0, a, ALPHA * a)
    a = pool2(bn2d(a, p["g1"], p["be1"]))
    a = lax.conv_general_dilated(a, p["w2"].reshape(3, 3, C1, C2), (1, 1), "VALID",
                                 dimension_numbers=("NHWC", "HWIO", "NHWC")) + p["b2"].reshape(1, 1, 1, C2)
    a = jnp.where(a >= 0, a, ALPHA * a)
    a = pool2(bn2d(a, p["g2"], p["be2"]))
    z = a.reshape(N, FC_IN) @ p["wf"] + p["bf"]
    mu = jnp.mean(z, axis=0, keepdims=True)
    var = jnp.var(z, axis=0, keepdims=True)
    z = (z - mu) / jnp.sqrt(var + EPS) * p["gf"] + p["bef"]
    return jax.nn.log_softmax(z, axis=1)


if __name__ == "__main__":
    key = jax.random.PRNGKey(0)
    kx, kp = jax.random.split(key)
    x = jax.random.normal(kx, (N, 1, INPUT_SIZE, INPUT_SIZE), jnp.float32)
    params = make_params(kp)

    out = learner_forward(x, params)
    out = jax.block_until_ready(out)

    ref = reference_forward(x, params)
    assert out.shape == (N, CLASSES)
    assert jnp.all(jnp.isfinite(out))
    assert jnp.allclose(out, ref, atol=2e-3, rtol=2e-3), (
        f"max abs diff {jnp.max(jnp.abs(out - ref))}")
    print("KERNEL_OK")
</pallas_src>

<mosaic_0001>
module attributes {stable_mosaic.version = 11 : i64} {
  func.func @learner_kernel(%arg0: memref<2x16x16x1xf32, #tpu.memory_space<vmem>>, %arg1: memref<9x8xf32, #tpu.memory_space<vmem>>, %arg2: memref<1x8xf32, #tpu.memory_space<vmem>>, %arg3: memref<72x8xf32, #tpu.memory_space<vmem>>, %arg4: memref<1x8xf32, #tpu.memory_space<vmem>>, %arg5: memref<32x10xf32, #tpu.memory_space<vmem>>, %arg6: memref<1x10xf32, #tpu.memory_space<vmem>>, %arg7: memref<1x8xf32, #tpu.memory_space<vmem>>, %arg8: memref<1x8xf32, #tpu.memory_space<vmem>>, %arg9: memref<1x8xf32, #tpu.memory_space<vmem>>, %arg10: memref<1x8xf32, #tpu.memory_space<vmem>>, %arg11: memref<1x10xf32, #tpu.memory_space<vmem>>, %arg12: memref<1x10xf32, #tpu.memory_space<vmem>>, %arg13: memref<2x10xf32, #tpu.memory_space<vmem>>, %arg14: memref<2x7x14x8xf32, #tpu.memory_space<vmem>>, %arg15: memref<2x2x5x8xf32, #tpu.memory_space<vmem>>) attributes {dimension_semantics = [], scalar_prefetch = 0 : i64, scratch_operands = 2 : i64, tpu.core_type = #tpu.core_type<tc>} {
    %c0 = arith.constant 0 : index
    %c0_0 = arith.constant 0 : index
    %c0_1 = arith.constant 0 : index
    %c0_2 = arith.constant 0 : index
    %0 = vector.load %arg0[%c0, %c0_0, %c0_1, %c0_2] : memref<2x16x16x1xf32, #tpu.memory_space<vmem>>, vector<2x16x16x1xf32>
    %c0_3 = arith.constant 0 : index
    %c0_4 = arith.constant 0 : index
    %1 = vector.load %arg1[%c0_3, %c0_4] : memref<9x8xf32, #tpu.memory_space<vmem>>, vector<9x8xf32>
    %2 = vector.extract_strided_slice %0 {offsets = [0, 0, 0, 0], sizes = [2, 14, 14, 1], strides = [1, 1, 1, 1]} : vector<2x16x16x1xf32> to vector<2x14x14x1xf32>
    %3 = vector.extract_strided_slice %1 {offsets = [0, 0], sizes = [1, 8], strides = [1, 1]} : vector<9x8xf32> to vector<1x8xf32>
    %4 = vector.shape_cast %3 : vector<1x8xf32> to vector<1x1x1x8xf32>
    %5 = vector.broadcast %2 : vector<2x14x14x1xf32> to vector<2x14x14x8xf32>
    %6 = vector.broadcast %4 : vector<1x1x1x8xf32> to vector<2x14x14x8xf32>
    %7 = arith.mulf %5, %6 : vector<2x14x14x8xf32>
    %8 = vector.extract_strided_slice %0 {offsets = [0, 0, 1, 0], sizes = [2, 14, 14, 1], strides = [1, 1, 1, 1]} : vector<2x16x16x1xf32> to vector<2x14x14x1xf32>
    %9 = vector.extract_strided_slice %1 {offsets = [1, 0], sizes = [1, 8], strides = [1, 1]} : vector<9x8xf32> to vector<1x8xf32>
    %10 = vector.shape_cast %9 : vector<1x8xf32> to vector<1x1x1x8xf32>
    %11 = vector.broadcast %8 : vector<2x14x14x1xf32> to vector<2x14x14x8xf32>
    %12 = vector.broadcast %10 : vector<1x1x1x8xf32> to vector<2x14x14x8xf32>
    %13 = arith.mulf %11, %12 : vector<2x14x14x8xf32>
    %14 = vector.extract_strided_slice %0 {offsets = [0, 0, 2, 0], sizes = [2, 14, 14, 1], strides = [1, 1, 1, 1]} : vector<2x16x16x1xf32> to vector<2x14x14x1xf32>
    %15 = vector.extract_strided_slice %1 {offsets = [2, 0], sizes = [1, 8], strides = [1, 1]} : vector<9x8xf32> to vector<1x8xf32>
    %16 = vector.shape_cast %15 : vector<1x8xf32> to vector<1x1x1x8xf32>
    %17 = vector.broadcast %14 : vector<2x14x14x1xf32> to vector<2x14x14x8xf32>
    %18 = vector.broadcast %16 : vector<1x1x1x8xf32> to vector<2x14x14x8xf32>
    %19 = arith.mulf %17, %18 : vector<2x14x14x8xf32>
    %20 = vector.extract_strided_slice %0 {offsets = [0, 1, 0, 0], sizes = [2, 14, 14, 1], strides = [1, 1, 1, 1]} : vector<2x16x16x1xf32> to vector<2x14x14x1xf32>
    %21 = vector.extract_strided_slice %1 {offsets = [3, 0], sizes = [1, 8], strides = [1, 1]} : vector<9x8xf32> to vector<1x8xf32>
    %22 = vector.shape_cast %21 : vector<1x8xf32> to vector<1x1x1x8xf32>
    %23 = vector.broadcast %20 : vector<2x14x14x1xf32> to vector<2x14x14x8xf32>
    %24 = vector.broadcast %22 : vector<1x1x1x8xf32> to vector<2x14x14x8xf32>
    %25 = arith.mulf %23, %24 : vector<2x14x14x8xf32>
    %26 = vector.extract_strided_slice %0 {offsets = [0, 1, 1, 0], sizes = [2, 14, 14, 1], strides = [1, 1, 1, 1]} : vector<2x16x16x1xf32> to vector<2x14x14x1xf32>
    %27 = vector.extract_strided_slice %1 {offsets = [4, 0], sizes = [1, 8], strides = [1, 1]} : vector<9x8xf32> to vector<1x8xf32>
    %28 = vector.shape_cast %27 : vector<1x8xf32> to vector<1x1x1x8xf32>
    %29 = vector.broadcast %26 : vector<2x14x14x1xf32> to vector<2x14x14x8xf32>
    %30 = vector.broadcast %28 : vector<1x1x1x8xf32> to vector<2x14x14x8xf32>
    %31 = arith.mulf %29, %30 : vector<2x14x14x8xf32>
    %32 = vector.extract_strided_slice %0 {offsets = [0, 1, 2, 0], sizes = [2, 14, 14, 1], strides = [1, 1, 1, 1]} : vector<2x16x16x1xf32> to vector<2x14x14x1xf32>
    %33 = vector.extract_strided_slice %1 {offsets = [5, 0], sizes = [1, 8], strides = [1, 1]} : vector<9x8xf32> to vector<1x8xf32>
    %34 = vector.shape_cast %33 : vector<1x8xf32> to vector<1x1x1x8xf32>
    %35 = vector.broadcast %32 : vector<2x14x14x1xf32> to vector<2x14x14x8xf32>
    %36 = vector.broadcast %34 : vector<1x1x1x8xf32> to vector<2x14x14x8xf32>
    %37 = arith.mulf %35, %36 : vector<2x14x14x8xf32>
    %38 = vector.extract_strided_slice %0 {offsets = [0, 2, 0, 0], sizes = [2, 14, 14, 1], strides = [1, 1, 1, 1]} : vector<2x16x16x1xf32> to vector<2x14x14x1xf32>
    %39 = vector.extract_strided_slice %1 {offsets = [6, 0], sizes = [1, 8], strides = [1, 1]} : vector<9x8xf32> to vector<1x8xf32>
    %40 = vector.shape_cast %39 : vector<1x8xf32> to vector<1x1x1x8xf32>
    %41 = vector.broadcast %38 : vector<2x14x14x1xf32> to vector<2x14x14x8xf32>
    %42 = vector.broadcast %40 : vector<1x1x1x8xf32> to vector<2x14x14x8xf32>
    %43 = arith.mulf %41, %42 : vector<2x14x14x8xf32>
    %44 = vector.extract_strided_slice %0 {offsets = [0, 2, 1, 0], sizes = [2, 14, 14, 1], strides = [1, 1, 1, 1]} : vector<2x16x16x1xf32> to vector<2x14x14x1xf32>
    %45 = vector.extract_strided_slice %1 {offsets = [7, 0], sizes = [1, 8], strides = [1, 1]} : vector<9x8xf32> to vector<1x8xf32>
    %46 = vector.shape_cast %45 : vector<1x8xf32> to vector<1x1x1x8xf32>
    %47 = vector.broadcast %44 : vector<2x14x14x1xf32> to vector<2x14x14x8xf32>
    %48 = vector.broadcast %46 : vector<1x1x1x8xf32> to vector<2x14x14x8xf32>
    %49 = arith.mulf %47, %48 : vector<2x14x14x8xf32>
    %50 = vector.extract_strided_slice %0 {offsets = [0, 2, 2, 0], sizes = [2, 14, 14, 1], strides = [1, 1, 1, 1]} : vector<2x16x16x1xf32> to vector<2x14x14x1xf32>
    %51 = vector.extract_strided_slice %1 {offsets = [8, 0], sizes = [1, 8], strides = [1, 1]} : vector<9x8xf32> to vector<1x8xf32>
    %52 = vector.shape_cast %51 : vector<1x8xf32> to vector<1x1x1x8xf32>
    %53 = vector.broadcast %50 : vector<2x14x14x1xf32> to vector<2x14x14x8xf32>
    %54 = vector.broadcast %52 : vector<1x1x1x8xf32> to vector<2x14x14x8xf32>
    %55 = arith.mulf %53, %54 : vector<2x14x14x8xf32>
    %56 = arith.addf %7, %13 : vector<2x14x14x8xf32>
    %57 = arith.addf %19, %25 : vector<2x14x14x8xf32>
    %58 = arith.addf %31, %37 : vector<2x14x14x8xf32>
    %59 = arith.addf %43, %49 : vector<2x14x14x8xf32>
    %60 = arith.addf %56, %57 : vector<2x14x14x8xf32>
    %61 = arith.addf %58, %59 : vector<2x14x14x8xf32>
    %62 = arith.addf %60, %61 : vector<2x14x14x8xf32>
    %63 = arith.addf %62, %55 : vector<2x14x14x8xf32>
    %c0_5 = arith.constant 0 : index
    %c0_6 = arith.constant 0 : index
    %64 = vector.load %arg2[%c0_5, %c0_6] : memref<1x8xf32, #tpu.memory_space<vmem>>, vector<1x8xf32>
    %65 = vector.shape_cast %64 : vector<1x8xf32> to vector<1x1x1x8xf32>
    %66 = vector.broadcast %65 : vector<1x1x1x8xf32> to vector<2x14x14x8xf32>
    %67 = arith.addf %63, %66 : vector<2x14x14x8xf32>
    %cst = arith.constant 0.000000e+00 : f32
    %68 = vector.broadcast %cst : f32 to vector<2x14x14x8xf32>
    %69 = arith.cmpf oge, %67, %68 : vector<2x14x14x8xf32>
    %cst_7 = arith.constant 1.000000e-01 : f32
    %70 = vector.broadcast %cst_7 : f32 to vector<2x14x14x8xf32>
    %71 = arith.mulf %70, %67 : vector<2x14x14x8xf32>
    %72 = arith.select %69, %67, %71 : vector<2x14x14x8xi1>, vector<2x14x14x8xf32>
    %c0_8 = arith.constant 0 : index
    %c0_9 = arith.constant 0 : index
    %73 = vector.load %arg7[%c0_8, %c0_9] : memref<1x8xf32, #tpu.memory_space<vmem>>, vector<1x8xf32>
    %c0_10 = arith.constant 0 : index
    %c0_11 = arith.constant 0 : index
    %74 = vector.load %arg8[%c0_10, %c0_11] : memref<1x8xf32, #tpu.memory_space<vmem>>, vector<1x8xf32>
    %75 = arith.mulf %72, %72 : vector<2x14x14x8xf32>
    %76 = tpu.concatenate %72, %75 in 3 : vector<2x14x14x8xf32>, vector<2x14x14x8xf32> -> vector<2x14x14x16xf32>
    %cst_12 = arith.constant dense<0.000000e+00> : vector<2x14x16xf32>
    %77 = vector.multi_reduction <add>, %76, %cst_12 [1] : vector<2x14x14x16xf32> to vector<2x14x16xf32>
    %78 = vector.shape_cast %77 : vector<2x14x16xf32> to vector<2x1x14x16xf32>
    %cst_13 = arith.constant dense<0.000000e+00> : vector<2x1x16xf32>
    %79 = vector.multi_reduction <add>, %78, %cst_13 [2] : vector<2x1x14x16xf32> to vector<2x1x16xf32>
    %80 = vector.shape_cast %79 : vector<2x1x16xf32> to vector<2x1x1x16xf32>
    %cst_14 = arith.constant dense<0.000000e+00> : vector<1x1x16xf32>
    %81 = vector.multi_reduction <add>, %80, %cst_14 [0] : vector<2x1x1x16xf32> to vector<1x1x16xf32>
    %82 = vector.shape_cast %81 : vector<1x1x16xf32> to vector<1x1x1x16xf32>
    %83 = vector.extract_strided_slice %82 {offsets = [0, 0, 0, 0], sizes = [1, 1, 1, 8], strides = [1, 1, 1, 1]} : vector<1x1x1x16xf32> to vector<1x1x1x8xf32>
    %cst_15 = arith.constant 3.920000e+02 : f32
    %84 = vector.broadcast %cst_15 : f32 to vector<1x1x1x8xf32>
    %85 = arith.divf %83, %84 : vector<1x1x1x8xf32>
    %86 = vector.extract_strided_slice %82 {offsets = [0, 0, 0, 8], sizes = [1, 1, 1, 8], strides = [1, 1, 1, 1]} : vector<1x1x1x16xf32> to vector<1x1x1x8xf32>
    %cst_16 = arith.constant 3.920000e+02 : f32
    %87 = vector.broadcast %cst_16 : f32 to vector<1x1x1x8xf32>
    %88 = arith.divf %86, %87 : vector<1x1x1x8xf32>
    %89 = arith.mulf %85, %85 : vector<1x1x1x8xf32>
    %90 = arith.subf %88, %89 : vector<1x1x1x8xf32>
    %91 = vector.broadcast %85 : vector<1x1x1x8xf32> to vector<2x14x14x8xf32>
    %92 = arith.subf %72, %91 : vector<2x14x14x8xf32>
    %cst_17 = arith.constant 9.99999974E-6 : f32
    %93 = vector.broadcast %cst_17 : f32 to vector<1x1x1x8xf32>
    %94 = arith.addf %90, %93 : vector<1x1x1x8xf32>
    %95 = math.rsqrt %94 : vector<1x1x1x8xf32>
    %96 = vector.broadcast %95 : vector<1x1x1x8xf32> to vector<2x14x14x8xf32>
    %97 = arith.mulf %92, %96 : vector<2x14x14x8xf32>
    %98 = vector.shape_cast %73 : vector<1x8xf32> to vector<1x1x1x8xf32>
    %99 = vector.broadcast %98 : vector<1x1x1x8xf32> to vector<2x14x14x8xf32>
    %100 = arith.mulf %97, %99 : vector<2x14x14x8xf32>
    %101 = vector.shape_cast %74 : vector<1x8xf32> to vector<1x1x1x8xf32>
    %102 = vector.broadcast %101 : vector<1x1x1x8xf32> to vector<2x14x14x8xf32>
    %103 = arith.addf %100, %102 : vector<2x14x14x8xf32>
    %104 = vector.shape_cast %103 : vector<2x14x14x8xf32> to vector<2x7x2x14x8xf32>
    %105 = vector.extract_strided_slice %104 {offsets = [0, 0, 0, 0, 0], sizes = [2, 7, 1, 14, 8], strides = [1, 1, 1, 1, 1]} : vector<2x7x2x14x8xf32> to vector<2x7x1x14x8xf32>
    %106 = vector.shape_cast %105 : vector<2x7x1x14x8xf32> to vector<2x7x14x8xf32>
    %107 = vector.extract_strided_slice %104 {offsets = [0, 0, 1, 0, 0], sizes = [2, 7, 1, 14, 8], strides = [1, 1, 1, 1, 1]} : vector<2x7x2x14x8xf32> to vector<2x7x1x14x8xf32>
    %108 = vector.shape_cast %107 : vector<2x7x1x14x8xf32> to vector<2x7x14x8xf32>
    %109 = arith.maximumf %106, %108 : vector<2x7x14x8xf32>
    %c0_18 = arith.constant 0 : index
    %c0_19 = arith.constant 0 : index
    %c0_20 = arith.constant 0 : index
    %c0_21 = arith.constant 0 : index
    %110 = vector.load %arg14[%c0_18, %c0_19, %c0_20, %c0_21] : memref<2x7x14x8xf32, #tpu.memory_space<vmem>>, vector<2x7x14x8xf32>
    tpu.vector_store %arg14[%c0_18, %c0_19, %c0_20, %c0_21], %109 {strides = array<i32>} : memref<2x7x14x8xf32, #tpu.memory_space<vmem>>, vector<2x7x14x8xf32>,
    %c0_22 = arith.constant 0 : index
    %c0_23 = arith.constant 0 : index
    %c0_24 = arith.constant 0 : index
    %c0_25 = arith.constant 0 : index
    %111 = tpu.strided_load %arg14[%c0_22, %c0_23, %c0_24, %c0_25] {strides = array<i32: 1, 1, 2, 1>} : memref<2x7x14x8xf32, #tpu.memory_space<vmem>>, vector<2x7x7x8xf32>
    %c0_26 = arith.constant 0 : index
    %c0_27 = arith.constant 0 : index
    %c1 = arith.constant 1 : index
    %c0_28 = arith.constant 0 : index
    %112 = tpu.strided_load %arg14[%c0_26, %c0_27, %c1, %c0_28] {strides = array<i32: 1, 1, 2, 1>} : memref<2x7x14x8xf32, #tpu.memory_space<vmem>>, vector<2x7x7x8xf32>
    %113 = arith.maximumf %111, %112 : vector<2x7x7x8xf32>
    %114 = vector.extract_strided_slice %113 {offsets = [0, 0, 0, 0], sizes = [2, 5, 5, 8], strides = [1, 1, 1, 1]} : vector<2x7x7x8xf32> to vector<2x5x5x8xf32>
    %115 = vector.extract_strided_slice %113 {offsets = [0, 0, 1, 0], sizes = [2, 5, 5, 8], strides = [1, 1, 1, 1]} : vector<2x7x7x8xf32> to vector<2x5x5x8xf32>
    %116 = vector.extract_strided_slice %113 {offsets = [0, 0, 2, 0], sizes = [2, 5, 5, 8], strides = [1, 1, 1, 1]} : vector<2x7x7x8xf32> to vector<2x5x5x8xf32>
    %117 = vector.extract_strided_slice %113 {offsets = [0, 1, 0, 0], sizes = [2, 5, 5, 8], strides = [1, 1, 1, 1]} : vector<2x7x7x8xf32> to vector<2x5x5x8xf32>
    %118 = vector.extract_strided_slice %113 {offsets = [0, 1, 1, 0], sizes = [2, 5, 5, 8], strides = [1, 1, 1, 1]} : vector<2x7x7x8xf32> to vector<2x5x5x8xf32>
    %119 = vector.extract_strided_slice %113 {offsets = [0, 1, 2, 0], sizes = [2, 5, 5, 8], strides = [1, 1, 1, 1]} : vector<2x7x7x8xf32> to vector<2x5x5x8xf32>
    %120 = vector.extract_strided_slice %113 {offsets = [0, 2, 0, 0], sizes = [2, 5, 5, 8], strides = [1, 1, 1, 1]} : vector<2x7x7x8xf32> to vector<2x5x5x8xf32>
    %121 = vector.extract_strided_slice %113 {offsets = [0, 2, 1, 0], sizes = [2, 5, 5, 8], strides = [1, 1, 1, 1]} : vector<2x7x7x8xf32> to vector<2x5x5x8xf32>
    %122 = vector.extract_strided_slice %113 {offsets = [0, 2, 2, 0], sizes = [2, 5, 5, 8], strides = [1, 1, 1, 1]} : vector<2x7x7x8xf32> to vector<2x5x5x8xf32>
    %123 = tpu.concatenate %114, %115, %116, %117, %118, %119, %120, %121, %122 in 3 : vector<2x5x5x8xf32>, vector<2x5x5x8xf32>, vector<2x5x5x8xf32>, vector<2x5x5x8xf32>, vector<2x5x5x8xf32>, vector<2x5x5x8xf32>, vector<2x5x5x8xf32>, vector<2x5x5x8xf32>, vector<2x5x5x8xf32> -> vector<2x5x5x72xf32>
    %c0_29 = arith.constant 0 : index
    %c0_30 = arith.constant 0 : index
    %124 = vector.load %arg3[%c0_29, %c0_30] : memref<72x8xf32, #tpu.memory_space<vmem>>, vector<72x8xf32>
    %125 = vector.extract_strided_slice %123 {offsets = [0, 0, 0, 0], sizes = [1, 1, 5, 72], strides = [1, 1, 1, 1]} : vector<2x5x5x72xf32> to vector<1x1x5x72xf32>
    %126 = vector.shape_cast %125 : vector<1x1x5x72xf32> to vector<5x72xf32>
    %cst_31 = arith.constant dense<0.000000e+00> : vector<5x8xf32>
    %127 = tpu.matmul %126, %124, %cst_31 {dimension_numbers = #tpu.dot_dimension_numbers<[1], [0], [0], [1], [0, 0, 1, 1], [], []>} : vector<5x72xf32>, vector<72x8xf32>, vector<5x8xf32> -> vector<5x8xf32>
    %128 = vector.extract_strided_slice %123 {offsets = [0, 1, 0, 0], sizes = [1, 1, 5, 72], strides = [1, 1, 1, 1]} : vector<2x5x5x72xf32> to vector<1x1x5x72xf32>
    %129 = vector.shape_cast %128 : vector<1x1x5x72xf32> to vector<5x72xf32>
    %cst_32 = arith.constant dense<0.000000e+00> : vector<5x8xf32>
    %130 = tpu.matmul %129, %124, %cst_32 {dimension_numbers = #tpu.dot_dimension_numbers<[1], [0], [0], [1], [0, 0, 1, 1], [], []>} : vector<5x72xf32>, vector<72x8xf32>, vector<5x8xf32> -> vector<5x8xf32>
    %131 = vector.extract_strided_slice %123 {offsets = [0, 2, 0, 0], sizes = [1, 1, 5, 72], strides = [1, 1, 1, 1]} : vector<2x5x5x72xf32> to vector<1x1x5x72xf32>
    %132 = vector.shape_cast %131 : vector<1x1x5x72xf32> to vector<5x72xf32>
    %cst_33 = arith.constant dense<0.000000e+00> : vector<5x8xf32>
    %133 = tpu.matmul %132, %124, %cst_33 {dimension_numbers = #tpu.dot_dimension_numbers<[1], [0], [0], [1], [0, 0, 1, 1], [], []>} : vector<5x72xf32>, vector<72x8xf32>, vector<5x8xf32> -> vector<5x8xf32>
    %134 = vector.extract_strided_slice %123 {offsets = [0, 3, 0, 0], sizes = [1, 1, 5, 72], strides = [1, 1, 1, 1]} : vector<2x5x5x72xf32> to vector<1x1x5x72xf32>
    %135 = vector.shape_cast %134 : vector<1x1x5x72xf32> to vector<5x72xf32>
    %cst_34 = arith.constant dense<0.000000e+00> : vector<5x8xf32>
    %136 = tpu.matmul %135, %124, %cst_34 {dimension_numbers = #tpu.dot_dimension_numbers<[1], [0], [0], [1], [0, 0, 1, 1], [], []>} : vector<5x72xf32>, vector<72x8xf32>, vector<5x8xf32> -> vector<5x8xf32>
    %137 = vector.extract_strided_slice %123 {offsets = [0, 4, 0, 0], sizes = [1, 1, 5, 72], strides = [1, 1, 1, 1]} : vector<2x5x5x72xf32> to vector<1x1x5x72xf32>
    %138 = vector.shape_cast %137 : vector<1x1x5x72xf32> to vector<5x72xf32>
    %cst_35 = arith.constant dense<0.000000e+00> : vector<5x8xf32>
    %139 = tpu.matmul %138, %124, %cst_35 {dimension_numbers = #tpu.dot_dimension_numbers<[1], [0], [0], [1], [0, 0, 1, 1], [], []>} : vector<5x72xf32>, vector<72x8xf32>, vector<5x8xf32> -> vector<5x8xf32>
    %140 = vector.shape_cast %127 : vector<5x8xf32> to vector<1x5x8xf32>
    %141 = vector.shape_cast %130 : vector<5x8xf32> to vector<1x5x8xf32>
    %142 = vector.shape_cast %133 : vector<5x8xf32> to vector<1x5x8xf32>
    %143 = vector.shape_cast %136 : vector<5x8xf32> to vector<1x5x8xf32>
    %144 = vector.shape_cast %139 : vector<5x8xf32> to vector<1x5x8xf32>
    %145 = tpu.concatenate %140, %141, %142, %143, %144 in 0 : vector<1x5x8xf32>, vector<1x5x8xf32>, vector<1x5x8xf32>, vector<1x5x8xf32>, vector<1x5x8xf32> -> vector<5x5x8xf32>
    %146 = vector.extract_strided_slice %123 {offsets = [1, 0, 0, 0], sizes = [1, 1, 5, 72], strides = [1, 1, 1, 1]} : vector<2x5x5x72xf32> to vector<1x1x5x72xf32>
    %147 = vector.shape_cast %146 : vector<1x1x5x72xf32> to vector<5x72xf32>
    %cst_36 = arith.constant dense<0.000000e+00> : vector<5x8xf32>
    %148 = tpu.matmul %147, %124, %cst_36 {dimension_numbers = #tpu.dot_dimension_numbers<[1], [0], [0], [1], [0, 0, 1, 1], [], []>} : vector<5x72xf32>, vector<72x8xf32>, vector<5x8xf32> -> vector<5x8xf32>
    %149 = vector.extract_strided_slice %123 {offsets = [1, 1, 0, 0], sizes = [1, 1, 5, 72], strides = [1, 1, 1, 1]} : vector<2x5x5x72xf32> to vector<1x1x5x72xf32>
    %150 = vector.shape_cast %149 : vector<1x1x5x72xf32> to vector<5x72xf32>
    %cst_37 = arith.constant dense<0.000000e+00> : vector<5x8xf32>
    %151 = tpu.matmul %150, %124, %cst_37 {dimension_numbers = #tpu.dot_dimension_numbers<[1], [0], [0], [1], [0, 0, 1, 1], [], []>} : vector<5x72xf32>, vector<72x8xf32>, vector<5x8xf32> -> vector<5x8xf32>
    %152 = vector.extract_strided_slice %123 {offsets = [1, 2, 0, 0], sizes = [1, 1, 5, 72], strides = [1, 1, 1, 1]} : vector<2x5x5x72xf32> to vector<1x1x5x72xf32>
    %153 = vector.shape_cast %152 : vector<1x1x5x72xf32> to vector<5x72xf32>
    %cst_38 = arith.constant dense<0.000000e+00> : vector<5x8xf32>
    %154 = tpu.matmul %153, %124, %cst_38 {dimension_numbers = #tpu.dot_dimension_numbers<[1], [0], [0], [1], [0, 0, 1, 1], [], []>} : vector<5x72xf32>, vector<72x8xf32>, vector<5x8xf32> -> vector<5x8xf32>
    %155 = vector.extract_strided_slice %123 {offsets = [1, 3, 0, 0], sizes = [1, 1, 5, 72], strides = [1, 1, 1, 1]} : vector<2x5x5x72xf32> to vector<1x1x5x72xf32>
    %156 = vector.shape_cast %155 : vector<1x1x5x72xf32> to vector<5x72xf32>
    %cst_39 = arith.constant dense<0.000000e+00> : vector<5x8xf32>
    %157 = tpu.matmul %156, %124, %cst_39 {dimension_numbers = #tpu.dot_dimension_numbers<[1], [0], [0], [1], [0, 0, 1, 1], [], []>} : vector<5x72xf32>, vector<72x8xf32>, vector<5x8xf32> -> vector<5x8xf32>
    %158 = vector.extract_strided_slice %123 {offsets = [1, 4, 0, 0], sizes = [1, 1, 5, 72], strides = [1, 1, 1, 1]} : vector<2x5x5x72xf32> to vector<1x1x5x72xf32>
    %159 = vector.shape_cast %158 : vector<1x1x5x72xf32> to vector<5x72xf32>
    %cst_40 = arith.constant dense<0.000000e+00> : vector<5x8xf32>
    %160 = tpu.matmul %159, %124, %cst_40 {dimension_numbers = #tpu.dot_dimension_numbers<[1], [0], [0], [1], [0, 0, 1, 1], [], []>} : vector<5x72xf32>, vector<72x8xf32>, vector<5x8xf32> -> vector<5x8xf32>
    %161 = vector.shape_cast %148 : vector<5x8xf32> to vector<1x5x8xf32>
    %162 = vector.shape_cast %151 : vector<5x8xf32> to vector<1x5x8xf32>
    %163 = vector.shape_cast %154 : vector<5x8xf32> to vector<1x5x8xf32>
    %164 = vector.shape_cast %157 : vector<5x8xf32> to vector<1x5x8xf32>
    %165 = vector.shape_cast %160 : vector<5x8xf32> to vector<1x5x8xf32>
    %166 = tpu.concatenate %161, %162, %163, %164, %165 in 0 : vector<1x5x8xf32>, vector<1x5x8xf32>, vector<1x5x8xf32>, vector<1x5x8xf32>, vector<1x5x8xf32> -> vector<5x5x8xf32>
    %167 = vector.shape_cast %145 : vector<5x5x8xf32> to vector<1x5x5x8xf32>
    %168 = vector.shape_cast %166 : vector<5x5x8xf32> to vector<1x5x5x8xf32>
    %169 = tpu.concatenate %167, %168 in 0 : vector<1x5x5x8xf32>, vector<1x5x5x8xf32> -> vector<2x5x5x8xf32>
    %c0_41 = arith.constant 0 : index
    %c0_42 = arith.constant 0 : index
    %170 = vector.load %arg4[%c0_41, %c0_42] : memref<1x8xf32, #tpu.memory_space<vmem>>, vector<1x8xf32>
    %171 = vector.shape_cast %170 : vector<1x8xf32> to vector<1x1x1x8xf32>
    %172 = vector.broadcast %171 : vector<1x1x1x8xf32> to vector<2x5x5x8xf32>
    %173 = arith.addf %169, %172 : vector<2x5x5x8xf32>
    %cst_43 = arith.constant 0.000000e+00 : f32
    %174 = vector.broadcast %cst_43 : f32 to vector<2x5x5x8xf32>
    %175 = arith.cmpf oge, %173, %174 : vector<2x5x5x8xf32>
    %cst_44 = arith.constant 1.000000e-01 : f32
    %176 = vector.broadcast %cst_44 : f32 to vector<2x5x5x8xf32>
    %177 = arith.mulf %176, %173 : vector<2x5x5x8xf32>
    %178 = arith.select %175, %173, %177 : vector<2x5x5x8xi1>, vector<2x5x5x8xf32>
    %c0_45 = arith.constant 0 : index
    %c0_46 = arith.constant 0 : index
    %179 = vector.load %arg9[%c0_45, %c0_46] : memref<1x8xf32, #tpu.memory_space<vmem>>, vector<1x8xf32>
    %c0_47 = arith.constant 0 : index
    %c0_48 = arith.constant 0 : index
    %180 = vector.load %arg10[%c0_47, %c0_48] : memref<1x8xf32, #tpu.memory_space<vmem>>, vector<1x8xf32>
    %181 = arith.mulf %178, %178 : vector<2x5x5x8xf32>
    %182 = tpu.concatenate %178, %181 in 3 : vector<2x5x5x8xf32>, vector<2x5x5x8xf32> -> vector<2x5x5x16xf32>
    %cst_49 = arith.constant dense<0.000000e+00> : vector<2x5x16xf32>
    %183 = vector.multi_reduction <add>, %182, %cst_49 [1] : vector<2x5x5x16xf32> to vector<2x5x16xf32>
    %184 = vector.shape_cast %183 : vector<2x5x16xf32> to vector<2x1x5x16xf32>
    %cst_50 = arith.constant dense<0.000000e+00> : vector<2x1x16xf32>
    %185 = vector.multi_reduction <add>, %184, %cst_50 [2] : vector<2x1x5x16xf32> to vector<2x1x16xf32>
    %186 = vector.shape_cast %185 : vector<2x1x16xf32> to vector<2x1x1x16xf32>
    %cst_51 = arith.constant dense<0.000000e+00> : vector<1x1x16xf32>
    %187 = vector.multi_reduction <add>, %186, %cst_51 [0] : vector<2x1x1x16xf32> to vector<1x1x16xf32>
    %188 = vector.shape_cast %187 : vector<1x1x16xf32> to vector<1x1x1x16xf32>
    %189 = vector.extract_strided_slice %188 {offsets = [0, 0, 0, 0], sizes = [1, 1, 1, 8], strides = [1, 1, 1, 1]} : vector<1x1x1x16xf32> to vector<1x1x1x8xf32>
    %cst_52 = arith.constant 5.000000e+01 : f32
    %190 = vector.broadcast %cst_52 : f32 to vector<1x1x1x8xf32>
    %191 = arith.divf %189, %190 : vector<1x1x1x8xf32>
    %192 = vector.extract_strided_slice %188 {offsets = [0, 0, 0, 8], sizes = [1, 1, 1, 8], strides = [1, 1, 1, 1]} : vector<1x1x1x16xf32> to vector<1x1x1x8xf32>
    %cst_53 = arith.constant 5.000000e+01 : f32
    %193 = vector.broadcast %cst_53 : f32 to vector<1x1x1x8xf32>
    %194 = arith.divf %192, %193 : vector<1x1x1x8xf32>
    %195 = arith.mulf %191, %191 : vector<1x1x1x8xf32>
    %196 = arith.subf %194, %195 : vector<1x1x1x8xf32>
    %197 = vector.broadcast %191 : vector<1x1x1x8xf32> to vector<2x5x5x8xf32>
    %198 = arith.subf %178, %197 : vector<2x5x5x8xf32>
    %cst_54 = arith.constant 9.99999974E-6 : f32
    %199 = vector.broadcast %cst_54 : f32 to vector<1x1x1x8xf32>
    %200 = arith.addf %196, %199 : vector<1x1x1x8xf32>
    %201 = math.rsqrt %200 : vector<1x1x1x8xf32>
    %202 = vector.broadcast %201 : vector<1x1x1x8xf32> to vector<2x5x5x8xf32>
    %203 = arith.mulf %198, %202 : vector<2x5x5x8xf32>
    %204 = vector.shape_cast %179 : vector<1x8xf32> to vector<1x1x1x8xf32>
    %205 = vector.broadcast %204 : vector<1x1x1x8xf32> to vector<2x5x5x8xf32>
    %206 = arith.mulf %203, %205 : vector<2x5x5x8xf32>
    %207 = vector.shape_cast %180 : vector<1x8xf32> to vector<1x1x1x8xf32>
    %208 = vector.broadcast %207 : vector<1x1x1x8xf32> to vector<2x5x5x8xf32>
    %209 = arith.addf %206, %208 : vector<2x5x5x8xf32>
    %210 = vector.extract_strided_slice %209 {offsets = [0, 0, 0, 0], sizes = [2, 4, 5, 8], strides = [1, 1, 1, 1]} : vector<2x5x5x8xf32> to vector<2x4x5x8xf32>
    %211 = vector.shape_cast %210 : vector<2x4x5x8xf32> to vector<2x2x2x5x8xf32>
    %212 = vector.extract_strided_slice %211 {offsets = [0, 0, 0, 0, 0], sizes = [2, 2, 1, 5, 8], strides = [1, 1, 1, 1, 1]} : vector<2x2x2x5x8xf32> to vector<2x2x1x5x8xf32>
    %213 = vector.shape_cast %212 : vector<2x2x1x5x8xf32> to vector<2x2x5x8xf32>
    %214 = vector.extract_strided_slice %211 {offsets = [0, 0, 1, 0, 0], sizes = [2, 2, 1, 5, 8], strides = [1, 1, 1, 1, 1]} : vector<2x2x2x5x8xf32> to vector<2x2x1x5x8xf32>
    %215 = vector.shape_cast %214 : vector<2x2x1x5x8xf32> to vector<2x2x5x8xf32>
    %216 = arith.maximumf %213, %215 : vector<2x2x5x8xf32>
    %c0_55 = arith.constant 0 : index
    %c0_56 = arith.constant 0 : index
    %c0_57 = arith.constant 0 : index
    %c0_58 = arith.constant 0 : index
    %217 = vector.load %arg15[%c0_55, %c0_56, %c0_57, %c0_58] : memref<2x2x5x8xf32, #tpu.memory_space<vmem>>, vector<2x2x5x8xf32>
    tpu.vector_store %arg15[%c0_55, %c0_56, %c0_57, %c0_58], %216 {strides = array<i32>} : memref<2x2x5x8xf32, #tpu.memory_space<vmem>>, vector<2x2x5x8xf32>,
    %c0_59 = arith.constant 0 : index
    %c0_60 = arith.constant 0 : index
    %c0_61 = arith.constant 0 : index
    %c0_62 = arith.constant 0 : index
    %218 = tpu.strided_load %arg15[%c0_59, %c0_60, %c0_61, %c0_62] {strides = array<i32: 1, 1, 2, 1>} : memref<2x2x5x8xf32, #tpu.memory_space<vmem>>, vector<2x2x2x8xf32>
    %c0_63 = arith.constant 0 : index
    %c0_64 = arith.constant 0 : index
    %c1_65 = arith.constant 1 : index
    %c0_66 = arith.constant 0 : index
    %219 = tpu.strided_load %arg15[%c0_63, %c0_64, %c1_65, %c0_66] {strides = array<i32: 1, 1, 2, 1>} : memref<2x2x5x8xf32, #tpu.memory_space<vmem>>, vector<2x2x2x8xf32>
    %220 = arith.maximumf %218, %219 : vector<2x2x2x8xf32>
    %221 = vector.extract_strided_slice %220 {offsets = [0, 0, 0, 0], sizes = [2, 1, 1, 8], strides = [1, 1, 1, 1]} : vector<2x2x2x8xf32> to vector<2x1x1x8xf32>
    %222 = vector.shape_cast %221 : vector<2x1x1x8xf32> to vector<2x8xf32>
    %223 = vector.extract_strided_slice %220 {offsets = [0, 0, 1, 0], sizes = [2, 1, 1, 8], strides = [1, 1, 1, 1]} : vector<2x2x2x8xf32> to vector<2x1x1x8xf32>
    %224 = vector.shape_cast %223 : vector<2x1x1x8xf32> to vector<2x8xf32>
    %225 = vector.extract_strided_slice %220 {offsets = [0, 1, 0, 0], sizes = [2, 1, 1, 8], strides = [1, 1, 1, 1]} : vector<2x2x2x8xf32> to vector<2x1x1x8xf32>
    %226 = vector.shape_cast %225 : vector<2x1x1x8xf32> to vector<2x8xf32>
    %227 = vector.extract_strided_slice %220 {offsets = [0, 1, 1, 0], sizes = [2, 1, 1, 8], strides = [1, 1, 1, 1]} : vector<2x2x2x8xf32> to vector<2x1x1x8xf32>
    %228 = vector.shape_cast %227 : vector<2x1x1x8xf32> to vector<2x8xf32>
    %229 = tpu.concatenate %222, %224, %226, %228 in 1 : vector<2x8xf32>, vector<2x8xf32>, vector<2x8xf32>, vector<2x8xf32> -> vector<2x32xf32>
    %c0_67 = arith.constant 0 : index
    %c0_68 = arith.constant 0 : index
    %230 = vector.load %arg5[%c0_67, %c0_68] : memref<32x10xf32, #tpu.memory_space<vmem>>, vector<32x10xf32>
    %cst_69 = arith.constant dense<0.000000e+00> : vector<2x10xf32>
    %231 = tpu.matmul %229, %230, %cst_69 {dimension_numbers = #tpu.dot_dimension_numbers<[1], [0], [0], [1], [0, 0, 1, 1], [], []>} : vector<2x32xf32>, vector<32x10xf32>, vector<2x10xf32> -> vector<2x10xf32>
    %c0_70 = arith.constant 0 : index
    %c0_71 = arith.constant 0 : index
    %232 = vector.load %arg6[%c0_70, %c0_71] : memref<1x10xf32, #tpu.memory_space<vmem>>, vector<1x10xf32>
    %233 = vector.broadcast %232 : vector<1x10xf32> to vector<2x10xf32>
    %234 = arith.addf %231, %233 : vector<2x10xf32>
    %cst_72 = arith.constant dense<0.000000e+00> : vector<10xf32>
    %235 = vector.multi_reduction <add>, %234, %cst_72 [0] : vector<2x10xf32> to vector<10xf32>
    %236 = vector.shape_cast %235 : vector<10xf32> to vector<1x10xf32>
    %cst_73 = arith.constant 2.000000e+00 : f32
    %237 = vector.broadcast %cst_73 : f32 to vector<1x10xf32>
    %238 = arith.divf %236, %237 : vector<1x10xf32>
    %239 = arith.mulf %234, %234 : vector<2x10xf32>
    %cst_74 = arith.constant dense<0.000000e+00> : vector<10xf32>
    %240 = vector.multi_reduction <add>, %239, %cst_74 [0] : vector<2x10xf32> to vector<10xf32>
    %241 = vector.shape_cast %240 : vector<10xf32> to vector<1x10xf32>
    %cst_75 = arith.constant 2.000000e+00 : f32
    %242 = vector.broadcast %cst_75 : f32 to vector<1x10xf32>
    %243 = arith.divf %241, %242 : vector<1x10xf32>
    %244 = arith.mulf %238, %238 : vector<1x10xf32>
    %245 = arith.subf %243, %244 : vector<1x10xf32>
    %246 = vector.broadcast %238 : vector<1x10xf32> to vector<2x10xf32>
    %247 = arith.subf %234, %246 : vector<2x10xf32>
    %cst_76 = arith.constant 9.99999974E-6 : f32
    %248 = vector.broadcast %cst_76 : f32 to vector<1x10xf32>
    %249 = arith.addf %245, %248 : vector<1x10xf32>
    %250 = math.rsqrt %249 : vector<1x10xf32>
    %251 = vector.broadcast %250 : vector<1x10xf32> to vector<2x10xf32>
    %252 = arith.mulf %247, %251 : vector<2x10xf32>
    %c0_77 = arith.constant 0 : index
    %c0_78 = arith.constant 0 : index
    %253 = vector.load %arg11[%c0_77, %c0_78] : memref<1x10xf32, #tpu.memory_space<vmem>>, vector<1x10xf32>
    %254 = vector.broadcast %253 : vector<1x10xf32> to vector<2x10xf32>
    %255 = arith.mulf %252, %254 : vector<2x10xf32>
    %c0_79 = arith.constant 0 : index
    %c0_80 = arith.constant 0 : index
    %256 = vector.load %arg12[%c0_79, %c0_80] : memref<1x10xf32, #tpu.memory_space<vmem>>, vector<1x10xf32>
    %257 = vector.broadcast %256 : vector<1x10xf32> to vector<2x10xf32>
    %258 = arith.addf %255, %257 : vector<2x10xf32>
    %cst_81 = arith.constant dense<0xFF800000> : vector<2xf32>
    %259 = vector.multi_reduction <maximumf>, %258, %cst_81 [1] : vector<2x10xf32> to vector<2xf32>
    %260 = vector.shape_cast %259 : vector<2xf32> to vector<2x1xf32>
    %261 = vector.broadcast %260 : vector<2x1xf32> to vector<2x10xf32>
    %262 = arith.subf %258, %261 : vector<2x10xf32>
    %263 = math.exp %262 : vector<2x10xf32>
    %264 = vector.broadcast %260 : vector<2x1xf32> to vector<2x10xf32>
    %265 = arith.subf %258, %264 : vector<2x10xf32>
    %cst_82 = arith.constant dense<0.000000e+00> : vector<2xf32>
    %266 = vector.multi_reduction <add>, %263, %cst_82 [1] : vector<2x10xf32> to vector<2xf32>
    %267 = vector.shape_cast %266 : vector<2xf32> to vector<2x1xf32>
    %268 = math.log %267 : vector<2x1xf32>
    %269 = vector.broadcast %268 : vector<2x1xf32> to vector<2x10xf32>
    %270 = arith.subf %265, %269 : vector<2x10xf32>
    %c0_83 = arith.constant 0 : index
    %c0_84 = arith.constant 0 : index
    %271 = vector.load %arg13[%c0_83, %c0_84] : memref<2x10xf32, #tpu.memory_space<vmem>>, vector<2x10xf32>
    tpu.vector_store %arg13[%c0_83, %c0_84], %270 {strides = array<i32>} : memref<2x10xf32, #tpu.memory_space<vmem>>, vector<2x10xf32>,
    return
  }
}

</mosaic_0001>

<llo_original>
// kernel: tpu_custom_call.1
$region0: #{tpu_custom_call.1}
  #allocation0 [shape = 'u32[]', space=smem, size = 0x4, offset = 0x4, fixed_abs, tag = 'smem constant byte address 0x4 - core index']
  #allocation1 [shape = 'u32[144,128]{1,0:T(1,128)}', space=vmem, size = 0x12000, scoped, tag = 'internal scratch']
  #allocation2 [shape = 'f32[2,7,14,8]{3,2,1,0:T(8,128)}', space=vmem, size = 0x1c000, scoped, tag = 'scratch operand']
  #allocation3 [shape = 'f32[2,2,5,8]{3,2,1,0:T(8,128)}', space=vmem, size = 0x4000, scoped, tag = 'scratch operand']
  %s0 = inlined_call_operand.vmem [shape: f32[2,16,16,1], index: 0, kind: input, shape index: {}]
  %s1 = inlined_call_operand.vmem [shape: f32[9,8], index: 1, kind: input, shape index: {}]
  %s2 = inlined_call_operand.vmem [shape: f32[1,8], index: 2, kind: input, shape index: {}]
  %s3 = inlined_call_operand.vmem [shape: f32[72,8], index: 3, kind: input, shape index: {}]
  %s4 = inlined_call_operand.vmem [shape: f32[1,8], index: 4, kind: input, shape index: {}]
  %s5 = inlined_call_operand.vmem [shape: f32[32,10], index: 5, kind: input, shape index: {}]
  %s6 = inlined_call_operand.vmem [shape: f32[1,10], index: 6, kind: input, shape index: {}]
  %s7 = inlined_call_operand.vmem [shape: f32[1,8], index: 7, kind: input, shape index: {}]
  %s8 = inlined_call_operand.vmem [shape: f32[1,8], index: 8, kind: input, shape index: {}]
  %s9 = inlined_call_operand.vmem [shape: f32[1,8], index: 9, kind: input, shape index: {}]
  %s10 = inlined_call_operand.vmem [shape: f32[1,8], index: 10, kind: input, shape index: {}]
  %s11 = inlined_call_operand.vmem [shape: f32[1,10], index: 11, kind: input, shape index: {}]
  %s12 = inlined_call_operand.vmem [shape: f32[1,10], index: 12, kind: input, shape index: {}]
  %s13 = inlined_call_operand.hbm [shape: f32[2,10], index: 13, kind: output, shape index: {}]
  %s14 = sld [smem:[#allocation0]]
  $region62: #{tpu_custom_call.1} parent=0
    _
  %s16 = ssub.s32 1, %s14
  %s17 = scalar_select 0, %s16, %s14
  $region1: #{tpu_custom_call.1} parent=0
    #allocation4 [shape = 'u8[1024]{0}', space=vmem, size = 0x400, scoped, tag = 'output window, operand 0, single buffered']
    #allocation5 [shape = 's32[1]{0}', space=sflag, size = 0x4, scoped, tag = 'scoped memory for tpu_custom_call.1']
    %18 = vsyncpa [#allocation5], 0
    // Predicated region
    $region2: #{tpu_custom_call.1} parent=1 // pred_check
      _
    $region3: #{tpu_custom_call.1} parent=1 // pred_check_branch
      %20 = sbr.rel (0) target = $region5
    $region4: #{tpu_custom_call.1} parent=1 // pred_region
      _
    $region5: #{tpu_custom_call.1} parent=1 // pred_fallthru
      _
    // Predicated region
    $region6: #{tpu_custom_call.1} parent=1 // pred_check
      _
    $region7: #{tpu_custom_call.1} parent=1 // pred_check_branch
      %22 = sbr.rel (0) target = $region9
    $region8: #{tpu_custom_call.1} parent=1 // pred_region
      _
    $region9: #{tpu_custom_call.1} parent=1 // pred_fallthru
      _
    // Predicated region
    $region10: #{tpu_custom_call.1} parent=1 // pred_check
      _
    $region11: #{tpu_custom_call.1} parent=1 // pred_check_branch
      %24 = sbr.rel (0) target = $region13
    $region12: #{tpu_custom_call.1} parent=1 // pred_region
      _
    $region13: #{tpu_custom_call.1} parent=1 // pred_fallthru
      _
    // Predicated region
    $region14: #{tpu_custom_call.1} parent=1 // pred_check
      _
    $region15: #{tpu_custom_call.1} parent=1 // pred_check_branch
      %26 = sbr.rel (0) target = $region17
    $region16: #{tpu_custom_call.1} parent=1 // pred_region
      _
    $region17: #{tpu_custom_call.1} parent=1 // pred_fallthru
      _
    // Predicated region
    $region18: #{tpu_custom_call.1} parent=1 // pred_check
      _
    $region19: #{tpu_custom_call.1} parent=1 // pred_check_branch
      %28 = sbr.rel (0) target = $region21
    $region20: #{tpu_custom_call.1} parent=1 // pred_region
      _
    $region21: #{tpu_custom_call.1} parent=1 // pred_fallthru
      _
    // Predicated region
    $region22: #{tpu_custom_call.1} parent=1 // pred_check
      _
    $region23: #{tpu_custom_call.1} parent=1 // pred_check_branch
      %30 = sbr.rel (0) target = $region25
    $region24: #{tpu_custom_call.1} parent=1 // pred_region
      _
    $region25: #{tpu_custom_call.1} parent=1 // pred_fallthru
      _
    // Predicated region
    $region26: #{tpu_custom_call.1} parent=1 // pred_check
      _
    $region27: #{tpu_custom_call.1} parent=1 // pred_check_branch
      %32 = sbr.rel (0) target = $region29
    $region28: #{tpu_custom_call.1} parent=1 // pred_region
      _
    $region29: #{tpu_custom_call.1} parent=1 // pred_fallthru
      _
    // Predicated region
    $region30: #{tpu_custom_call.1} parent=1 // pred_check
      _
    $region31: #{tpu_custom_call.1} parent=1 // pred_check_branch
      %34 = sbr.rel (0) target = $region33
    $region32: #{tpu_custom_call.1} parent=1 // pred_region
      _
    $region33: #{tpu_custom_call.1} parent=1 // pred_fallthru
      _
    // Predicated region
    $region34: #{tpu_custom_call.1} parent=1 // pred_check
      _
    $region35: #{tpu_custom_call.1} parent=1 // pred_check_branch
      %36 = sbr.rel (0) target = $region37
    $region36: #{tpu_custom_call.1} parent=1 // pred_region
      _
    $region37: #{tpu_custom_call.1} parent=1 // pred_fallthru
      _
    // Predicated region
    $region38: #{tpu_custom_call.1} parent=1 // pred_check
      _
    $region39: #{tpu_custom_call.1} parent=1 // pred_check_branch
      %38 = sbr.rel (0) target = $region41
    $region40: #{tpu_custom_call.1} parent=1 // pred_region
      _
    $region41: #{tpu_custom_call.1} parent=1 // pred_fallthru
      _
    // Predicated region
    $region42: #{tpu_custom_call.1} parent=1 // pred_check
      _
    $region43: #{tpu_custom_call.1} parent=1 // pred_check_branch
      %40 = sbr.rel (0) target = $region45
    $region44: #{tpu_custom_call.1} parent=1 // pred_region
      _
    $region45: #{tpu_custom_call.1} parent=1 // pred_fallthru
      _
    // Predicated region
    $region46: #{tpu_custom_call.1} parent=1 // pred_check
      _
    $region47: #{tpu_custom_call.1} parent=1 // pred_check_branch
      %42 = sbr.rel (0) target = $region49
    $region48: #{tpu_custom_call.1} parent=1 // pred_region
      _
    $region49: #{tpu_custom_call.1} parent=1 // pred_fallthru
      _
    // Predicated region
    $region50: #{tpu_custom_call.1} parent=1 // pred_check
      _
    $region51: #{tpu_custom_call.1} parent=1 // pred_check_branch
      %44 = sbr.rel (0) target = $region53
    $region52: #{tpu_custom_call.1} parent=1 // pred_region
      _
    $region53: #{tpu_custom_call.1} parent=1 // pred_fallthru
      _
    %v45 = vld [vmem:[%s0] sm:$0xff]
    %v46 = vld [vmem:[%s0 + $0x8] sm:$0xff]
    %v47 = vld [vmem:[%s0 + $0x10] sm:$0xff]
    %v48 = vld [vmem:[%s0 + $0x18] sm:$0xff]
    %v49 = vld [vmem:[%s0 + $0x20] sm:$0xff]
    %v50 = vld [vmem:[%s0 + $0x28] sm:$0xff]
    %v51 = vld [vmem:[%s0 + $0x30] sm:$0xff]
    %v52 = vld [vmem:[%s0 + $0x38] sm:$0xff]
    %v53 = vld [vmem:[%s0 + $0x40] sm:$0xff]
    %v54 = vld [vmem:[%s0 + $0x48] sm:$0xff]
    %v55 = vld [vmem:[%s0 + $0x50] sm:$0xff]
    %v56 = vld [vmem:[%s0 + $0x58] sm:$0xff]
    %v57 = vld [vmem:[%s0 + $0x60] sm:$0xff]
    %v58 = vld [vmem:[%s0 + $0x68] sm:$0xff]
    %v59 = vld [vmem:[%s0 + $0x70] sm:$0xff]
    %v60 = vld [vmem:[%s0 + $0x78] sm:$0xff]
    %v61 = vld [vmem:[%s0 + $0x80] sm:$0xff]
    %v62 = vld [vmem:[%s0 + $0x88] sm:$0xff]
    %v63 = vld [vmem:[%s0 + $0x90] sm:$0xff]
    %v64 = vld [vmem:[%s0 + $0x98] sm:$0xff]
    %v65 = vld [vmem:[%s0 + $0xa0] sm:$0xff]
    %v66 = vld [vmem:[%s0 + $0xa8] sm:$0xff]
    %v67 = vld [vmem:[%s0 + $0xb0] sm:$0xff]
    %v68 = vld [vmem:[%s0 + $0xb8] sm:$0xff]
    %v69 = vld [vmem:[%s0 + $0xc0] sm:$0xff]
    %v70 = vld [vmem:[%s0 + $0xc8] sm:$0xff]
    %v71 = vld [vmem:[%s0 + $0xd0] sm:$0xff]
    %v72 = vld [vmem:[%s0 + $0xd8] sm:$0xff]
    %v73 = vld [vmem:[%s0 + $0xe0] sm:$0xff]
    %v74 = vld [vmem:[%s0 + $0xe8] sm:$0xff]
    %v75 = vld [vmem:[%s0 + $0xf0] sm:$0xff]
    %v76 = vld [vmem:[%s0 + $0xf8] sm:$0xff]
    %v77 = vld [vmem:[%s0 + $0x100] sm:$0xff]
    %v78 = vld [vmem:[%s0 + $0x108] sm:$0xff]
    %v79 = vld [vmem:[%s0 + $0x110] sm:$0xff]
    %v80 = vld [vmem:[%s0 + $0x118] sm:$0xff]
    %v81 = vld [vmem:[%s0 + $0x120] sm:$0xff]
    %v82 = vld [vmem:[%s0 + $0x128] sm:$0xff]
    %v83 = vld [vmem:[%s0 + $0x130] sm:$0xff]
    %v84 = vld [vmem:[%s0 + $0x138] sm:$0xff]
    %v85 = vld [vmem:[%s0 + $0x140] sm:$0xff]
    %v86 = vld [vmem:[%s0 + $0x148] sm:$0xff]
    %v87 = vld [vmem:[%s0 + $0x150] sm:$0xff]
    %v88 = vld [vmem:[%s0 + $0x158] sm:$0xff]
    %v89 = vld [vmem:[%s0 + $0x160] sm:$0xff]
    %v90 = vld [vmem:[%s0 + $0x168] sm:$0xff]
    %v91 = vld [vmem:[%s0 + $0x170] sm:$0xff]
    %v92 = vld [vmem:[%s0 + $0x178] sm:$0xff]
    %v93 = vld [vmem:[%s0 + $0x180] sm:$0xff]
    %v94 = vld [vmem:[%s0 + $0x188] sm:$0xff]
    %v95 = vld [vmem:[%s0 + $0x190] sm:$0xff]
    %v96 = vld [vmem:[%s0 + $0x198] sm:$0xff]
    %v97 = vld [vmem:[%s0 + $0x1a0] sm:$0xff]
    %v98 = vld [vmem:[%s0 + $0x1a8] sm:$0xff]
    %v99 = vld [vmem:[%s0 + $0x1b0] sm:$0xff]
    %v100 = vld [vmem:[%s0 + $0x1b8] sm:$0xff]
    %v101 = vld [vmem:[%s0 + $0x1c0] sm:$0xff]
    %v102 = vld [vmem:[%s0 + $0x1c8] sm:$0xff]
    %v103 = vld [vmem:[%s0 + $0x1d0] sm:$0xff]
    %v104 = vld [vmem:[%s0 + $0x1d8] sm:$0xff]
    %v105 = vld [vmem:[%s0 + $0x1e0] sm:$0xff]
    %v106 = vld [vmem:[%s0 + $0x1e8] sm:$0xff]
    %v107 = vld [vmem:[%s0 + $0x1f0] sm:$0xff]
    %v108 = vld [vmem:[%s0 + $0x1f8] sm:$0xff]
    %v109 = vld [vmem:[%s1] sm:$0xff]
    %v110 = vld [vmem:[%s1 + $0x8] sm:$0x1]
    %112 = vset.pattern.permute.xlu0 0
    %113 = vperm.xlu0 %112, %v45
    %v114 = vpop.permute.xlu0 %113
    %117 = vset.pattern.permute.xlu0 0
    %118 = vperm.xlu0 %117, %v46
    %v119 = vpop.permute.xlu0 %118
    %122 = vset.pattern.permute.xlu0 0
    %123 = vperm.xlu0 %122, %v47
    %v124 = vpop.permute.xlu0 %123
    %127 = vset.pattern.permute.xlu0 0
    %128 = vperm.xlu0 %127, %v48
    %v129 = vpop.permute.xlu0 %128
    %132 = vset.pattern.permute.xlu0 0
    %133 = vperm.xlu0 %132, %v49
    %v134 = vpop.permute.xlu0 %133
    %137 = vset.pattern.permute.xlu0 0
    %138 = vperm.xlu0 %137, %v50
    %v139 = vpop.permute.xlu0 %138
    %142 = vset.pattern.permute.xlu0 0
    %143 = vperm.xlu0 %142, %v51
    %v144 = vpop.permute.xlu0 %143
    %147 = vset.pattern.permute.xlu0 0
    %148 = vperm.xlu0 %147, %v52
    %v149 = vpop.permute.xlu0 %148
    %152 = vset.pattern.permute.xlu0 0
    %153 = vperm.xlu0 %152, %v53
    %v154 = vpop.permute.xlu0 %153
    %157 = vset.pattern.permute.xlu0 0
    %158 = vperm.xlu0 %157, %v54
    %v159 = vpop.permute.xlu0 %158
    %162 = vset.pattern.permute.xlu0 0
    %163 = vperm.xlu0 %162, %v55
    %v164 = vpop.permute.xlu0 %163
    %167 = vset.pattern.permute.xlu0 0
    %168 = vperm.xlu0 %167, %v56
    %v169 = vpop.permute.xlu0 %168
    %172 = vset.pattern.permute.xlu0 0
    %173 = vperm.xlu0 %172, %v57
    %v174 = vpop.permute.xlu0 %173
    %177 = vset.pattern.permute.xlu0 0
    %178 = vperm.xlu0 %177, %v58
    %v179 = vpop.permute.xlu0 %178
    %182 = vset.pattern.permute.xlu0 0
    %183 = vperm.xlu0 %182, %v59
    %v184 = vpop.permute.xlu0 %183
    %187 = vset.pattern.permute.xlu0 0
    %188 = vperm.xlu0 %187, %v60
    %v189 = vpop.permute.xlu0 %188
    %192 = vset.pattern.permute.xlu0 0
    %193 = vperm.xlu0 %192, %v61
    %v194 = vpop.permute.xlu0 %193
    %197 = vset.pattern.permute.xlu0 0
    %198 = vperm.xlu0 %197, %v62
    %v199 = vpop.permute.xlu0 %198
    %202 = vset.pattern.permute.xlu0 0
    %203 = vperm.xlu0 %202, %v63
    %v204 = vpop.permute.xlu0 %203
    %207 = vset.pattern.permute.xlu0 0
    %208 = vperm.xlu0 %207, %v64
    %v209 = vpop.permute.xlu0 %208
    %212 = vset.pattern.permute.xlu0 0
    %213 = vperm.xlu0 %212, %v65
    %v214 = vpop.permute.xlu0 %213
    %217 = vset.pattern.permute.xlu0 0
    %218 = vperm.xlu0 %217, %v66
    %v219 = vpop.permute.xlu0 %218
    %222 = vset.pattern.permute.xlu0 0
    %223 = vperm.xlu0 %222, %v67
    %v224 = vpop.permute.xlu0 %223
    %227 = vset.pattern.permute.xlu0 0
    %228 = vperm.xlu0 %227, %v68
    %v229 = vpop.permute.xlu0 %228
    %232 = vset.pattern.permute.xlu0 0
    %233 = vperm.xlu0 %232, %v69
    %v234 = vpop.permute.xlu0 %233
    %237 = vset.pattern.permute.xlu0 0
    %238 = vperm.xlu0 %237, %v70
    %v239 = vpop.permute.xlu0 %238
    %242 = vset.pattern.permute.xlu0 0
    %243 = vperm.xlu0 %242, %v71
    %v244 = vpop.permute.xlu0 %243
    %247 = vset.pattern.permute.xlu0 0
    %248 = vperm.xlu0 %247, %v72
    %v249 = vpop.permute.xlu0 %248
    %252 = vset.pattern.permute.xlu0 0
    %253 = vperm.xlu0 %252, %v77
    %v254 = vpop.permute.xlu0 %253
    %257 = vset.pattern.permute.xlu0 0
    %258 = vperm.xlu0 %257, %v78
    %v259 = vpop.permute.xlu0 %258
    %262 = vset.pattern.permute.xlu0 0
    %263 = vperm.xlu0 %262, %v79
    %v264 = vpop.permute.xlu0 %263
    %267 = vset.pattern.permute.xlu0 0
    %268 = vperm.xlu0 %267, %v80
    %v269 = vpop.permute.xlu0 %268
    %272 = vset.pattern.permute.xlu0 0
    %273 = vperm.xlu0 %272, %v81
    %v274 = vpop.permute.xlu0 %273
    %277 = vset.pattern.permute.xlu0 0
    %278 = vperm.xlu0 %277, %v82
    %v279 = vpop.permute.xlu0 %278
    %282 = vset.pattern.permute.xlu0 0
    %283 = vperm.xlu0 %282, %v83
    %v284 = vpop.permute.xlu0 %283
    %287 = vset.pattern.permute.xlu0 0
    %288 = vperm.xlu0 %287, %v84
    %v289 = vpop.permute.xlu0 %288
    %292 = vset.pattern.permute.xlu0 0
    %293 = vperm.xlu0 %292, %v85
    %v294 = vpop.permute.xlu0 %293
    %297 = vset.pattern.permute.xlu0 0
    %298 = vperm.xlu0 %297, %v86
    %v299 = vpop.permute.xlu0 %298
    %302 = vset.pattern.permute.xlu0 0
    %303 = vperm.xlu0 %302, %v87
    %v304 = vpop.permute.xlu0 %303
    %307 = vset.pattern.permute.xlu0 0
    %308 = vperm.xlu0 %307, %v88
    %v309 = vpop.permute.xlu0 %308
    %312 = vset.pattern.permute.xlu0 0
    %313 = vperm.xlu0 %312, %v89
    %v314 = vpop.permute.xlu0 %313
    %317 = vset.pattern.permute.xlu0 0
    %318 = vperm.xlu0 %317, %v90
    %v319 = vpop.permute.xlu0 %318
    %322 = vset.pattern.permute.xlu0 0
    %323 = vperm.xlu0 %322, %v91
    %v324 = vpop.permute.xlu0 %323
    %327 = vset.pattern.permute.xlu0 0
    %328 = vperm.xlu0 %327, %v92
    %v329 = vpop.permute.xlu0 %328
    %332 = vset.pattern.permute.xlu0 0
    %333 = vperm.xlu0 %332, %v93
    %v334 = vpop.permute.xlu0 %333
    %337 = vset.pattern.permute.xlu0 0
    %338 = vperm.xlu0 %337, %v94
    %v339 = vpop.permute.xlu0 %338
    %342 = vset.pattern.permute.xlu0 0
    %343 = vperm.xlu0 %342, %v95
    %v344 = vpop.permute.xlu0 %343
    %347 = vset.pattern.permute.xlu0 0
    %348 = vperm.xlu0 %347, %v96
    %v349 = vpop.permute.xlu0 %348
    %352 = vset.pattern.permute.xlu0 0
    %353 = vperm.xlu0 %352, %v97
    %v354 = vpop.permute.xlu0 %353
    %357 = vset.pattern.permute.xlu0 0
    %358 = vperm.xlu0 %357, %v98
    %v359 = vpop.permute.xlu0 %358
    %362 = vset.pattern.permute.xlu0 0
    %363 = vperm.xlu0 %362, %v99
    %v364 = vpop.permute.xlu0 %363
    %367 = vset.pattern.permute.xlu0 0
    %368 = vperm.xlu0 %367, %v100
    %v369 = vpop.permute.xlu0 %368
    %372 = vset.pattern.permute.xlu0 0
    %373 = vperm.xlu0 %372, %v101
    %v374 = vpop.permute.xlu0 %373
    %377 = vset.pattern.permute.xlu0 0
    %378 = vperm.xlu0 %377, %v102
    %v379 = vpop.permute.xlu0 %378
    %382 = vset.pattern.permute.xlu0 0
    %383 = vperm.xlu0 %382, %v103
    %v384 = vpop.permute.xlu0 %383
    %387 = vset.pattern.permute.xlu0 0
    %388 = vperm.xlu0 %387, %v104
    %v389 = vpop.permute.xlu0 %388
    %v391 = vlaneseq
    %v392 = vshrl.u32 %v391, 7
    %v393 = vsub.s32 0, %v392
    %v394 = vrot.slane %v109, %v393
    %v395 = vmul.f32 %v114, %v394
    %v396 = vmul.f32 %v119, %v394
    %v397 = vmul.f32 %v124, %v394
    %v398 = vmul.f32 %v129, %v394
    %v399 = vmul.f32 %v134, %v394
    %v400 = vmul.f32 %v139, %v394
    %v401 = vmul.f32 %v144, %v394
    %v402 = vmul.f32 %v149, %v394
    %v403 = vmul.f32 %v154, %v394
    %v404 = vmul.f32 %v159, %v394
    %v405 = vmul.f32 %v164, %v394
    %v406 = vmul.f32 %v169, %v394
    %v407 = vmul.f32 %v174, %v394
    %v408 = vmul.f32 %v179, %v394
    %v409 = vmul.f32 %v184, %v394
    %v410 = vmul.f32 %v189, %v394
    %v411 = vmul.f32 %v194, %v394
    %v412 = vmul.f32 %v199, %v394
    %v413 = vmul.f32 %v204, %v394
    %v414 = vmul.f32 %v209, %v394
    %v415 = vmul.f32 %v214, %v394
    %v416 = vmul.f32 %v219, %v394
    %v417 = vmul.f32 %v224, %v394
    %v418 = vmul.f32 %v229, %v394
    %v419 = vmul.f32 %v234, %v394
    %v420 = vmul.f32 %v239, %v394
    %v421 = vmul.f32 %v244, %v394
    %v422 = vmul.f32 %v249, %v394
    %v423 = vmul.f32 %v254, %v394
    %v424 = vmul.f32 %v259, %v394
    %v425 = vmul.f32 %v264, %v394
    %v426 = vmul.f32 %v269, %v394
    %v427 = vmul.f32 %v274, %v394
    %v428 = vmul.f32 %v279, %v394
    %v429 = vmul.f32 %v284, %v394
    %v430 = vmul.f32 %v289, %v394
    %v431 = vmul.f32 %v294, %v394
    %v432 = vmul.f32 %v299, %v394
    %v433 = vmul.f32 %v304, %v394
    %v434 = vmul.f32 %v309, %v394
    %v435 = vmul.f32 %v314, %v394
    %v436 = vmul.f32 %v319, %v394
    %v437 = vmul.f32 %v324, %v394
    %v438 = vmul.f32 %v329, %v394
    %v439 = vmul.f32 %v334, %v394
    %v440 = vmul.f32 %v339, %v394
    %v441 = vmul.f32 %v344, %v394
    %v442 = vmul.f32 %v349, %v394
    %v443 = vmul.f32 %v354, %v394
    %v444 = vmul.f32 %v359, %v394
    %v445 = vmul.f32 %v364, %v394
    %v446 = vmul.f32 %v369, %v394
    %v447 = vmul.f32 %v374, %v394
    %v448 = vmul.f32 %v379, %v394
    %v449 = vmul.f32 %v384, %v394
    %v450 = vmul.f32 %v389, %v394
    %v451 = vlaneseq
    %v452 = vshrl.u32 %v451, 7
    %v453 = vsub.s32 1, %v452
    %v454 = vrot.slane %v109, %v453
    %v455 = vmul.f32 %v114, %v454
    %v456 = vmul.f32 %v119, %v454
    %v457 = vmul.f32 %v124, %v454
    %v458 = vmul.f32 %v129, %v454
    %v459 = vmul.f32 %v134, %v454
    %v460 = vmul.f32 %v139, %v454
    %v461 = vmul.f32 %v144, %v454
    %v462 = vmul.f32 %v149, %v454
    %v463 = vmul.f32 %v154, %v454
    %v464 = vmul.f32 %v159, %v454
    %v465 = vmul.f32 %v164, %v454
    %v466 = vmul.f32 %v169, %v454
    %v467 = vmul.f32 %v174, %v454
    %v468 = vmul.f32 %v179, %v454
    %v469 = vmul.f32 %v184, %v454
    %v470 = vmul.f32 %v189, %v454
    %v471 = vmul.f32 %v194, %v454
    %v472 = vmul.f32 %v199, %v454
    %v473 = vmul.f32 %v204, %v454
    %v474 = vmul.f32 %v209, %v454
    %v475 = vmul.f32 %v214, %v454
    %v476 = vmul.f32 %v219, %v454
    %v477 = vmul.f32 %v224, %v454
    %v478 = vmul.f32 %v229, %v454
    %v479 = vmul.f32 %v234, %v454
    %v480 = vmul.f32 %v239, %v454
    %v481 = vmul.f32 %v244, %v454
    %v482 = vmul.f32 %v249, %v454
    %v483 = vmul.f32 %v254, %v454
    %v484 = vmul.f32 %v259, %v454
    %v485 = vmul.f32 %v264, %v454
    %v486 = vmul.f32 %v269, %v454
    %v487 = vmul.f32 %v274, %v454
    %v488 = vmul.f32 %v279, %v454
    %v489 = vmul.f32 %v284, %v454
    %v490 = vmul.f32 %v289, %v454
    %v491 = vmul.f32 %v294, %v454
    %v492 = vmul.f32 %v299, %v454
    %v493 = vmul.f32 %v304, %v454
    %v494 = vmul.f32 %v309, %v454
    %v495 = vmul.f32 %v314, %v454
    %v496 = vmul.f32 %v319, %v454
    %v497 = vmul.f32 %v324, %v454
    %v498 = vmul.f32 %v329, %v454
    %v499 = vmul.f32 %v334, %v454
    %v500 = vmul.f32 %v339, %v454
    %v501 = vmul.f32 %v344, %v454
    %v502 = vmul.f32 %v349, %v454
    %v503 = vmul.f32 %v354, %v454
    %v504 = vmul.f32 %v359, %v454
    %v505 = vmul.f32 %v364, %v454
    %v506 = vmul.f32 %v369, %v454
    %v507 = vmul.f32 %v374, %v454
    %v508 = vmul.f32 %v379, %v454
    %v509 = vmul.f32 %v384, %v454
    %v510 = vmul.f32 %v389, %v454
    %v511 = vlaneseq
    %v512 = vshrl.u32 %v511, 7
    %v513 = vsub.s32 2, %v512
    %v514 = vrot.slane %v109, %v513
    %v515 = vmul.f32 %v114, %v514
    %v516 = vmul.f32 %v119, %v514
    %v517 = vmul.f32 %v124, %v514
    %v518 = vmul.f32 %v129, %v514
    %v519 = vmul.f32 %v134, %v514
    %v520 = vmul.f32 %v139, %v514
    %v521 = vmul.f32 %v144, %v514
    %v522 = vmul.f32 %v149, %v514
    %v523 = vmul.f32 %v154, %v514
    %v524 = vmul.f32 %v159, %v514
    %v525 = vmul.f32 %v164, %v514
    %v526 = vmul.f32 %v169, %v514
    %v527 = vmul.f32 %v174, %v514
    %v528 = vmul.f32 %v179, %v514
    %v529 = vmul.f32 %v184, %v514
    %v530 = vmul.f32 %v189, %v514
    %v531 = vmul.f32 %v194, %v514
    %v532 = vmul.f32 %v199, %v514
    %v533 = vmul.f32 %v204, %v514
    %v534 = vmul.f32 %v209, %v514
    %v535 = vmul.f32 %v214, %v514
    %v536 = vmul.f32 %v219, %v514
    %v537 = vmul.f32 %v224, %v514
    %v538 = vmul.f32 %v229, %v514
    %v539 = vmul.f32 %v234, %v514
    %v540 = vmul.f32 %v239, %v514
    %v541 = vmul.f32 %v244, %v514
    %v542 = vmul.f32 %v249, %v514
    %v543 = vmul.f32 %v254, %v514
    %v544 = vmul.f32 %v259, %v514
    %v545 = vmul.f32 %v264, %v514
    %v546 = vmul.f32 %v269, %v514
    %v547 = vmul.f32 %v274, %v514
    %v548 = vmul.f32 %v279, %v514
    %v549 = vmul.f32 %v284, %v514
    %v550 = vmul.f32 %v289, %v514
    %v551 = vmul.f32 %v294, %v514
    %v552 = vmul.f32 %v299, %v514
    %v553 = vmul.f32 %v304, %v514
    %v554 = vmul.f32 %v309, %v514
    %v555 = vmul.f32 %v314, %v514
    %v556 = vmul.f32 %v319, %v514
    %v557 = vmul.f32 %v324, %v514
    %v558 = vmul.f32 %v329, %v514
    %v559 = vmul.f32 %v334, %v514
    %v560 = vmul.f32 %v339, %v514
    %v561 = vmul.f32 %v344, %v514
    %v562 = vmul.f32 %v349, %v514
    %v563 = vmul.f32 %v354, %v514
    %v564 = vmul.f32 %v359, %v514
    %v565 = vmul.f32 %v364, %v514
    %v566 = vmul.f32 %v369, %v514
    %v567 = vmul.f32 %v374, %v514
    %v568 = vmul.f32 %v379, %v514
    %v569 = vmul.f32 %v384, %v514
    %v570 = vmul.f32 %v389, %v514
    %572 = vset.pattern.permute.xlu0 0
    %573 = vperm.xlu0 %572, %v73
    %v574 = vpop.permute.xlu0 %573
    %577 = vset.pattern.permute.xlu0 0
    %578 = vperm.xlu0 %577, %v74
    %v579 = vpop.permute.xlu0 %578
    %582 = vset.pattern.permute.xlu0 0
    %583 = vperm.xlu0 %582, %v105
    %v584 = vpop.permute.xlu0 %583
    %587 = vset.pattern.permute.xlu0 0
    %588 = vperm.xlu0 %587, %v106
    %v589 = vpop.permute.xlu0 %588
    %v591 = vlaneseq
    %v592 = vshrl.u32 %v591, 7
    %v593 = vsub.s32 3, %v592
    %v594 = vrot.slane %v109, %v593
    %v595 = vmul.f32 %v124, %v594
    %v596 = vmul.f32 %v129, %v594
    %v597 = vmul.f32 %v134, %v594
    %v598 = vmul.f32 %v139, %v594
    %v599 = vmul.f32 %v144, %v594
    %v600 = vmul.f32 %v149, %v594
    %v601 = vmul.f32 %v154, %v594
    %v602 = vmul.f32 %v159, %v594
    %v603 = vmul.f32 %v164, %v594
    %v604 = vmul.f32 %v169, %v594
    %v605 = vmul.f32 %v174, %v594
    %v606 = vmul.f32 %v179, %v594
    %v607 = vmul.f32 %v184, %v594
    %v608 = vmul.f32 %v189, %v594
    %v609 = vmul.f32 %v194, %v594
    %v610 = vmul.f32 %v199, %v594
    %v611 = vmul.f32 %v204, %v594
    %v612 = vmul.f32 %v209, %v594
    %v613 = vmul.f32 %v214, %v594
    %v614 = vmul.f32 %v219, %v594
    %v615 = vmul.f32 %v224, %v594
    %v616 = vmul.f32 %v229, %v594
    %v617 = vmul.f32 %v234, %v594
    %v618 = vmul.f32 %v239, %v594
    %v619 = vmul.f32 %v244, %v594
    %v620 = vmul.f32 %v249, %v594
    %v621 = vmul.f32 %v574, %v594
    %v622 = vmul.f32 %v579, %v594
    %v623 = vmul.f32 %v264, %v594
    %v624 = vmul.f32 %v269, %v594
    %v625 = vmul.f32 %v274, %v594
    %v626 = vmul.f32 %v279, %v594
    %v627 = vmul.f32 %v284, %v594
    %v628 = vmul.f32 %v289, %v594
    %v629 = vmul.f32 %v294, %v594
    %v630 = vmul.f32 %v299, %v594
    %v631 = vmul.f32 %v304, %v594
    %v632 = vmul.f32 %v309, %v594
    %v633 = vmul.f32 %v314, %v594
    %v634 = vmul.f32 %v319, %v594
    %v635 = vmul.f32 %v324, %v594
    %v636 = vmul.f32 %v329, %v594
    %v637 = vmul.f32 %v334, %v594
    %v638 = vmul.f32 %v339, %v594
    %v639 = vmul.f32 %v344, %v594
    %v640 = vmul.f32 %v349, %v594
    %v641 = vmul.f32 %v354, %v594
    %v642 = vmul.f32 %v359, %v594
    %v643 = vmul.f32 %v364, %v594
    %v644 = vmul.f32 %v369, %v594
    %v645 = vmul.f32 %v374, %v594
    %v646 = vmul.f32 %v379, %v594
    %v647 = vmul.f32 %v384, %v594
    %v648 = vmul.f32 %v389, %v594
    %v649 = vmul.f32 %v584, %v594
    %v650 = vmul.f32 %v589, %v594
    %v651 = vlaneseq
    %v652 = vshrl.u32 %v651, 7
    %v653 = vsub.s32 4, %v652
    %v654 = vrot.slane %v109, %v653
    %v655 = vmul.f32 %v124, %v654
    %v656 = vmul.f32 %v129, %v654
    %v657 = vmul.f32 %v134, %v654
    %v658 = vmul.f32 %v139, %v654
    %v659 = vmul.f32 %v144, %v654
    %v660 = vmul.f32 %v149, %v654
    %v661 = vmul.f32 %v154, %v654
    %v662 = vmul.f32 %v159, %v654
    %v663 = vmul.f32 %v164, %v654
    %v664 = vmul.f32 %v169, %v654
    %v665 = vmul.f32 %v174, %v654
    %v666 = vmul.f32 %v179, %v654
    %v667 = vmul.f32 %v184, %v654
    %v668 = vmul.f32 %v189, %v654
    %v669 = vmul.f32 %v194, %v654
    %v670 = vmul.f32 %v199, %v654
    %v671 = vmul.f32 %v204, %v654
    %v672 = vmul.f32 %v209, %v654
    %v673 = vmul.f32 %v214, %v654
    %v674 = vmul.f32 %v219, %v654
    %v675 = vmul.f32 %v224, %v654
    %v676 = vmul.f32 %v229, %v654
    %v677 = vmul.f32 %v234, %v654
    %v678 = vmul.f32 %v239, %v654
    %v679 = vmul.f32 %v244, %v654
    %v680 = vmul.f32 %v249, %v654
    %v681 = vmul.f32 %v574, %v654
    %v682 = vmul.f32 %v579, %v654
    %v683 = vmul.f32 %v264, %v654
    %v684 = vmul.f32 %v269, %v654
    %v685 = vmul.f32 %v274, %v654
    %v686 = vmul.f32 %v279, %v654
    %v687 = vmul.f32 %v284, %v654
    %v688 = vmul.f32 %v289, %v654
    %v689 = vmul.f32 %v294, %v654
    %v690 = vmul.f32 %v299, %v654
    %v691 = vmul.f32 %v304, %v654
    %v692 = vmul.f32 %v309, %v654
    %v693 = vmul.f32 %v314, %v654
    %v694 = vmul.f32 %v319, %v654
    %v695 = vmul.f32 %v324, %v654
    %v696 = vmul.f32 %v329, %v654
    %v697 = vmul.f32 %v334, %v654
    %v698 = vmul.f32 %v339, %v654
    %v699 = vmul.f32 %v344, %v654
    %v700 = vmul.f32 %v349, %v654
    %v701 = vmul.f32 %v354, %v654
    %v702 = vmul.f32 %v359, %v654
    %v703 = vmul.f32 %v364, %v654
    %v704 = vmul.f32 %v369, %v654
    %v705 = vmul.f32 %v374, %v654
    %v706 = vmul.f32 %v379, %v654
    %v707 = vmul.f32 %v384, %v654
    %v708 = vmul.f32 %v389, %v654
    %v709 = vmul.f32 %v584, %v654
    %v710 = vmul.f32 %v589, %v654
    %v711 = vlaneseq
    %v712 = vshrl.u32 %v711, 7
    %v713 = vsub.s32 5, %v712
    %v714 = vrot.slane %v109, %v713
    %v715 = vmul.f32 %v124, %v714
    %v716 = vmul.f32 %v129, %v714
    %v717 = vmul.f32 %v134, %v714
    %v718 = vmul.f32 %v139, %v714
    %v719 = vmul.f32 %v144, %v714
    %v720 = vmul.f32 %v149, %v714
    %v721 = vmul.f32 %v154, %v714
    %v722 = vmul.f32 %v159, %v714
    %v723 = vmul.f32 %v164, %v714
    %v724 = vmul.f32 %v169, %v714
    %v725 = vmul.f32 %v174, %v714
    %v726 = vmul.f32 %v179, %v714
    %v727 = vmul.f32 %v184, %v714
    %v728 = vmul.f32 %v189, %v714
    %v729 = vmul.f32 %v194, %v714
    %v730 = vmul.f32 %v199, %v714
    %v731 = vmul.f32 %v204, %v714
    %v732 = vmul.f32 %v209, %v714
    %v733 = vmul.f32 %v214, %v714
    %v734 = vmul.f32 %v219, %v714
    %v735 = vmul.f32 %v224, %v714
    %v736 = vmul.f32 %v229, %v714
    %v737 = vmul.f32 %v234, %v714
    %v738 = vmul.f32 %v239, %v714
    %v739 = vmul.f32 %v244, %v714
    %v740 = vmul.f32 %v249, %v714
    %v741 = vmul.f32 %v574, %v714
    %v742 = vmul.f32 %v579, %v714
    %v743 = vmul.f32 %v264, %v714
    %v744 = vmul.f32 %v269, %v714
    %v745 = vmul.f32 %v274, %v714
    %v746 = vmul.f32 %v279, %v714
    %v747 = vmul.f32 %v284, %v714
    %v748 = vmul.f32 %v289, %v714
    %v749 = vmul.f32 %v294, %v714
    %v750 = vmul.f32 %v299, %v714
    %v751 = vmul.f32 %v304, %v714
    %v752 = vmul.f32 %v309, %v714
    %v753 = vmul.f32 %v314, %v714
    %v754 = vmul.f32 %v319, %v714
    %v755 = vmul.f32 %v324, %v714
    %v756 = vmul.f32 %v329, %v714
    %v757 = vmul.f32 %v334, %v714
    %v758 = vmul.f32 %v339, %v714
    %v759 = vmul.f32 %v344, %v714
    %v760 = vmul.f32 %v349, %v714
    %v761 = vmul.f32 %v354, %v714
    %v762 = vmul.f32 %v359, %v714
    %v763 = vmul.f32 %v364, %v714
    %v764 = vmul.f32 %v369, %v714
    %v765 = vmul.f32 %v374, %v714
    %v766 = vmul.f32 %v379, %v714
    %v767 = vmul.f32 %v384, %v714
    %v768 = vmul.f32 %v389, %v714
    %v769 = vmul.f32 %v584, %v714
    %v770 = vmul.f32 %v589, %v714
    %772 = vset.pattern.permute.xlu0 0
    %773 = vperm.xlu0 %772, %v75
    %v774 = vpop.permute.xlu0 %773
    %777 = vset.pattern.permute.xlu0 0
    %778 = vperm.xlu0 %777, %v76
    %v779 = vpop.permute.xlu0 %778
    %782 = vset.pattern.permute.xlu0 0
    %783 = vperm.xlu0 %782, %v107
    %v784 = vpop.permute.xlu0 %783
    %787 = vset.pattern.permute.xlu0 0
    %788 = vperm.xlu0 %787, %v108
    %v789 = vpop.permute.xlu0 %788
    %v791 = vlaneseq
    %v792 = vshrl.u32 %v791, 7
    %v793 = vsub.s32 6, %v792
    %v794 = vrot.slane %v109, %v793
    %v795 = vmul.f32 %v134, %v794
    %v796 = vmul.f32 %v139, %v794
    %v797 = vmul.f32 %v144, %v794
    %v798 = vmul.f32 %v149, %v794
    %v799 = vmul.f32 %v154, %v794
    %v800 = vmul.f32 %v159, %v794
    %v801 = vmul.f32 %v164, %v794
    %v802 = vmul.f32 %v169, %v794
    %v803 = vmul.f32 %v174, %v794
    %v804 = vmul.f32 %v179, %v794
    %v805 = vmul.f32 %v184, %v794
    %v806 = vmul.f32 %v189, %v794
    %v807 = vmul.f32 %v194, %v794
    %v808 = vmul.f32 %v199, %v794
    %v809 = vmul.f32 %v204, %v794
    %v810 = vmul.f32 %v209, %v794
    %v811 = vmul.f32 %v214, %v794
    %v812 = vmul.f32 %v219, %v794
    %v813 = vmul.f32 %v224, %v794
    %v814 = vmul.f32 %v229, %v794
    %v815 = vmul.f32 %v234, %v794
    %v816 = vmul.f32 %v239, %v794
    %v817 = vmul.f32 %v244, %v794
    %v818 = vmul.f32 %v249, %v794
    %v819 = vmul.f32 %v574, %v794
    %v820 = vmul.f32 %v579, %v794
    %v821 = vmul.f32 %v774, %v794
    %v822 = vmul.f32 %v779, %v794
    %v823 = vmul.f32 %v274, %v794
    %v824 = vmul.f32 %v279, %v794
    %v825 = vmul.f32 %v284, %v794
    %v826 = vmul.f32 %v289, %v794
    %v827 = vmul.f32 %v294, %v794
    %v828 = vmul.f32 %v299, %v794
    %v829 = vmul.f32 %v304, %v794
    %v830 = vmul.f32 %v309, %v794
    %v831 = vmul.f32 %v314, %v794
    %v832 = vmul.f32 %v319, %v794
    %v833 = vmul.f32 %v324, %v794
    %v834 = vmul.f32 %v329, %v794
    %v835 = vmul.f32 %v334, %v794
    %v836 = vmul.f32 %v339, %v794
    %v837 = vmul.f32 %v344, %v794
    %v838 = vmul.f32 %v349, %v794
    %v839 = vmul.f32 %v354, %v794
    %v840 = vmul.f32 %v359, %v794
    %v841 = vmul.f32 %v364, %v794
    %v842 = vmul.f32 %v369, %v794
    %v843 = vmul.f32 %v374, %v794
    %v844 = vmul.f32 %v379, %v794
    %v845 = vmul.f32 %v384, %v794
    %v846 = vmul.f32 %v389, %v794
    %v847 = vmul.f32 %v584, %v794
    %v848 = vmul.f32 %v589, %v794
    %v849 = vmul.f32 %v784, %v794
    %v850 = vmul.f32 %v789, %v794
    %v851 = vlaneseq
    %v852 = vshrl.u32 %v851, 7
    %v853 = vsub.s32 7, %v852
    %v854 = vrot.slane %v109, %v853
    %v855 = vmul.f32 %v134, %v854
    %v856 = vmul.f32 %v139, %v854
    %v857 = vmul.f32 %v144, %v854
    %v858 = vmul.f32 %v149, %v854
    %v859 = vmul.f32 %v154, %v854
    %v860 = vmul.f32 %v159, %v854
    %v861 = vmul.f32 %v164, %v854
    %v862 = vmul.f32 %v169, %v854
    %v863 = vmul.f32 %v174, %v854
    %v864 = vmul.f32 %v179, %v854
    %v865 = vmul.f32 %v184, %v854
    %v866 = vmul.f32 %v189, %v854
    %v867 = vmul.f32 %v194, %v854
    %v868 = vmul.f32 %v199, %v854
    %v869 = vmul.f32 %v204, %v854
    %v870 = vmul.f32 %v209, %v854
    %v871 = vmul.f32 %v214, %v854
    %v872 = vmul.f32 %v219, %v854
    %v873 = vmul.f32 %v224, %v854
    %v874 = vmul.f32 %v229, %v854
    %v875 = vmul.f32 %v234, %v854
    %v876 = vmul.f32 %v239, %v854
    %v877 = vmul.f32 %v244, %v854
    %v878 = vmul.f32 %v249, %v854
    %v879 = vmul.f32 %v574, %v854
    %v880 = vmul.f32 %v579, %v854
    %v881 = vmul.f32 %v774, %v854
    %v882 = vmul.f32 %v779, %v854
    %v883 = vmul.f32 %v274, %v854
    %v884 = vmul.f32 %v279, %v854
    %v885 = vmul.f32 %v284, %v854
    %v886 = vmul.f32 %v289, %v854
    %v887 = vmul.f32 %v294, %v854
    %v888 = vmul.f32 %v299, %v854
    %v889 = vmul.f32 %v304, %v854
    %v890 = vmul.f32 %v309, %v854
    %v891 = vmul.f32 %v314, %v854
    %v892 = vmul.f32 %v319, %v854
    %v893 = vmul.f32 %v324, %v854
    %v894 = vmul.f32 %v329, %v854
    %v895 = vmul.f32 %v334, %v854
    %v896 = vmul.f32 %v339, %v854
    %v897 = vmul.f32 %v344, %v854
    %v898 = vmul.f32 %v349, %v854
    %v899 = vmul.f32 %v354, %v854
    %v900 = vmul.f32 %v359, %v854
    %v901 = vmul.f32 %v364, %v854
    %v902 = vmul.f32 %v369, %v854
    %v903 = vmul.f32 %v374, %v854
    %v904 = vmul.f32 %v379, %v854
    %v905 = vmul.f32 %v384, %v854
    %v906 = vmul.f32 %v389, %v854
    %v907 = vmul.f32 %v584, %v854
    %v908 = vmul.f32 %v589, %v854
    %v909 = vmul.f32 %v784, %v854
    %v910 = vmul.f32 %v789, %v854
    %v911 = vlaneseq
    %v912 = vshrl.u32 %v911, 7
    %v913 = vsub.s32 0, %v912
    %v914 = vrot.slane %v110, %v913
    %v915 = vmul.f32 %v134, %v914
    %v916 = vmul.f32 %v139, %v914
    %v917 = vmul.f32 %v144, %v914
    %v918 = vmul.f32 %v149, %v914
    %v919 = vmul.f32 %v154, %v914
    %v920 = vmul.f32 %v159, %v914
    %v921 = vmul.f32 %v164, %v914
    %v922 = vmul.f32 %v169, %v914
    %v923 = vmul.f32 %v174, %v914
    %v924 = vmul.f32 %v179, %v914
    %v925 = vmul.f32 %v184, %v914
    %v926 = vmul.f32 %v189, %v914
    %v927 = vmul.f32 %v194, %v914
    %v928 = vmul.f32 %v199, %v914
    %v929 = vmul.f32 %v204, %v914
    %v930 = vmul.f32 %v209, %v914
    %v931 = vmul.f32 %v214, %v914
    %v932 = vmul.f32 %v219, %v914
    %v933 = vmul.f32 %v224, %v914
    %v934 = vmul.f32 %v229, %v914
    %v935 = vmul.f32 %v234, %v914
    %v936 = vmul.f32 %v239, %v914
    %v937 = vmul.f32 %v244, %v914
    %v938 = vmul.f32 %v249, %v914
    %v939 = vmul.f32 %v574, %v914
    %v940 = vmul.f32 %v579, %v914
    %v941 = vmul.f32 %v774, %v914
    %v942 = vmul.f32 %v779, %v914
    %v943 = vmul.f32 %v274, %v914
    %v944 = vmul.f32 %v279, %v914
    %v945 = vmul.f32 %v284, %v914
    %v946 = vmul.f32 %v289, %v914
    %v947 = vmul.f32 %v294, %v914
    %v948 = vmul.f32 %v299, %v914
    %v949 = vmul.f32 %v304, %v914
    %v950 = vmul.f32 %v309, %v914
    %v951 = vmul.f32 %v314, %v914
    %v952 = vmul.f32 %v319, %v914
    %v953 = vmul.f32 %v324, %v914
    %v954 = vmul.f32 %v329, %v914
    %v955 = vmul.f32 %v334, %v914
    %v956 = vmul.f32 %v339, %v914
    %v957 = vmul.f32 %v344, %v914
    %v958 = vmul.f32 %v349, %v914
    %v959 = vmul.f32 %v354, %v914
    %v960 = vmul.f32 %v359, %v914
    %v961 = vmul.f32 %v364, %v914
    %v962 = vmul.f32 %v369, %v914
    %v963 = vmul.f32 %v374, %v914
    %v964 = vmul.f32 %v379, %v914
    %v965 = vmul.f32 %v384, %v914
    %v966 = vmul.f32 %v389, %v914
    %v967 = vmul.f32 %v584, %v914
    %v968 = vmul.f32 %v589, %v914
    %v969 = vmul.f32 %v784, %v914
    %v970 = vmul.f32 %v789, %v914
    %vm1027 = vcmask 1046528
    %v1028 = vrot.slane %v455, 1
    %v1029 = vrot.slane %v456, 1
    %v1030 = vsel %vm1027, %v1028, %v1029
    %v1031 = vrot.slane %v457, 1
    %v1032 = vrot.slane %v458, 1
    %v1033 = vsel %vm1027, %v1031, %v1032
    %v1034 = vrot.slane %v459, 1
    %v1035 = vrot.slane %v460, 1
    %v1036 = vsel %vm1027, %v1034, %v1035
    %v1037 = vrot.slane %v461, 1
    %v1038 = vrot.slane %v462, 1
    %v1039 = vsel %vm1027, %v1037, %v1038
    %v1040 = vrot.slane %v463, 1
    %v1041 = vrot.slane %v464, 1
    %v1042 = vsel %vm1027, %v1040, %v1041
    %v1043 = vrot.slane %v465, 1
    %v1044 = vrot.slane %v466, 1
    %v1045 = vsel %vm1027, %v1043, %v1044
    %v1046 = vrot.slane %v467, 1
    %v1047 = vrot.slane %v468, 1
    %v1048 = vsel %vm1027, %v1046, %v1047
    %v1049 = vrot.slane %v469, 1
    %v1050 = vrot.slane %v470, 1
    %v1051 = vsel %vm1027, %v1049, %v1050
    %v1052 = vrot.slane %v471, 1
    %v1053 = vrot.slane %v472, 1
    %v1054 = vsel %vm1027, %v1052, %v1053
    %v1055 = vrot.slane %v473, 1
    %v1056 = vrot.slane %v474, 1
    %v1057 = vsel %vm1027, %v1055, %v1056
    %v1058 = vrot.slane %v475, 1
    %v1059 = vrot.slane %v476, 1
    %v1060 = vsel %vm1027, %v1058, %v1059
    %v1061 = vrot.slane %v477, 1
    %v1062 = vrot.slane %v478, 1
    %v1063 = vsel %vm1027, %v1061, %v1062
    %v1064 = vrot.slane %v479, 1
    %v1065 = vrot.slane %v480, 1
    %v1066 = vsel %vm1027, %v1064, %v1065
    %v1067 = vrot.slane %v481, 1
    %v1068 = vrot.slane %v482, 1
    %v1069 = vsel %vm1027, %v1067, %v1068
    %v1070 = vrot.slane %v483, 1
    %v1071 = vrot.slane %v484, 1
    %v1072 = vsel %vm1027, %v1070, %v1071
    %v1073 = vrot.slane %v485, 1
    %v1074 = vrot.slane %v486, 1
    %v1075 = vsel %vm1027, %v1073, %v1074
    %v1076 = vrot.slane %v487, 1
    %v1077 = vrot.slane %v488, 1
    %v1078 = vsel %vm1027, %v1076, %v1077
    %v1079 = vrot.slane %v489, 1
    %v1080 = vrot.slane %v490, 1
    %v1081 = vsel %vm1027, %v1079, %v1080
    %v1082 = vrot.slane %v491, 1
    %v1083 = vrot.slane %v492, 1
    %v1084 = vsel %vm1027, %v1082, %v1083
    %v1085 = vrot.slane %v493, 1
    %v1086 = vrot.slane %v494, 1
    %v1087 = vsel %vm1027, %v1085, %v1086
    %v1088 = vrot.slane %v495, 1
    %v1089 = vrot.slane %v496, 1
    %v1090 = vsel %vm1027, %v1088, %v1089
    %v1091 = vrot.slane %v497, 1
    %v1092 = vrot.slane %v498, 1
    %v1093 = vsel %vm1027, %v1091, %v1092
    %v1094 = vrot.slane %v499, 1
    %v1095 = vrot.slane %v500, 1
    %v1096 = vsel %vm1027, %v1094, %v1095
    %v1097 = vrot.slane %v501, 1
    %v1098 = vrot.slane %v502, 1
    %v1099 = vsel %vm1027, %v1097, %v1098
    %v1100 = vrot.slane %v503, 1
    %v1101 = vrot.slane %v504, 1
    %v1102 = vsel %vm1027, %v1100, %v1101
    %v1103 = vrot.slane %v505, 1
    %v1104 = vrot.slane %v506, 1
    %v1105 = vsel %vm1027, %v1103, %v1104
    %v1106 = vrot.slane %v507, 1
    %v1107 = vrot.slane %v508, 1
    %v1108 = vsel %vm1027, %v1106, %v1107
    %v1109 = vrot.slane %v509, 1
    %v1110 = vrot.slane %v510, 1
    %v1111 = vsel %vm1027, %v1109, %v1110
    %v1168 = vadd.f32 %v395, %v1030
    %v1169 = vadd.f32 %v396, %v1029
    %v1170 = vadd.f32 %v397, %v1033
    %v1171 = vadd.f32 %v398, %v1032
    %v1172 = vadd.f32 %v399, %v1036
    %v1173 = vadd.f32 %v400, %v1035
    %v1174 = vadd.f32 %v401, %v1039
    %v1175 = vadd.f32 %v402, %v1038
    %v1176 = vadd.f32 %v403, %v1042
    %v1177 = vadd.f32 %v404, %v1041
    %v1178 = vadd.f32 %v405, %v1045
    %v1179 = vadd.f32 %v406, %v1044
    %v1180 = vadd.f32 %v407, %v1048
    %v1181 = vadd.f32 %v408, %v1047
    %v1182 = vadd.f32 %v409, %v1051
    %v1183 = vadd.f32 %v410, %v1050
    %v1184 = vadd.f32 %v411, %v1054
    %v1185 = vadd.f32 %v412, %v1053
    %v1186 = vadd.f32 %v413, %v1057
    %v1187 = vadd.f32 %v414, %v1056
    %v1188 = vadd.f32 %v415, %v1060
    %v1189 = vadd.f32 %v416, %v1059
    %v1190 = vadd.f32 %v417, %v1063
    %v1191 = vadd.f32 %v418, %v1062
    %v1192 = vadd.f32 %v419, %v1066
    %v1193 = vadd.f32 %v420, %v1065
    %v1194 = vadd.f32 %v421, %v1069
    %v1195 = vadd.f32 %v422, %v1068
    %v1196 = vadd.f32 %v423, %v1072
    %v1197 = vadd.f32 %v424, %v1071
    %v1198 = vadd.f32 %v425, %v1075
    %v1199 = vadd.f32 %v426, %v1074
    %v1200 = vadd.f32 %v427, %v1078
    %v1201 = vadd.f32 %v428, %v1077
    %v1202 = vadd.f32 %v429, %v1081
    %v1203 = vadd.f32 %v430, %v1080
    %v1204 = vadd.f32 %v431, %v1084
    %v1205 = vadd.f32 %v432, %v1083
    %v1206 = vadd.f32 %v433, %v1087
    %v1207 = vadd.f32 %v434, %v1086
    %v1208 = vadd.f32 %v435, %v1090
    %v1209 = vadd.f32 %v436, %v1089
    %v1210 = vadd.f32 %v437, %v1093
    %v1211 = vadd.f32 %v438, %v1092
    %v1212 = vadd.f32 %v439, %v1096
    %v1213 = vadd.f32 %v440, %v1095
    %v1214 = vadd.f32 %v441, %v1099
    %v1215 = vadd.f32 %v442, %v1098
    %v1216 = vadd.f32 %v443, %v1102
    %v1217 = vadd.f32 %v444, %v1101
    %v1218 = vadd.f32 %v445, %v1105
    %v1219 = vadd.f32 %v446, %v1104
    %v1220 = vadd.f32 %v447, %v1108
    %v1221 = vadd.f32 %v448, %v1107
    %v1222 = vadd.f32 %v449, %v1111
    %v1223 = vadd.f32 %v450, %v1110
    %vm1280 = vcmask 1041408
    %v1281 = vrot.slane %v595, 6
    %v1282 = vrot.slane %v596, 6
    %v1283 = vsel %vm1280, %v1281, %v1282
    %v1284 = vrot.slane %v597, 6
    %v1285 = vrot.slane %v598, 6
    %v1286 = vsel %vm1280, %v1284, %v1285
    %v1287 = vrot.slane %v599, 6
    %v1288 = vrot.slane %v600, 6
    %v1289 = vsel %vm1280, %v1287, %v1288
    %v1290 = vrot.slane %v601, 6
    %v1291 = vrot.slane %v602, 6
    %v1292 = vsel %vm1280, %v1290, %v1291
    %v1293 = vrot.slane %v603, 6
    %v1294 = vrot.slane %v604, 6
    %v1295 = vsel %vm1280, %v1293, %v1294
    %v1296 = vrot.slane %v605, 6
    %v1297 = vrot.slane %v606, 6
    %v1298 = vsel %vm1280, %v1296, %v1297
    %v1299 = vrot.slane %v607, 6
    %v1300 = vrot.slane %v608, 6
    %v1301 = vsel %vm1280, %v1299, %v1300
    %v1302 = vrot.slane %v609, 6
    %v1303 = vrot.slane %v610, 6
    %v1304 = vsel %vm1280, %v1302, %v1303
    %v1305 = vrot.slane %v611, 6
    %v1306 = vrot.slane %v612, 6
    %v1307 = vsel %vm1280, %v1305, %v1306
    %v1308 = vrot.slane %v613, 6
    %v1309 = vrot.slane %v614, 6
    %v1310 = vsel %vm1280, %v1308, %v1309
    %v1311 = vrot.slane %v615, 6
    %v1312 = vrot.slane %v616, 6
    %v1313 = vsel %vm1280, %v1311, %v1312
    %v1314 = vrot.slane %v617, 6
    %v1315 = vrot.slane %v618, 6
    %v1316 = vsel %vm1280, %v1314, %v1315
    %v1317 = vrot.slane %v619, 6
    %v1318 = vrot.slane %v620, 6
    %v1319 = vsel %vm1280, %v1317, %v1318
    %v1320 = vrot.slane %v621, 6
    %v1321 = vrot.slane %v622, 6
    %v1322 = vsel %vm1280, %v1320, %v1321
    %v1323 = vrot.slane %v623, 6
    %v1324 = vrot.slane %v624, 6
    %v1325 = vsel %vm1280, %v1323, %v1324
    %v1326 = vrot.slane %v625, 6
    %v1327 = vrot.slane %v626, 6
    %v1328 = vsel %vm1280, %v1326, %v1327
    %v1329 = vrot.slane %v627, 6
    %v1330 = vrot.slane %v628, 6
    %v1331 = vsel %vm1280, %v1329, %v1330
    %v1332 = vrot.slane %v629, 6
    %v1333 = vrot.slane %v630, 6
    %v1334 = vsel %vm1280, %v1332, %v1333
    %v1335 = vrot.slane %v631, 6
    %v1336 = vrot.slane %v632, 6
    %v1337 = vsel %vm1280, %v1335, %v1336
    %v1338 = vrot.slane %v633, 6
    %v1339 = vrot.slane %v634, 6
    %v1340 = vsel %vm1280, %v1338, %v1339
    %v1341 = vrot.slane %v635, 6
    %v1342 = vrot.slane %v636, 6
    %v1343 = vsel %vm1280, %v1341, %v1342
    %v1344 = vrot.slane %v637, 6
    %v1345 = vrot.slane %v638, 6
    %v1346 = vsel %vm1280, %v1344, %v1345
    %v1347 = vrot.slane %v639, 6
    %v1348 = vrot.slane %v640, 6
    %v1349 = vsel %vm1280, %v1347, %v1348
    %v1350 = vrot.slane %v641, 6
    %v1351 = vrot.slane %v642, 6
    %v1352 = vsel %vm1280, %v1350, %v1351
    %v1353 = vrot.slane %v643, 6
    %v1354 = vrot.slane %v644, 6
    %v1355 = vsel %vm1280, %v1353, %v1354
    %v1356 = vrot.slane %v645, 6
    %v1357 = vrot.slane %v646, 6
    %v1358 = vsel %vm1280, %v1356, %v1357
    %v1359 = vrot.slane %v647, 6
    %v1360 = vrot.slane %v648, 6
    %v1361 = vsel %vm1280, %v1359, %v1360
    %v1362 = vrot.slane %v649, 6
    %v1363 = vrot.slane %v650, 6
    %v1364 = vsel %vm1280, %v1362, %v1363
    %v1421 = vadd.f32 %v515, %v1281
    %v1422 = vadd.f32 %v516, %v1283
    %v1423 = vadd.f32 %v517, %v1284
    %v1424 = vadd.f32 %v518, %v1286
    %v1425 = vadd.f32 %v519, %v1287
    %v1426 = vadd.f32 %v520, %v1289
    %v1427 = vadd.f32 %v521, %v1290
    %v1428 = vadd.f32 %v522, %v1292
    %v1429 = vadd.f32 %v523, %v1293
    %v1430 = vadd.f32 %v524, %v1295
    %v1431 = vadd.f32 %v525, %v1296
    %v1432 = vadd.f32 %v526, %v1298
    %v1433 = vadd.f32 %v527, %v1299
    %v1434 = vadd.f32 %v528, %v1301
    %v1435 = vadd.f32 %v529, %v1302
    %v1436 = vadd.f32 %v530, %v1304
    %v1437 = vadd.f32 %v531, %v1305
    %v1438 = vadd.f32 %v532, %v1307
    %v1439 = vadd.f32 %v533, %v1308
    %v1440 = vadd.f32 %v534, %v1310
    %v1441 = vadd.f32 %v535, %v1311
    %v1442 = vadd.f32 %v536, %v1313
    %v1443 = vadd.f32 %v537, %v1314
    %v1444 = vadd.f32 %v538, %v1316
    %v1445 = vadd.f32 %v539, %v1317
    %v1446 = vadd.f32 %v540, %v1319
    %v1447 = vadd.f32 %v541, %v1320
    %v1448 = vadd.f32 %v542, %v1322
    %v1449 = vadd.f32 %v543, %v1323
    %v1450 = vadd.f32 %v544, %v1325
    %v1451 = vadd.f32 %v545, %v1326
    %v1452 = vadd.f32 %v546, %v1328
    %v1453 = vadd.f32 %v547, %v1329
    %v1454 = vadd.f32 %v548, %v1331
    %v1455 = vadd.f32 %v549, %v1332
    %v1456 = vadd.f32 %v550, %v1334
    %v1457 = vadd.f32 %v551, %v1335
    %v1458 = vadd.f32 %v552, %v1337
    %v1459 = vadd.f32 %v553, %v1338
    %v1460 = vadd.f32 %v554, %v1340
    %v1461 = vadd.f32 %v555, %v1341
    %v1462 = vadd.f32 %v556, %v1343
    %v1463 = vadd.f32 %v557, %v1344
    %v1464 = vadd.f32 %v558, %v1346
    %v1465 = vadd.f32 %v559, %v1347
    %v1466 = vadd.f32 %v560, %v1349
    %v1467 = vadd.f32 %v561, %v1350
    %v1468 = vadd.f32 %v562, %v1352
    %v1469 = vadd.f32 %v563, %v1353
    %v1470 = vadd.f32 %v564, %v1355
    %v1471 = vadd.f32 %v565, %v1356
    %v1472 = vadd.f32 %v566, %v1358
    %v1473 = vadd.f32 %v567, %v1359
    %v1474 = vadd.f32 %v568, %v1361
    %v1475 = vadd.f32 %v569, %v1362
    %v1476 = vadd.f32 %v570, %v1364
    %v1533 = vrot.slane %v715, 1
    %v1534 = vrot.slane %v716, 1
    %v1535 = vsel %vm1027, %v1533, %v1534
    %v1536 = vrot.slane %v717, 1
    %v1537 = vrot.slane %v718, 1
    %v1538 = vsel %vm1027, %v1536, %v1537
    %v1539 = vrot.slane %v719, 1
    %v1540 = vrot.slane %v720, 1
    %v1541 = vsel %vm1027, %v1539, %v1540
    %v1542 = vrot.slane %v721, 1
    %v1543 = vrot.slane %v722, 1
    %v1544 = vsel %vm1027, %v1542, %v1543
    %v1545 = vrot.slane %v723, 1
    %v1546 = vrot.slane %v724, 1
    %v1547 = vsel %vm1027, %v1545, %v1546
    %v1548 = vrot.slane %v725, 1
    %v1549 = vrot.slane %v726, 1
    %v1550 = vsel %vm1027, %v1548, %v1549
    %v1551 = vrot.slane %v727, 1
    %v1552 = vrot.slane %v728, 1
    %v1553 = vsel %vm1027, %v1551, %v1552
    %v1554 = vrot.slane %v729, 1
    %v1555 = vrot.slane %v730, 1
    %v1556 = vsel %vm1027, %v1554, %v1555
    %v1557 = vrot.slane %v731, 1
    %v1558 = vrot.slane %v732, 1
    %v1559 = vsel %vm1027, %v1557, %v1558
    %v1560 = vrot.slane %v733, 1
    %v1561 = vrot.slane %v734, 1
    %v1562 = vsel %vm1027, %v1560, %v1561
    %v1563 = vrot.slane %v735, 1
    %v1564 = vrot.slane %v736, 1
    %v1565 = vsel %vm1027, %v1563, %v1564
    %v1566 = vrot.slane %v737, 1
    %v1567 = vrot.slane %v738, 1
    %v1568 = vsel %vm1027, %v1566, %v1567
    %v1569 = vrot.slane %v739, 1
    %v1570 = vrot.slane %v740, 1
    %v1571 = vsel %vm1027, %v1569, %v1570
    %v1572 = vrot.slane %v741, 1
    %v1573 = vrot.slane %v742, 1
    %v1574 = vsel %vm1027, %v1572, %v1573
    %v1575 = vrot.slane %v743, 1
    %v1576 = vrot.slane %v744, 1
    %v1577 = vsel %vm1027, %v1575, %v1576
    %v1578 = vrot.slane %v745, 1
    %v1579 = vrot.slane %v746, 1
    %v1580 = vsel %vm1027, %v1578, %v1579
    %v1581 = vrot.slane %v747, 1
    %v1582 = vrot.slane %v748, 1
    %v1583 = vsel %vm1027, %v1581, %v1582
    %v1584 = vrot.slane %v749, 1
    %v1585 = vrot.slane %v750, 1
    %v1586 = vsel %vm1027, %v1584, %v1585
    %v1587 = vrot.slane %v751, 1
    %v1588 = vrot.slane %v752, 1
    %v1589 = vsel %vm1027, %v1587, %v1588
    %v1590 = vrot.slane %v753, 1
    %v1591 = vrot.slane %v754, 1
    %v1592 = vsel %vm1027, %v1590, %v1591
    %v1593 = vrot.slane %v755, 1
    %v1594 = vrot.slane %v756, 1
    %v1595 = vsel %vm1027, %v1593, %v1594
    %v1596 = vrot.slane %v757, 1
    %v1597 = vrot.slane %v758, 1
    %v1598 = vsel %vm1027, %v1596, %v1597
    %v1599 = vrot.slane %v759, 1
    %v1600 = vrot.slane %v760, 1
    %v1601 = vsel %vm1027, %v1599, %v1600
    %v1602 = vrot.slane %v761, 1
    %v1603 = vrot.slane %v762, 1
    %v1604 = vsel %vm1027, %v1602, %v1603
    %v1605 = vrot.slane %v763, 1
    %v1606 = vrot.slane %v764, 1
    %v1607 = vsel %vm1027, %v1605, %v1606
    %v1608 = vrot.slane %v765, 1
    %v1609 = vrot.slane %v766, 1
    %v1610 = vsel %vm1027, %v1608, %v1609
    %v1611 = vrot.slane %v767, 1
    %v1612 = vrot.slane %v768, 1
    %v1613 = vsel %vm1027, %v1611, %v1612
    %v1614 = vrot.slane %v769, 1
    %v1615 = vrot.slane %v770, 1
    %v1616 = vsel %vm1027, %v1614, %v1615
    %v1673 = vadd.f32 %v655, %v1535
    %v1674 = vadd.f32 %v656, %v1534
    %v1675 = vadd.f32 %v657, %v1538
    %v1676 = vadd.f32 %v658, %v1537
    %v1677 = vadd.f32 %v659, %v1541
    %v1678 = vadd.f32 %v660, %v1540
    %v1679 = vadd.f32 %v661, %v1544
    %v1680 = vadd.f32 %v662, %v1543
    %v1681 = vadd.f32 %v663, %v1547
    %v1682 = vadd.f32 %v664, %v1546
    %v1683 = vadd.f32 %v665, %v1550
    %v1684 = vadd.f32 %v666, %v1549
    %v1685 = vadd.f32 %v667, %v1553
    %v1686 = vadd.f32 %v668, %v1552
    %v1687 = vadd.f32 %v669, %v1556
    %v1688 = vadd.f32 %v670, %v1555
    %v1689 = vadd.f32 %v671, %v1559
    %v1690 = vadd.f32 %v672, %v1558
    %v1691 = vadd.f32 %v673, %v1562
    %v1692 = vadd.f32 %v674, %v1561
    %v1693 = vadd.f32 %v675, %v1565
    %v1694 = vadd.f32 %v676, %v1564
    %v1695 = vadd.f32 %v677, %v1568
    %v1696 = vadd.f32 %v678, %v1567
    %v1697 = vadd.f32 %v679, %v1571
    %v1698 = vadd.f32 %v680, %v1570
    %v1699 = vadd.f32 %v681, %v1574
    %v1700 = vadd.f32 %v682, %v1573
    %v1701 = vadd.f32 %v683, %v1577
    %v1702 = vadd.f32 %v684, %v1576
    %v1703 = vadd.f32 %v685, %v1580
    %v1704 = vadd.f32 %v686, %v1579
    %v1705 = vadd.f32 %v687, %v1583
    %v1706 = vadd.f32 %v688, %v1582
    %v1707 = vadd.f32 %v689, %v1586
    %v1708 = vadd.f32 %v690, %v1585
    %v1709 = vadd.f32 %v691, %v1589
    %v1710 = vadd.f32 %v692, %v1588
    %v1711 = vadd.f32 %v693, %v1592
    %v1712 = vadd.f32 %v694, %v1591
    %v1713 = vadd.f32 %v695, %v1595
    %v1714 = vadd.f32 %v696, %v1594
    %v1715 = vadd.f32 %v697, %v1598
    %v1716 = vadd.f32 %v698, %v1597
    %v1717 = vadd.f32 %v699, %v1601
    %v1718 = vadd.f32 %v700, %v1600
    %v1719 = vadd.f32 %v701, %v1604
    %v1720 = vadd.f32 %v702, %v1603
    %v1721 = vadd.f32 %v703, %v1607
    %v1722 = vadd.f32 %v704, %v1606
    %v1723 = vadd.f32 %v705, %v1610
    %v1724 = vadd.f32 %v706, %v1609
    %v1725 = vadd.f32 %v707, %v1613
    %v1726 = vadd.f32 %v708, %v1612
    %v1727 = vadd.f32 %v709, %v1616
    %v1728 = vadd.f32 %v710, %v1615
    %v1785 = vrot.slane %v855, 1
    %v1786 = vrot.slane %v856, 1
    %v1787 = vsel %vm1027, %v1785, %v1786
    %v1788 = vrot.slane %v857, 1
    %v1789 = vrot.slane %v858, 1
    %v1790 = vsel %vm1027, %v1788, %v1789
    %v1791 = vrot.slane %v859, 1
    %v1792 = vrot.slane %v860, 1
    %v1793 = vsel %vm1027, %v1791, %v1792
    %v1794 = vrot.slane %v861, 1
    %v1795 = vrot.slane %v862, 1
    %v1796 = vsel %vm1027, %v1794, %v1795
    %v1797 = vrot.slane %v863, 1
    %v1798 = vrot.slane %v864, 1
    %v1799 = vsel %vm1027, %v1797, %v1798
    %v1800 = vrot.slane %v865, 1
    %v1801 = vrot.slane %v866, 1
    %v1802 = vsel %vm1027, %v1800, %v1801
    %v1803 = vrot.slane %v867, 1
    %v1804 = vrot.slane %v868, 1
    %v1805 = vsel %vm1027, %v1803, %v1804
    %v1806 = vrot.slane %v869, 1
    %v1807 = vrot.slane %v870, 1
    %v1808 = vsel %vm1027, %v1806, %v1807
    %v1809 = vrot.slane %v871, 1
    %v1810 = vrot.slane %v872, 1
    %v1811 = vsel %vm1027, %v1809, %v1810
    %v1812 = vrot.slane %v873, 1
    %v1813 = vrot.slane %v874, 1
    %v1814 = vsel %vm1027, %v1812, %v1813
    %v1815 = vrot.slane %v875, 1
    %v1816 = vrot.slane %v876, 1
    %v1817 = vsel %vm1027, %v1815, %v1816
    %v1818 = vrot.slane %v877, 1
    %v1819 = vrot.slane %v878, 1
    %v1820 = vsel %vm1027, %v1818, %v1819
    %v1821 = vrot.slane %v879, 1
    %v1822 = vrot.slane %v880, 1
    %v1823 = vsel %vm1027, %v1821, %v1822
    %v1824 = vrot.slane %v881, 1
    %v1825 = vrot.slane %v882, 1
    %v1826 = vsel %vm1027, %v1824, %v1825
    %v1827 = vrot.slane %v883, 1
    %v1828 = vrot.slane %v884, 1
    %v1829 = vsel %vm1027, %v1827, %v1828
    %v1830 = vrot.slane %v885, 1
    %v1831 = vrot.slane %v886, 1
    %v1832 = vsel %vm1027, %v1830, %v1831
    %v1833 = vrot.slane %v887, 1
    %v1834 = vrot.slane %v888, 1
    %v1835 = vsel %vm1027, %v1833, %v1834
    %v1836 = vrot.slane %v889, 1
    %v1837 = vrot.slane %v890, 1
    %v1838 = vsel %vm1027, %v1836, %v1837
    %v1839 = vrot.slane %v891, 1
    %v1840 = vrot.slane %v892, 1
    %v1841 = vsel %vm1027, %v1839, %v1840
    %v1842 = vrot.slane %v893, 1
    %v1843 = vrot.slane %v894, 1
    %v1844 = vsel %vm1027, %v1842, %v1843
    %v1845 = vrot.slane %v895, 1
    %v1846 = vrot.slane %v896, 1
    %v1847 = vsel %vm1027, %v1845, %v1846
    %v1848 = vrot.slane %v897, 1
    %v1849 = vrot.slane %v898, 1
    %v1850 = vsel %vm1027, %v1848, %v1849
    %v1851 = vrot.slane %v899, 1
    %v1852 = vrot.slane %v900, 1
    %v1853 = vsel %vm1027, %v1851, %v1852
    %v1854 = vrot.slane %v901, 1
    %v1855 = vrot.slane %v902, 1
    %v1856 = vsel %vm1027, %v1854, %v1855
    %v1857 = vrot.slane %v903, 1
    %v1858 = vrot.slane %v904, 1
    %v1859 = vsel %vm1027, %v1857, %v1858
    %v1860 = vrot.slane %v905, 1
    %v1861 = vrot.slane %v906, 1
    %v1862 = vsel %vm1027, %v1860, %v1861
    %v1863 = vrot.slane %v907, 1
    %v1864 = vrot.slane %v908, 1
    %v1865 = vsel %vm1027, %v1863, %v1864
    %v1866 = vrot.slane %v909, 1
    %v1867 = vrot.slane %v910, 1
    %v1868 = vsel %vm1027, %v1866, %v1867
    %v1925 = vadd.f32 %v795, %v1787
    %v1926 = vadd.f32 %v796, %v1786
    %v1927 = vadd.f32 %v797, %v1790
    %v1928 = vadd.f32 %v798, %v1789
    %v1929 = vadd.f32 %v799, %v1793
    %v1930 = vadd.f32 %v800, %v1792
    %v1931 = vadd.f32 %v801, %v1796
    %v1932 = vadd.f32 %v802, %v1795
    %v1933 = vadd.f32 %v803, %v1799
    %v1934 = vadd.f32 %v804, %v1798
    %v1935 = vadd.f32 %v805, %v1802
    %v1936 = vadd.f32 %v806, %v1801
    %v1937 = vadd.f32 %v807, %v1805
    %v1938 = vadd.f32 %v808, %v1804
    %v1939 = vadd.f32 %v809, %v1808
    %v1940 = vadd.f32 %v810, %v1807
    %v1941 = vadd.f32 %v811, %v1811
    %v1942 = vadd.f32 %v812, %v1810
    %v1943 = vadd.f32 %v813, %v1814
    %v1944 = vadd.f32 %v814, %v1813
    %v1945 = vadd.f32 %v815, %v1817
    %v1946 = vadd.f32 %v816, %v1816
    %v1947 = vadd.f32 %v817, %v1820
    %v1948 = vadd.f32 %v818, %v1819
    %v1949 = vadd.f32 %v819, %v1823
    %v1950 = vadd.f32 %v820, %v1822
    %v1951 = vadd.f32 %v821, %v1826
    %v1952 = vadd.f32 %v822, %v1825
    %v1953 = vadd.f32 %v823, %v1829
    %v1954 = vadd.f32 %v824, %v1828
    %v1955 = vadd.f32 %v825, %v1832
    %v1956 = vadd.f32 %v826, %v1831
    %v1957 = vadd.f32 %v827, %v1835
    %v1958 = vadd.f32 %v828, %v1834
    %v1959 = vadd.f32 %v829, %v1838
    %v1960 = vadd.f32 %v830, %v1837
    %v1961 = vadd.f32 %v831, %v1841
    %v1962 = vadd.f32 %v832, %v1840
    %v1963 = vadd.f32 %v833, %v1844
    %v1964 = vadd.f32 %v834, %v1843
    %v1965 = vadd.f32 %v835, %v1847
    %v1966 = vadd.f32 %v836, %v1846
    %v1967 = vadd.f32 %v837, %v1850
    %v1968 = vadd.f32 %v838, %v1849
    %v1969 = vadd.f32 %v839, %v1853
    %v1970 = vadd.f32 %v840, %v1852
    %v1971 = vadd.f32 %v841, %v1856
    %v1972 = vadd.f32 %v842, %v1855
    %v1973 = vadd.f32 %v843, %v1859
    %v1974 = vadd.f32 %v844, %v1858
    %v1975 = vadd.f32 %v845, %v1862
    %v1976 = vadd.f32 %v846, %v1861
    %v1977 = vadd.f32 %v847, %v1865
    %v1978 = vadd.f32 %v848, %v1864
    %v1979 = vadd.f32 %v849, %v1868
    %v1980 = vadd.f32 %v850, %v1867
    %vm2037 = vcmask 1045504
    %v2038 = vrot.slane %v1421, 2
    %v2039 = vrot.slane %v1422, 2
    %v2040 = vsel %vm2037, %v2038, %v2039
    %v2041 = vrot.slane %v1423, 2
    %v2042 = vrot.slane %v1424, 2
    %v2043 = vsel %vm2037, %v2041, %v2042
    %v2044 = vrot.slane %v1425, 2
    %v2045 = vrot.slane %v1426, 2
    %v2046 = vsel %vm2037, %v2044, %v2045
    %v2047 = vrot.slane %v1427, 2
    %v2048 = vrot.slane %v1428, 2
    %v2049 = vsel %vm2037, %v2047, %v2048
    %v2050 = vrot.slane %v1429, 2
    %v2051 = vrot.slane %v1430, 2
    %v2052 = vsel %vm2037, %v2050, %v2051
    %v2053 = vrot.slane %v1431, 2
    %v2054 = vrot.slane %v1432, 2
    %v2055 = vsel %vm2037, %v2053, %v2054
    %v2056 = vrot.slane %v1433, 2
    %v2057 = vrot.slane %v1434, 2
    %v2058 = vsel %vm2037, %v2056, %v2057
    %v2059 = vrot.slane %v1435, 2
    %v2060 = vrot.slane %v1436, 2
    %v2061 = vsel %vm2037, %v2059, %v2060
    %v2062 = vrot.slane %v1437, 2
    %v2063 = vrot.slane %v1438, 2
    %v2064 = vsel %vm2037, %v2062, %v2063
    %v2065 = vrot.slane %v1439, 2
    %v2066 = vrot.slane %v1440, 2
    %v2067 = vsel %vm2037, %v2065, %v2066
    %v2068 = vrot.slane %v1441, 2
    %v2069 = vrot.slane %v1442, 2
    %v2070 = vsel %vm2037, %v2068, %v2069
    %v2071 = vrot.slane %v1443, 2
    %v2072 = vrot.slane %v1444, 2
    %v2073 = vsel %vm2037, %v2071, %v2072
    %v2074 = vrot.slane %v1445, 2
    %v2075 = vrot.slane %v1446, 2
    %v2076 = vsel %vm2037, %v2074, %v2075
    %v2077 = vrot.slane %v1447, 2
    %v2078 = vrot.slane %v1448, 2
    %v2079 = vsel %vm2037, %v2077, %v2078
    %v2080 = vrot.slane %v1449, 2
    %v2081 = vrot.slane %v1450, 2
    %v2082 = vsel %vm2037, %v2080, %v2081
    %v2083 = vrot.slane %v1451, 2
    %v2084 = vrot.slane %v1452, 2
    %v2085 = vsel %vm2037, %v2083, %v2084
    %v2086 = vrot.slane %v1453, 2
    %v2087 = vrot.slane %v1454, 2
    %v2088 = vsel %vm2037, %v2086, %v2087
    %v2089 = vrot.slane %v1455, 2
    %v2090 = vrot.slane %v1456, 2
    %v2091 = vsel %vm2037, %v2089, %v2090
    %v2092 = vrot.slane %v1457, 2
    %v2093 = vrot.slane %v1458, 2
    %v2094 = vsel %vm2037, %v2092, %v2093
    %v2095 = vrot.slane %v1459, 2
    %v2096 = vrot.slane %v1460, 2
    %v2097 = vsel %vm2037, %v2095, %v2096
    %v2098 = vrot.slane %v1461, 2
    %v2099 = vrot.slane %v1462, 2
    %v2100 = vsel %vm2037, %v2098, %v2099
    %v2101 = vrot.slane %v1463, 2
    %v2102 = vrot.slane %v1464, 2
    %v2103 = vsel %vm2037, %v2101, %v2102
    %v2104 = vrot.slane %v1465, 2
    %v2105 = vrot.slane %v1466, 2
    %v2106 = vsel %vm2037, %v2104, %v2105
    %v2107 = vrot.slane %v1467, 2
    %v2108 = vrot.slane %v1468, 2
    %v2109 = vsel %vm2037, %v2107, %v2108
    %v2110 = vrot.slane %v1469, 2
    %v2111 = vrot.slane %v1470, 2
    %v2112 = vsel %vm2037, %v2110, %v2111
    %v2113 = vrot.slane %v1471, 2
    %v2114 = vrot.slane %v1472, 2
    %v2115 = vsel %vm2037, %v2113, %v2114
    %v2116 = vrot.slane %v1473, 2
    %v2117 = vrot.slane %v1474, 2
    %v2118 = vsel %vm2037, %v2116, %v2117
    %v2119 = vrot.slane %v1475, 2
    %v2120 = vrot.slane %v1476, 2
    %v2121 = vsel %vm2037, %v2119, %v2120
    %v2178 = vadd.f32 %v1168, %v2040
    %v2179 = vadd.f32 %v1169, %v2039
    %v2180 = vadd.f32 %v1170, %v2043
    %v2181 = vadd.f32 %v1171, %v2042
    %v2182 = vadd.f32 %v1172, %v2046
    %v2183 = vadd.f32 %v1173, %v2045
    %v2184 = vadd.f32 %v1174, %v2049
    %v2185 = vadd.f32 %v1175, %v2048
    %v2186 = vadd.f32 %v1176, %v2052
    %v2187 = vadd.f32 %v1177, %v2051
    %v2188 = vadd.f32 %v1178, %v2055
    %v2189 = vadd.f32 %v1179, %v2054
    %v2190 = vadd.f32 %v1180, %v2058
    %v2191 = vadd.f32 %v1181, %v2057
    %v2192 = vadd.f32 %v1182, %v2061
    %v2193 = vadd.f32 %v1183, %v2060
    %v2194 = vadd.f32 %v1184, %v2064
    %v2195 = vadd.f32 %v1185, %v2063
    %v2196 = vadd.f32 %v1186, %v2067
    %v2197 = vadd.f32 %v1187, %v2066
    %v2198 = vadd.f32 %v1188, %v2070
    %v2199 = vadd.f32 %v1189, %v2069
    %v2200 = vadd.f32 %v1190, %v2073
    %v2201 = vadd.f32 %v1191, %v2072
    %v2202 = vadd.f32 %v1192, %v2076
    %v2203 = vadd.f32 %v1193, %v2075
    %v2204 = vadd.f32 %v1194, %v2079
    %v2205 = vadd.f32 %v1195, %v2078
    %v2206 = vadd.f32 %v1196, %v2082
    %v2207 = vadd.f32 %v1197, %v2081
    %v2208 = vadd.f32 %v1198, %v2085
    %v2209 = vadd.f32 %v1199, %v2084
    %v2210 = vadd.f32 %v1200, %v2088
    %v2211 = vadd.f32 %v1201, %v2087
    %v2212 = vadd.f32 %v1202, %v2091
    %v2213 = vadd.f32 %v1203, %v2090
    %v2214 = vadd.f32 %v1204, %v2094
    %v2215 = vadd.f32 %v1205, %v2093
    %v2216 = vadd.f32 %v1206, %v2097
    %v2217 = vadd.f32 %v1207, %v2096
    %v2218 = vadd.f32 %v1208, %v2100
    %v2219 = vadd.f32 %v1209, %v2099
    %v2220 = vadd.f32 %v1210, %v2103
    %v2221 = vadd.f32 %v1211, %v2102
    %v2222 = vadd.f32 %v1212, %v2106
    %v2223 = vadd.f32 %v1213, %v2105
    %v2224 = vadd.f32 %v1214, %v2109
    %v2225 = vadd.f32 %v1215, %v2108
    %v2226 = vadd.f32 %v1216, %v2112
    %v2227 = vadd.f32 %v1217, %v2111
    %v2228 = vadd.f32 %v1218, %v2115
    %v2229 = vadd.f32 %v1219, %v2114
    %v2230 = vadd.f32 %v1220, %v2118
    %v2231 = vadd.f32 %v1221, %v2117
    %v2232 = vadd.f32 %v1222, %v2121
    %v2233 = vadd.f32 %v1223, %v2120
    %vm2290 = vcmask 1040384
    %v2291 = vrot.slane %v1925, 7
    %v2292 = vrot.slane %v1926, 7
    %v2293 = vsel %vm2290, %v2291, %v2292
    %v2294 = vrot.slane %v1927, 7
    %v2295 = vrot.slane %v1928, 7
    %v2296 = vsel %vm2290, %v2294, %v2295
    %v2297 = vrot.slane %v1929, 7
    %v2298 = vrot.slane %v1930, 7
    %v2299 = vsel %vm2290, %v2297, %v2298
    %v2300 = vrot.slane %v1931, 7
    %v2301 = vrot.slane %v1932, 7
    %v2302 = vsel %vm2290, %v2300, %v2301
    %v2303 = vrot.slane %v1933, 7
    %v2304 = vrot.slane %v1934, 7
    %v2305 = vsel %vm2290, %v2303, %v2304
    %v2306 = vrot.slane %v1935, 7
    %v2307 = vrot.slane %v1936, 7
    %v2308 = vsel %vm2290, %v2306, %v2307
    %v2309 = vrot.slane %v1937, 7
    %v2310 = vrot.slane %v1938, 7
    %v2311 = vsel %vm2290, %v2309, %v2310
    %v2312 = vrot.slane %v1939, 7
    %v2313 = vrot.slane %v1940, 7
    %v2314 = vsel %vm2290, %v2312, %v2313
    %v2315 = vrot.slane %v1941, 7
    %v2316 = vrot.slane %v1942, 7
    %v2317 = vsel %vm2290, %v2315, %v2316
    %v2318 = vrot.slane %v1943, 7
    %v2319 = vrot.slane %v1944, 7
    %v2320 = vsel %vm2290, %v2318, %v2319
    %v2321 = vrot.slane %v1945, 7
    %v2322 = vrot.slane %v1946, 7
    %v2323 = vsel %vm2290, %v2321, %v2322
    %v2324 = vrot.slane %v1947, 7
    %v2325 = vrot.slane %v1948, 7
    %v2326 = vsel %vm2290, %v2324, %v2325
    %v2327 = vrot.slane %v1949, 7
    %v2328 = vrot.slane %v1950, 7
    %v2329 = vsel %vm2290, %v2327, %v2328
    %v2330 = vrot.slane %v1951, 7
    %v2331 = vrot.slane %v1952, 7
    %v2332 = vsel %vm2290, %v2330, %v2331
    %v2333 = vrot.slane %v1953, 7
    %v2334 = vrot.slane %v1954, 7
    %v2335 = vsel %vm2290, %v2333, %v2334
    %v2336 = vrot.slane %v1955, 7
    %v2337 = vrot.slane %v1956, 7
    %v2338 = vsel %vm2290, %v2336, %v2337
    %v2339 = vrot.slane %v1957, 7
    %v2340 = vrot.slane %v1958, 7
    %v2341 = vsel %vm2290, %v2339, %v2340
    %v2342 = vrot.slane %v1959, 7
    %v2343 = vrot.slane %v1960, 7
    %v2344 = vsel %vm2290, %v2342, %v2343
    %v2345 = vrot.slane %v1961, 7
    %v2346 = vrot.slane %v1962, 7
    %v2347 = vsel %vm2290, %v2345, %v2346
    %v2348 = vrot.slane %v1963, 7
    %v2349 = vrot.slane %v1964, 7
    %v2350 = vsel %vm2290, %v2348, %v2349
    %v2351 = vrot.slane %v1965, 7
    %v2352 = vrot.slane %v1966, 7
    %v2353 = vsel %vm2290, %v2351, %v2352
    %v2354 = vrot.slane %v1967, 7
    %v2355 = vrot.slane %v1968, 7
    %v2356 = vsel %vm2290, %v2354, %v2355
    %v2357 = vrot.slane %v1969, 7
    %v2358 = vrot.slane %v1970, 7
    %v2359 = vsel %vm2290, %v2357, %v2358
    %v2360 = vrot.slane %v1971, 7
    %v2361 = vrot.slane %v1972, 7
    %v2362 = vsel %vm2290, %v2360, %v2361
    %v2363 = vrot.slane %v1973, 7
    %v2364 = vrot.slane %v1974, 7
    %v2365 = vsel %vm2290, %v2363, %v2364
    %v2366 = vrot.slane %v1975, 7
    %v2367 = vrot.slane %v1976, 7
    %v2368 = vsel %vm2290, %v2366, %v2367
    %v2369 = vrot.slane %v1977, 7
    %v2370 = vrot.slane %v1978, 7
    %v2371 = vsel %vm2290, %v2369, %v2370
    %v2372 = vrot.slane %v1979, 7
    %v2373 = vrot.slane %v1980, 7
    %v2374 = vsel %vm2290, %v2372, %v2373
    %v2431 = vadd.f32 %v1673, %v2291
    %v2432 = vadd.f32 %v1674, %v2293
    %v2433 = vadd.f32 %v1675, %v2294
    %v2434 = vadd.f32 %v1676, %v2296
    %v2435 = vadd.f32 %v1677, %v2297
    %v2436 = vadd.f32 %v1678, %v2299
    %v2437 = vadd.f32 %v1679, %v2300
    %v2438 = vadd.f32 %v1680, %v2302
    %v2439 = vadd.f32 %v1681, %v2303
    %v2440 = vadd.f32 %v1682, %v2305
    %v2441 = vadd.f32 %v1683, %v2306
    %v2442 = vadd.f32 %v1684, %v2308
    %v2443 = vadd.f32 %v1685, %v2309
    %v2444 = vadd.f32 %v1686, %v2311
    %v2445 = vadd.f32 %v1687, %v2312
    %v2446 = vadd.f32 %v1688, %v2314
    %v2447 = vadd.f32 %v1689, %v2315
    %v2448 = vadd.f32 %v1690, %v2317
    %v2449 = vadd.f32 %v1691, %v2318
    %v2450 = vadd.f32 %v1692, %v2320
    %v2451 = vadd.f32 %v1693, %v2321
    %v2452 = vadd.f32 %v1694, %v2323
    %v2453 = vadd.f32 %v1695, %v2324
    %v2454 = vadd.f32 %v1696, %v2326
    %v2455 = vadd.f32 %v1697, %v2327
    %v2456 = vadd.f32 %v1698, %v2329
    %v2457 = vadd.f32 %v1699, %v2330
    %v2458 = vadd.f32 %v1700, %v2332
    %v2459 = vadd.f32 %v1701, %v2333
    %v2460 = vadd.f32 %v1702, %v2335
    %v2461 = vadd.f32 %v1703, %v2336
    %v2462 = vadd.f32 %v1704, %v2338
    %v2463 = vadd.f32 %v1705, %v2339
    %v2464 = vadd.f32 %v1706, %v2341
    %v2465 = vadd.f32 %v1707, %v2342
    %v2466 = vadd.f32 %v1708, %v2344
    %v2467 = vadd.f32 %v1709, %v2345
    %v2468 = vadd.f32 %v1710, %v2347
    %v2469 = vadd.f32 %v1711, %v2348
    %v2470 = vadd.f32 %v1712, %v2350
    %v2471 = vadd.f32 %v1713, %v2351
    %v2472 = vadd.f32 %v1714, %v2353
    %v2473 = vadd.f32 %v1715, %v2354
    %v2474 = vadd.f32 %v1716, %v2356
    %v2475 = vadd.f32 %v1717, %v2357
    %v2476 = vadd.f32 %v1718, %v2359
    %v2477 = vadd.f32 %v1719, %v2360
    %v2478 = vadd.f32 %v1720, %v2362
    %v2479 = vadd.f32 %v1721, %v2363
    %v2480 = vadd.f32 %v1722, %v2365
    %v2481 = vadd.f32 %v1723, %v2366
    %v2482 = vadd.f32 %v1724, %v2368
    %v2483 = vadd.f32 %v1725, %v2369
    %v2484 = vadd.f32 %v1726, %v2371
    %v2485 = vadd.f32 %v1727, %v2372
    %v2486 = vadd.f32 %v1728, %v2374
    %v2543 = vrot.slane %v2431, 1
    %v2544 = vrot.slane %v2432, 1
    %v2545 = vsel %vm1027, %v2543, %v2544
    %v2546 = vrot.slane %v2433, 1
    %v2547 = vrot.slane %v2434, 1
    %v2548 = vsel %vm1027, %v2546, %v2547
    %v2549 = vrot.slane %v2435, 1
    %v2550 = vrot.slane %v2436, 1
    %v2551 = vsel %vm1027, %v2549, %v2550
    %v2552 = vrot.slane %v2437, 1
    %v2553 = vrot.slane %v2438, 1
    %v2554 = vsel %vm1027, %v2552, %v2553
    %v2555 = vrot.slane %v2439, 1
    %v2556 = vrot.slane %v2440, 1
    %v2557 = vsel %vm1027, %v2555, %v2556
    %v2558 = vrot.slane %v2441, 1
    %v2559 = vrot.slane %v2442, 1
    %v2560 = vsel %vm1027, %v2558, %v2559
    %v2561 = vrot.slane %v2443, 1
    %v2562 = vrot.slane %v2444, 1
    %v2563 = vsel %vm1027, %v2561, %v2562
    %v2564 = vrot.slane %v2445, 1
    %v2565 = vrot.slane %v2446, 1
    %v2566 = vsel %vm1027, %v2564, %v2565
    %v2567 = vrot.slane %v2447, 1
    %v2568 = vrot.slane %v2448, 1
    %v2569 = vsel %vm1027, %v2567, %v2568
    %v2570 = vrot.slane %v2449, 1
    %v2571 = vrot.slane %v2450, 1
    %v2572 = vsel %vm1027, %v2570, %v2571
    %v2573 = vrot.slane %v2451, 1
    %v2574 = vrot.slane %v2452, 1
    %v2575 = vsel %vm1027, %v2573, %v2574
    %v2576 = vrot.slane %v2453, 1
    %v2577 = vrot.slane %v2454, 1
    %v2578 = vsel %vm1027, %v2576, %v2577
    %v2579 = vrot.slane %v2455, 1
    %v2580 = vrot.slane %v2456, 1
    %v2581 = vsel %vm1027, %v2579, %v2580
    %v2582 = vrot.slane %v2457, 1
    %v2583 = vrot.slane %v2458, 1
    %v2584 = vsel %vm1027, %v2582, %v2583
    %v2585 = vrot.slane %v2459, 1
    %v2586 = vrot.slane %v2460, 1
    %v2587 = vsel %vm1027, %v2585, %v2586
    %v2588 = vrot.slane %v2461, 1
    %v2589 = vrot.slane %v2462, 1
    %v2590 = vsel %vm1027, %v2588, %v2589
    %v2591 = vrot.slane %v2463, 1
    %v2592 = vrot.slane %v2464, 1
    %v2593 = vsel %vm1027, %v2591, %v2592
    %v2594 = vrot.slane %v2465, 1
    %v2595 = vrot.slane %v2466, 1
    %v2596 = vsel %vm1027, %v2594, %v2595
    %v2597 = vrot.slane %v2467, 1
    %v2598 = vrot.slane %v2468, 1
    %v2599 = vsel %vm1027, %v2597, %v2598
    %v2600 = vrot.slane %v2469, 1
    %v2601 = vrot.slane %v2470, 1
    %v2602 = vsel %vm1027, %v2600, %v2601
    %v2603 = vrot.slane %v2471, 1
    %v2604 = vrot.slane %v2472, 1
    %v2605 = vsel %vm1027, %v2603, %v2604
    %v2606 = vrot.slane %v2473, 1
    %v2607 = vrot.slane %v2474, 1
    %v2608 = vsel %vm1027, %v2606, %v2607
    %v2609 = vrot.slane %v2475, 1
    %v2610 = vrot.slane %v2476, 1
    %v2611 = vsel %vm1027, %v2609, %v2610
    %v2612 = vrot.slane %v2477, 1
    %v2613 = vrot.slane %v2478, 1
    %v2614 = vsel %vm1027, %v2612, %v2613
    %v2615 = vrot.slane %v2479, 1
    %v2616 = vrot.slane %v2480, 1
    %v2617 = vsel %vm1027, %v2615, %v2616
    %v2618 = vrot.slane %v2481, 1
    %v2619 = vrot.slane %v2482, 1
    %v2620 = vsel %vm1027, %v2618, %v2619
    %v2621 = vrot.slane %v2483, 1
    %v2622 = vrot.slane %v2484, 1
    %v2623 = vsel %vm1027, %v2621, %v2622
    %v2624 = vrot.slane %v2485, 1
    %v2625 = vrot.slane %v2486, 1
    %v2626 = vsel %vm1027, %v2624, %v2625
    %v2683 = vadd.f32 %v2178, %v2545
    %v2684 = vadd.f32 %v2179, %v2544
    %v2685 = vadd.f32 %v2180, %v2548
    %v2686 = vadd.f32 %v2181, %v2547
    %v2687 = vadd.f32 %v2182, %v2551
    %v2688 = vadd.f32 %v2183, %v2550
    %v2689 = vadd.f32 %v2184, %v2554
    %v2690 = vadd.f32 %v2185, %v2553
    %v2691 = vadd.f32 %v2186, %v2557
    %v2692 = vadd.f32 %v2187, %v2556
    %v2693 = vadd.f32 %v2188, %v2560
    %v2694 = vadd.f32 %v2189, %v2559
    %v2695 = vadd.f32 %v2190, %v2563
    %v2696 = vadd.f32 %v2191, %v2562
    %v2697 = vadd.f32 %v2192, %v2566
    %v2698 = vadd.f32 %v2193, %v2565
    %v2699 = vadd.f32 %v2194, %v2569
    %v2700 = vadd.f32 %v2195, %v2568
    %v2701 = vadd.f32 %v2196, %v2572
    %v2702 = vadd.f32 %v2197, %v2571
    %v2703 = vadd.f32 %v2198, %v2575
    %v2704 = vadd.f32 %v2199, %v2574
    %v2705 = vadd.f32 %v2200, %v2578
    %v2706 = vadd.f32 %v2201, %v2577
    %v2707 = vadd.f32 %v2202, %v2581
    %v2708 = vadd.f32 %v2203, %v2580
    %v2709 = vadd.f32 %v2204, %v2584
    %v2710 = vadd.f32 %v2205, %v2583
    %v2711 = vadd.f32 %v2206, %v2587
    %v2712 = vadd.f32 %v2207, %v2586
    %v2713 = vadd.f32 %v2208, %v2590
    %v2714 = vadd.f32 %v2209, %v2589
    %v2715 = vadd.f32 %v2210, %v2593
    %v2716 = vadd.f32 %v2211, %v2592
    %v2717 = vadd.f32 %v2212, %v2596
    %v2718 = vadd.f32 %v2213, %v2595
    %v2719 = vadd.f32 %v2214, %v2599
    %v2720 = vadd.f32 %v2215, %v2598
    %v2721 = vadd.f32 %v2216, %v2602
    %v2722 = vadd.f32 %v2217, %v2601
    %v2723 = vadd.f32 %v2218, %v2605
    %v2724 = vadd.f32 %v2219, %v2604
    %v2725 = vadd.f32 %v2220, %v2608
    %v2726 = vadd.f32 %v2221, %v2607
    %v2727 = vadd.f32 %v2222, %v2611
    %v2728 = vadd.f32 %v2223, %v2610
    %v2729 = vadd.f32 %v2224, %v2614
    %v2730 = vadd.f32 %v2225, %v2613
    %v2731 = vadd.f32 %v2226, %v2617
    %v2732 = vadd.f32 %v2227, %v2616
    %v2733 = vadd.f32 %v2228, %v2620
    %v2734 = vadd.f32 %v2229, %v2619
    %v2735 = vadd.f32 %v2230, %v2623
    %v2736 = vadd.f32 %v2231, %v2622
    %v2737 = vadd.f32 %v2232, %v2626
    %v2738 = vadd.f32 %v2233, %v2625
    %v2795 = vrot.slane %v915, 2
    %v2796 = vrot.slane %v916, 2
    %v2797 = vsel %vm2037, %v2795, %v2796
    %v2798 = vrot.slane %v917, 2
    %v2799 = vrot.slane %v918, 2
    %v2800 = vsel %vm2037, %v2798, %v2799
    %v2801 = vrot.slane %v919, 2
    %v2802 = vrot.slane %v920, 2
    %v2803 = vsel %vm2037, %v2801, %v2802
    %v2804 = vrot.slane %v921, 2
    %v2805 = vrot.slane %v922, 2
    %v2806 = vsel %vm2037, %v2804, %v2805
    %v2807 = vrot.slane %v923, 2
    %v2808 = vrot.slane %v924, 2
    %v2809 = vsel %vm2037, %v2807, %v2808
    %v2810 = vrot.slane %v925, 2
    %v2811 = vrot.slane %v926, 2
    %v2812 = vsel %vm2037, %v2810, %v2811
    %v2813 = vrot.slane %v927, 2
    %v2814 = vrot.slane %v928, 2
    %v2815 = vsel %vm2037, %v2813, %v2814
    %v2816 = vrot.slane %v929, 2
    %v2817 = vrot.slane %v930, 2
    %v2818 = vsel %vm2037, %v2816, %v2817
    %v2819 = vrot.slane %v931, 2
    %v2820 = vrot.slane %v932, 2
    %v2821 = vsel %vm2037, %v2819, %v2820
    %v2822 = vrot.slane %v933, 2
    %v2823 = vrot.slane %v934, 2
    %v2824 = vsel %vm2037, %v2822, %v2823
    %v2825 = vrot.slane %v935, 2
    %v2826 = vrot.slane %v936, 2
    %v2827 = vsel %vm2037, %v2825, %v2826
    %v2828 = vrot.slane %v937, 2
    %v2829 = vrot.slane %v938, 2
    %v2830 = vsel %vm2037, %v2828, %v2829
    %v2831 = vrot.slane %v939, 2
    %v2832 = vrot.slane %v940, 2
    %v2833 = vsel %vm2037, %v2831, %v2832
    %v2834 = vrot.slane %v941, 2
    %v2835 = vrot.slane %v942, 2
    %v2836 = vsel %vm2037, %v2834, %v2835
    %v2837 = vrot.slane %v943, 2
    %v2838 = vrot.slane %v944, 2
    %v2839 = vsel %vm2037, %v2837, %v2838
    %v2840 = vrot.slane %v945, 2
    %v2841 = vrot.slane %v946, 2
    %v2842 = vsel %vm2037, %v2840, %v2841
    %v2843 = vrot.slane %v947, 2
    %v2844 = vrot.slane %v948, 2
    %v2845 = vsel %vm2037, %v2843, %v2844
    %v2846 = vrot.slane %v949, 2
    %v2847 = vrot.slane %v950, 2
    %v2848 = vsel %vm2037, %v2846, %v2847
    %v2849 = vrot.slane %v951, 2
    %v2850 = vrot.slane %v952, 2
    %v2851 = vsel %vm2037, %v2849, %v2850
    %v2852 = vrot.slane %v953, 2
    %v2853 = vrot.slane %v954, 2
    %v2854 = vsel %vm2037, %v2852, %v2853
    %v2855 = vrot.slane %v955, 2
    %v2856 = vrot.slane %v956, 2
    %v2857 = vsel %vm2037, %v2855, %v2856
    %v2858 = vrot.slane %v957, 2
    %v2859 = vrot.slane %v958, 2
    %v2860 = vsel %vm2037, %v2858, %v2859
    %v2861 = vrot.slane %v959, 2
    %v2862 = vrot.slane %v960, 2
    %v2863 = vsel %vm2037, %v2861, %v2862
    %v2864 = vrot.slane %v961, 2
    %v2865 = vrot.slane %v962, 2
    %v2866 = vsel %vm2037, %v2864, %v2865
    %v2867 = vrot.slane %v963, 2
    %v2868 = vrot.slane %v964, 2
    %v2869 = vsel %vm2037, %v2867, %v2868
    %v2870 = vrot.slane %v965, 2
    %v2871 = vrot.slane %v966, 2
    %v2872 = vsel %vm2037, %v2870, %v2871
    %v2873 = vrot.slane %v967, 2
    %v2874 = vrot.slane %v968, 2
    %v2875 = vsel %vm2037, %v2873, %v2874
    %v2876 = vrot.slane %v969, 2
    %v2877 = vrot.slane %v970, 2
    %v2878 = vsel %vm2037, %v2876, %v2877
    %v2935 = vadd.f32 %v2683, %v2797
    %v2936 = vadd.f32 %v2684, %v2796
    %v2937 = vadd.f32 %v2685, %v2800
    %v2938 = vadd.f32 %v2686, %v2799
    %v2939 = vadd.f32 %v2687, %v2803
    %v2940 = vadd.f32 %v2688, %v2802
    %v2941 = vadd.f32 %v2689, %v2806
    %v2942 = vadd.f32 %v2690, %v2805
    %v2943 = vadd.f32 %v2691, %v2809
    %v2944 = vadd.f32 %v2692, %v2808
    %v2945 = vadd.f32 %v2693, %v2812
    %v2946 = vadd.f32 %v2694, %v2811
    %v2947 = vadd.f32 %v2695, %v2815
    %v2948 = vadd.f32 %v2696, %v2814
    %v2949 = vadd.f32 %v2697, %v2818
    %v2950 = vadd.f32 %v2698, %v2817
    %v2951 = vadd.f32 %v2699, %v2821
    %v2952 = vadd.f32 %v2700, %v2820
    %v2953 = vadd.f32 %v2701, %v2824
    %v2954 = vadd.f32 %v2702, %v2823
    %v2955 = vadd.f32 %v2703, %v2827
    %v2956 = vadd.f32 %v2704, %v2826
    %v2957 = vadd.f32 %v2705, %v2830
    %v2958 = vadd.f32 %v2706, %v2829
    %v2959 = vadd.f32 %v2707, %v2833
    %v2960 = vadd.f32 %v2708, %v2832
    %v2961 = vadd.f32 %v2709, %v2836
    %v2962 = vadd.f32 %v2710, %v2835
    %v2963 = vadd.f32 %v2711, %v2839
    %v2964 = vadd.f32 %v2712, %v2838
    %v2965 = vadd.f32 %v2713, %v2842
    %v2966 = vadd.f32 %v2714, %v2841
    %v2967 = vadd.f32 %v2715, %v2845
    %v2968 = vadd.f32 %v2716, %v2844
    %v2969 = vadd.f32 %v2717, %v2848
    %v2970 = vadd.f32 %v2718, %v2847
    %v2971 = vadd.f32 %v2719, %v2851
    %v2972 = vadd.f32 %v2720, %v2850
    %v2973 = vadd.f32 %v2721, %v2854
    %v2974 = vadd.f32 %v2722, %v2853
    %v2975 = vadd.f32 %v2723, %v2857
    %v2976 = vadd.f32 %v2724, %v2856
    %v2977 = vadd.f32 %v2725, %v2860
    %v2978 = vadd.f32 %v2726, %v2859
    %v2979 = vadd.f32 %v2727, %v2863
    %v2980 = vadd.f32 %v2728, %v2862
    %v2981 = vadd.f32 %v2729, %v2866
    %v2982 = vadd.f32 %v2730, %v2865
    %v2983 = vadd.f32 %v2731, %v2869
    %v2984 = vadd.f32 %v2732, %v2868
    %v2985 = vadd.f32 %v2733, %v2872
    %v2986 = vadd.f32 %v2734, %v2871
    %v2987 = vadd.f32 %v2735, %v2875
    %v2988 = vadd.f32 %v2736, %v2874
    %v2989 = vadd.f32 %v2737, %v2878
    %v2990 = vadd.f32 %v2738, %v2877
    %v2991 = vld [vmem:[%s2] sm:$0x1]
    %v2993 = vlaneseq
    %v2994 = vshrl.u32 %v2993, 7
    %v2995 = vsub.s32 0, %v2994
    %v2996 = vrot.slane %v2991, %v2995
    %v2998 = vadd.f32 %v2935, %v2996
    %v2999 = vadd.f32 %v2936, %v2996
    %v3000 = vadd.f32 %v2937, %v2996
    %v3001 = vadd.f32 %v2938, %v2996
    %v3002 = vadd.f32 %v2939, %v2996
    %v3003 = vadd.f32 %v2940, %v2996
    %v3004 = vadd.f32 %v2941, %v2996
    %v3005 = vadd.f32 %v2942, %v2996
    %v3006 = vadd.f32 %v2943, %v2996
    %v3007 = vadd.f32 %v2944, %v2996
    %v3008 = vadd.f32 %v2945, %v2996
    %v3009 = vadd.f32 %v2946, %v2996
    %v3010 = vadd.f32 %v2947, %v2996
    %v3011 = vadd.f32 %v2948, %v2996
    %v3012 = vadd.f32 %v2949, %v2996
    %v3013 = vadd.f32 %v2950, %v2996
    %v3014 = vadd.f32 %v2951, %v2996
    %v3015 = vadd.f32 %v2952, %v2996
    %v3016 = vadd.f32 %v2953, %v2996
    %v3017 = vadd.f32 %v2954, %v2996
    %v3018 = vadd.f32 %v2955, %v2996
    %v3019 = vadd.f32 %v2956, %v2996
    %v3020 = vadd.f32 %v2957, %v2996
    %v3021 = vadd.f32 %v2958, %v2996
    %v3022 = vadd.f32 %v2959, %v2996
    %v3023 = vadd.f32 %v2960, %v2996
    %v3024 = vadd.f32 %v2961, %v2996
    %v3025 = vadd.f32 %v2962, %v2996
    %v3026 = vadd.f32 %v2963, %v2996
    %v3027 = vadd.f32 %v2964, %v2996
    %v3028 = vadd.f32 %v2965, %v2996
    %v3029 = vadd.f32 %v2966, %v2996
    %v3030 = vadd.f32 %v2967, %v2996
    %v3031 = vadd.f32 %v2968, %v2996
    %v3032 = vadd.f32 %v2969, %v2996
    %v3033 = vadd.f32 %v2970, %v2996
    %v3034 = vadd.f32 %v2971, %v2996
    %v3035 = vadd.f32 %v2972, %v2996
    %v3036 = vadd.f32 %v2973, %v2996
    %v3037 = vadd.f32 %v2974, %v2996
    %v3038 = vadd.f32 %v2975, %v2996
    %v3039 = vadd.f32 %v2976, %v2996
    %v3040 = vadd.f32 %v2977, %v2996
    %v3041 = vadd.f32 %v2978, %v2996
    %v3042 = vadd.f32 %v2979, %v2996
    %v3043 = vadd.f32 %v2980, %v2996
    %v3044 = vadd.f32 %v2981, %v2996
    %v3045 = vadd.f32 %v2982, %v2996
    %v3046 = vadd.f32 %v2983, %v2996
    %v3047 = vadd.f32 %v2984, %v2996
    %v3048 = vadd.f32 %v2985, %v2996
    %v3049 = vadd.f32 %v2986, %v2996
    %v3050 = vadd.f32 %v2987, %v2996
    %v3051 = vadd.f32 %v2988, %v2996
    %v3052 = vadd.f32 %v2989, %v2996
    %v3053 = vadd.f32 %v2990, %v2996
    %vm3054 = vcmp.ge.f32.partialorder %v2998, 0.0
    %vm3055 = vcmp.ge.f32.partialorder %v2999, 0.0
    %vm3056 = vcmp.ge.f32.partialorder %v3000, 0.0
    %vm3057 = vcmp.ge.f32.partialorder %v3001, 0.0
    %vm3058 = vcmp.ge.f32.partialorder %v3002, 0.0
    %vm3059 = vcmp.ge.f32.partialorder %v3003, 0.0
    %vm3060 = vcmp.ge.f32.partialorder %v3004, 0.0
    %vm3061 = vcmp.ge.f32.partialorder %v3005, 0.0
    %vm3062 = vcmp.ge.f32.partialorder %v3006, 0.0
    %vm3063 = vcmp.ge.f32.partialorder %v3007, 0.0
    %vm3064 = vcmp.ge.f32.partialorder %v3008, 0.0
    %vm3065 = vcmp.ge.f32.partialorder %v3009, 0.0
    %vm3066 = vcmp.ge.f32.partialorder %v3010, 0.0
    %vm3067 = vcmp.ge.f32.partialorder %v3011, 0.0
    %vm3068 = vcmp.ge.f32.partialorder %v3012, 0.0
    %vm3069 = vcmp.ge.f32.partialorder %v3013, 0.0
    %vm3070 = vcmp.ge.f32.partialorder %v3014, 0.0
    %vm3071 = vcmp.ge.f32.partialorder %v3015, 0.0
    %vm3072 = vcmp.ge.f32.partialorder %v3016, 0.0
    %vm3073 = vcmp.ge.f32.partialorder %v3017, 0.0
    %vm3074 = vcmp.ge.f32.partialorder %v3018, 0.0
    %vm3075 = vcmp.ge.f32.partialorder %v3019, 0.0
    %vm3076 = vcmp.ge.f32.partialorder %v3020, 0.0
    %vm3077 = vcmp.ge.f32.partialorder %v3021, 0.0
    %vm3078 = vcmp.ge.f32.partialorder %v3022, 0.0
    %vm3079 = vcmp.ge.f32.partialorder %v3023, 0.0
    %vm3080 = vcmp.ge.f32.partialorder %v3024, 0.0
    %vm3081 = vcmp.ge.f32.partialorder %v3025, 0.0
    %vm3082 = vcmp.ge.f32.partialorder %v3026, 0.0
    %vm3083 = vcmp.ge.f32.partialorder %v3027, 0.0
    %vm3084 = vcmp.ge.f32.partialorder %v3028, 0.0
    %vm3085 = vcmp.ge.f32.partialorder %v3029, 0.0
    %vm3086 = vcmp.ge.f32.partialorder %v3030, 0.0
    %vm3087 = vcmp.ge.f32.partialorder %v3031, 0.0
    %vm3088 = vcmp.ge.f32.partialorder %v3032, 0.0
    %vm3089 = vcmp.ge.f32.partialorder %v3033, 0.0
    %vm3090 = vcmp.ge.f32.partialorder %v3034, 0.0
    %vm3091 = vcmp.ge.f32.partialorder %v3035, 0.0
    %vm3092 = vcmp.ge.f32.partialorder %v3036, 0.0
    %vm3093 = vcmp.ge.f32.partialorder %v3037, 0.0
    %vm3094 = vcmp.ge.f32.partialorder %v3038, 0.0
    %vm3095 = vcmp.ge.f32.partialorder %v3039, 0.0
    %vm3096 = vcmp.ge.f32.partialorder %v3040, 0.0
    %vm3097 = vcmp.ge.f32.partialorder %v3041, 0.0
    %vm3098 = vcmp.ge.f32.partialorder %v3042, 0.0
    %vm3099 = vcmp.ge.f32.partialorder %v3043, 0.0
    %vm3100 = vcmp.ge.f32.partialorder %v3044, 0.0
    %vm3101 = vcmp.ge.f32.partialorder %v3045, 0.0
    %vm3102 = vcmp.ge.f32.partialorder %v3046, 0.0
    %vm3103 = vcmp.ge.f32.partialorder %v3047, 0.0
    %vm3104 = vcmp.ge.f32.partialorder %v3048, 0.0
    %vm3105 = vcmp.ge.f32.partialorder %v3049, 0.0
    %vm3106 = vcmp.ge.f32.partialorder %v3050, 0.0
    %vm3107 = vcmp.ge.f32.partialorder %v3051, 0.0
    %vm3108 = vcmp.ge.f32.partialorder %v3052, 0.0
    %vm3109 = vcmp.ge.f32.partialorder %v3053, 0.0
    %v3110 = vmul.f32 %v2998, 0.1
    %v3111 = vmul.f32 %v2999, 0.1
    %v3112 = vmul.f32 %v3000, 0.1
    %v3113 = vmul.f32 %v3001, 0.1
    %v3114 = vmul.f32 %v3002, 0.1
    %v3115 = vmul.f32 %v3003, 0.1
    %v3116 = vmul.f32 %v3004, 0.1
    %v3117 = vmul.f32 %v3005, 0.1
    %v3118 = vmul.f32 %v3006, 0.1
    %v3119 = vmul.f32 %v3007, 0.1
    %v3120 = vmul.f32 %v3008, 0.1
    %v3121 = vmul.f32 %v3009, 0.1
    %v3122 = vmul.f32 %v3010, 0.1
    %v3123 = vmul.f32 %v3011, 0.1
    %v3124 = vmul.f32 %v3012, 0.1
    %v3125 = vmul.f32 %v3013, 0.1
    %v3126 = vmul.f32 %v3014, 0.1
    %v3127 = vmul.f32 %v3015, 0.1
    %v3128 = vmul.f32 %v3016, 0.1
    %v3129 = vmul.f32 %v3017, 0.1
    %v3130 = vmul.f32 %v3018, 0.1
    %v3131 = vmul.f32 %v3019, 0.1
    %v3132 = vmul.f32 %v3020, 0.1
    %v3133 = vmul.f32 %v3021, 0.1
    %v3134 = vmul.f32 %v3022, 0.1
    %v3135 = vmul.f32 %v3023, 0.1
    %v3136 = vmul.f32 %v3024, 0.1
    %v3137 = vmul.f32 %v3025, 0.1
    %v3138 = vmul.f32 %v3026, 0.1
    %v3139 = vmul.f32 %v3027, 0.1
    %v3140 = vmul.f32 %v3028, 0.1
    %v3141 = vmul.f32 %v3029, 0.1
    %v3142 = vmul.f32 %v3030, 0.1
    %v3143 = vmul.f32 %v3031, 0.1
    %v3144 = vmul.f32 %v3032, 0.1
    %v3145 = vmul.f32 %v3033, 0.1
    %v3146 = vmul.f32 %v3034, 0.1
    %v3147 = vmul.f32 %v3035, 0.1
    %v3148 = vmul.f32 %v3036, 0.1
    %v3149 = vmul.f32 %v3037, 0.1
    %v3150 = vmul.f32 %v3038, 0.1
    %v3151 = vmul.f32 %v3039, 0.1
    %v3152 = vmul.f32 %v3040, 0.1
    %v3153 = vmul.f32 %v3041, 0.1
    %v3154 = vmul.f32 %v3042, 0.1
    %v3155 = vmul.f32 %v3043, 0.1
    %v3156 = vmul.f32 %v3044, 0.1
    %v3157 = vmul.f32 %v3045, 0.1
    %v3158 = vmul.f32 %v3046, 0.1
    %v3159 = vmul.f32 %v3047, 0.1
    %v3160 = vmul.f32 %v3048, 0.1
    %v3161 = vmul.f32 %v3049, 0.1
    %v3162 = vmul.f32 %v3050, 0.1
    %v3163 = vmul.f32 %v3051, 0.1
    %v3164 = vmul.f32 %v3052, 0.1
    %v3165 = vmul.f32 %v3053, 0.1
    %v3166 = vsel %vm3054, %v2998, %v3110
    %v3167 = vsel %vm3055, %v2999, %v3111
    %v3168 = vsel %vm3056, %v3000, %v3112
    %v3169 = vsel %vm3057, %v3001, %v3113
    %v3170 = vsel %vm3058, %v3002, %v3114
    %v3171 = vsel %vm3059, %v3003, %v3115
    %v3172 = vsel %vm3060, %v3004, %v3116
    %v3173 = vsel %vm3061, %v3005, %v3117
    %v3174 = vsel %vm3062, %v3006, %v3118
    %v3175 = vsel %vm3063, %v3007, %v3119
    %v3176 = vsel %vm3064, %v3008, %v3120
    %v3177 = vsel %vm3065, %v3009, %v3121
    %v3178 = vsel %vm3066, %v3010, %v3122
    %v3179 = vsel %vm3067, %v3011, %v3123
    %v3180 = vsel %vm3068, %v3012, %v3124
    %v3181 = vsel %vm3069, %v3013, %v3125
    %v3182 = vsel %vm3070, %v3014, %v3126
    %v3183 = vsel %vm3071, %v3015, %v3127
    %v3184 = vsel %vm3072, %v3016, %v3128
    %v3185 = vsel %vm3073, %v3017, %v3129
    %v3186 = vsel %vm3074, %v3018, %v3130
    %v3187 = vsel %vm3075, %v3019, %v3131
    %v3188 = vsel %vm3076, %v3020, %v3132
    %v3189 = vsel %vm3077, %v3021, %v3133
    %v3190 = vsel %vm3078, %v3022, %v3134
    %v3191 = vsel %vm3079, %v3023, %v3135
    %v3192 = vsel %vm3080, %v3024, %v3136
    %v3193 = vsel %vm3081, %v3025, %v3137
    %v3194 = vsel %vm3082, %v3026, %v3138
    %v3195 = vsel %vm3083, %v3027, %v3139
    %v3196 = vsel %vm3084, %v3028, %v3140
    %v3197 = vsel %vm3085, %v3029, %v3141
    %v3198 = vsel %vm3086, %v3030, %v3142
    %v3199 = vsel %vm3087, %v3031, %v3143
    %v3200 = vsel %vm3088, %v3032, %v3144
    %v3201 = vsel %vm3089, %v3033, %v3145
    %v3202 = vsel %vm3090, %v3034, %v3146
    %v3203 = vsel %vm3091, %v3035, %v3147
    %v3204 = vsel %vm3092, %v3036, %v3148
    %v3205 = vsel %vm3093, %v3037, %v3149
    %v3206 = vsel %vm3094, %v3038, %v3150
    %v3207 = vsel %vm3095, %v3039, %v3151
    %v3208 = vsel %vm3096, %v3040, %v3152
    %v3209 = vsel %vm3097, %v3041, %v3153
    %v3210 = vsel %vm3098, %v3042, %v3154
    %v3211 = vsel %vm3099, %v3043, %v3155
    %v3212 = vsel %vm3100, %v3044, %v3156
    %v3213 = vsel %vm3101, %v3045, %v3157
    %v3214 = vsel %vm3102, %v3046, %v3158
    %v3215 = vsel %vm3103, %v3047, %v3159
    %v3216 = vsel %vm3104, %v3048, %v3160
    %v3217 = vsel %vm3105, %v3049, %v3161
    %v3218 = vsel %vm3106, %v3050, %v3162
    %v3219 = vsel %vm3107, %v3051, %v3163
    %v3220 = vsel %vm3108, %v3052, %v3164
    %v3221 = vsel %vm3109, %v3053, %v3165
    %v3222 = vld [vmem:[%s7] sm:$0x1]
    %v3223 = vld [vmem:[%s8] sm:$0x1]
    %v3224 = vmul.f32 %v3166, %v3166
    %v3225 = vmul.f32 %v3167, %v3167
    %v3226 = vmul.f32 %v3168, %v3168
    %v3227 = vmul.f32 %v3169, %v3169
    %v3228 = vmul.f32 %v3170, %v3170
    %v3229 = vmul.f32 %v3171, %v3171
    %v3230 = vmul.f32 %v3172, %v3172
    %v3231 = vmul.f32 %v3173, %v3173
    %v3232 = vmul.f32 %v3174, %v3174
    %v3233 = vmul.f32 %v3175, %v3175
    %v3234 = vmul.f32 %v3176, %v3176
    %v3235 = vmul.f32 %v3177, %v3177
    %v3236 = vmul.f32 %v3178, %v3178
    %v3237 = vmul.f32 %v3179, %v3179
    %v3238 = vmul.f32 %v3180, %v3180
    %v3239 = vmul.f32 %v3181, %v3181
    %v3240 = vmul.f32 %v3182, %v3182
    %v3241 = vmul.f32 %v3183, %v3183
    %v3242 = vmul.f32 %v3184, %v3184
    %v3243 = vmul.f32 %v3185, %v3185
    %v3244 = vmul.f32 %v3186, %v3186
    %v3245 = vmul.f32 %v3187, %v3187
    %v3246 = vmul.f32 %v3188, %v3188
    %v3247 = vmul.f32 %v3189, %v3189
    %v3248 = vmul.f32 %v3190, %v3190
    %v3249 = vmul.f32 %v3191, %v3191
    %v3250 = vmul.f32 %v3192, %v3192
    %v3251 = vmul.f32 %v3193, %v3193
    %v3252 = vmul.f32 %v3194, %v3194
    %v3253 = vmul.f32 %v3195, %v3195
    %v3254 = vmul.f32 %v3196, %v3196
    %v3255 = vmul.f32 %v3197, %v3197
    %v3256 = vmul.f32 %v3198, %v3198
    %v3257 = vmul.f32 %v3199, %v3199
    %v3258 = vmul.f32 %v3200, %v3200
    %v3259 = vmul.f32 %v3201, %v3201
    %v3260 = vmul.f32 %v3202, %v3202
    %v3261 = vmul.f32 %v3203, %v3203
    %v3262 = vmul.f32 %v3204, %v3204
    %v3263 = vmul.f32 %v3205, %v3205
    %v3264 = vmul.f32 %v3206, %v3206
    %v3265 = vmul.f32 %v3207, %v3207
    %v3266 = vmul.f32 %v3208, %v3208
    %v3267 = vmul.f32 %v3209, %v3209
    %v3268 = vmul.f32 %v3210, %v3210
    %v3269 = vmul.f32 %v3211, %v3211
    %v3270 = vmul.f32 %v3212, %v3212
    %v3271 = vmul.f32 %v3213, %v3213
    %v3272 = vmul.f32 %v3214, %v3214
    %v3273 = vmul.f32 %v3215, %v3215
    %v3274 = vmul.f32 %v3216, %v3216
    %v3275 = vmul.f32 %v3217, %v3217
    %v3276 = vmul.f32 %v3218, %v3218
    %v3277 = vmul.f32 %v3219, %v3219
    %v3278 = vmul.f32 %v3220, %v3220
    %v3279 = vmul.f32 %v3221, %v3221
    %3336 = vrot.lane.b32.xlu0 %v3224, 8
    %v3337 = vpop.permute.xlu0 %3336
    %3338 = vrot.lane.b32.xlu0 %v3225, 8
    %v3339 = vpop.permute.xlu0 %3338
    %3340 = vrot.lane.b32.xlu0 %v3226, 8
    %v3341 = vpop.permute.xlu0 %3340
    %3342 = vrot.lane.b32.xlu0 %v3227, 8
    %v3343 = vpop.permute.xlu0 %3342
    %3344 = vrot.lane.b32.xlu0 %v3228, 8
    %v3345 = vpop.permute.xlu0 %3344
    %3346 = vrot.lane.b32.xlu0 %v3229, 8
    %v3347 = vpop.permute.xlu0 %3346
    %3348 = vrot.lane.b32.xlu0 %v3230, 8
    %v3349 = vpop.permute.xlu0 %3348
    %3350 = vrot.lane.b32.xlu0 %v3231, 8
    %v3351 = vpop.permute.xlu0 %3350
    %3352 = vrot.lane.b32.xlu0 %v3232, 8
    %v3353 = vpop.permute.xlu0 %3352
    %3354 = vrot.lane.b32.xlu0 %v3233, 8
    %v3355 = vpop.permute.xlu0 %3354
    %3356 = vrot.lane.b32.xlu0 %v3234, 8
    %v3357 = vpop.permute.xlu0 %3356
    %3358 = vrot.lane.b32.xlu0 %v3235, 8
    %v3359 = vpop.permute.xlu0 %3358
    %3360 = vrot.lane.b32.xlu0 %v3236, 8
    %v3361 = vpop.permute.xlu0 %3360
    %3362 = vrot.lane.b32.xlu0 %v3237, 8
    %v3363 = vpop.permute.xlu0 %3362
    %3364 = vrot.lane.b32.xlu0 %v3238, 8
    %v3365 = vpop.permute.xlu0 %3364
    %3366 = vrot.lane.b32.xlu0 %v3239, 8
    %v3367 = vpop.permute.xlu0 %3366
    %3368 = vrot.lane.b32.xlu0 %v3240, 8
    %v3369 = vpop.permute.xlu0 %3368
    %3370 = vrot.lane.b32.xlu0 %v3241, 8
    %v3371 = vpop.permute.xlu0 %3370
    %3372 = vrot.lane.b32.xlu0 %v3242, 8
    %v3373 = vpop.permute.xlu0 %3372
    %3374 = vrot.lane.b32.xlu0 %v3243, 8
    %v3375 = vpop.permute.xlu0 %3374
    %3376 = vrot.lane.b32.xlu0 %v3244, 8
    %v3377 = vpop.permute.xlu0 %3376
    %3378 = vrot.lane.b32.xlu0 %v3245, 8
    %v3379 = vpop.permute.xlu0 %3378
    %3380 = vrot.lane.b32.xlu0 %v3246, 8
    %v3381 = vpop.permute.xlu0 %3380
    %3382 = vrot.lane.b32.xlu0 %v3247, 8
    %v3383 = vpop.permute.xlu0 %3382
    %3384 = vrot.lane.b32.xlu0 %v3248, 8
    %v3385 = vpop.permute.xlu0 %3384
    %3386 = vrot.lane.b32.xlu0 %v3249, 8
    %v3387 = vpop.permute.xlu0 %3386
    %3388 = vrot.lane.b32.xlu0 %v3250, 8
    %v3389 = vpop.permute.xlu0 %3388
    %3390 = vrot.lane.b32.xlu0 %v3251, 8
    %v3391 = vpop.permute.xlu0 %3390
    %3392 = vrot.lane.b32.xlu0 %v3252, 8
    %v3393 = vpop.permute.xlu0 %3392
    %3394 = vrot.lane.b32.xlu0 %v3253, 8
    %v3395 = vpop.permute.xlu0 %3394
    %3396 = vrot.lane.b32.xlu0 %v3254, 8
    %v3397 = vpop.permute.xlu0 %3396
    %3398 = vrot.lane.b32.xlu0 %v3255, 8
    %v3399 = vpop.permute.xlu0 %3398
    %3400 = vrot.lane.b32.xlu0 %v3256, 8
    %v3401 = vpop.permute.xlu0 %3400
    %3402 = vrot.lane.b32.xlu0 %v3257, 8
    %v3403 = vpop.permute.xlu0 %3402
    %3404 = vrot.lane.b32.xlu0 %v3258, 8
    %v3405 = vpop.permute.xlu0 %3404
    %3406 = vrot.lane.b32.xlu0 %v3259, 8
    %v3407 = vpop.permute.xlu0 %3406
    %3408 = vrot.lane.b32.xlu0 %v3260, 8
    %v3409 = vpop.permute.xlu0 %3408
    %3410 = vrot.lane.b32.xlu0 %v3261, 8
    %v3411 = vpop.permute.xlu0 %3410
    %3412 = vrot.lane.b32.xlu0 %v3262, 8
    %v3413 = vpop.permute.xlu0 %3412
    %3414 = vrot.lane.b32.xlu0 %v3263, 8
    %v3415 = vpop.permute.xlu0 %3414
    %3416 = vrot.lane.b32.xlu0 %v3264, 8
    %v3417 = vpop.permute.xlu0 %3416
    %3418 = vrot.lane.b32.xlu0 %v3265, 8
    %v3419 = vpop.permute.xlu0 %3418
    %3420 = vrot.lane.b32.xlu0 %v3266, 8
    %v3421 = vpop.permute.xlu0 %3420
    %3422 = vrot.lane.b32.xlu0 %v3267, 8
    %v3423 = vpop.permute.xlu0 %3422
    %3424 = vrot.lane.b32.xlu0 %v3268, 8
    %v3425 = vpop.permute.xlu0 %3424
    %3426 = vrot.lane.b32.xlu0 %v3269, 8
    %v3427 = vpop.permute.xlu0 %3426
    %3428 = vrot.lane.b32.xlu0 %v3270, 8
    %v3429 = vpop.permute.xlu0 %3428
    %3430 = vrot.lane.b32.xlu0 %v3271, 8
    %v3431 = vpop.permute.xlu0 %3430
    %3432 = vrot.lane.b32.xlu0 %v3272, 8
    %v3433 = vpop.permute.xlu0 %3432
    %3434 = vrot.lane.b32.xlu0 %v3273, 8
    %v3435 = vpop.permute.xlu0 %3434
    %3436 = vrot.lane.b32.xlu0 %v3274, 8
    %v3437 = vpop.permute.xlu0 %3436
    %3438 = vrot.lane.b32.xlu0 %v3275, 8
    %v3439 = vpop.permute.xlu0 %3438
    %3440 = vrot.lane.b32.xlu0 %v3276, 8
    %v3441 = vpop.permute.xlu0 %3440
    %3442 = vrot.lane.b32.xlu0 %v3277, 8
    %v3443 = vpop.permute.xlu0 %3442
    %3444 = vrot.lane.b32.xlu0 %v3278, 8
    %v3445 = vpop.permute.xlu0 %3444
    %3446 = vrot.lane.b32.xlu0 %v3279, 8
    %v3447 = vpop.permute.xlu0 %3446
    %vm3504 = vcmask 64512
    %v3505 = vsel %vm3504, %v3166, %v3337
    %v3506 = vsel %vm3504, %v3167, %v3339
    %v3507 = vsel %vm3504, %v3168, %v3341
    %v3508 = vsel %vm3504, %v3169, %v3343
    %v3509 = vsel %vm3504, %v3170, %v3345
    %v3510 = vsel %vm3504, %v3171, %v3347
    %v3511 = vsel %vm3504, %v3172, %v3349
    %v3512 = vsel %vm3504, %v3173, %v3351
    %v3513 = vsel %vm3504, %v3174, %v3353
    %v3514 = vsel %vm3504, %v3175, %v3355
    %v3515 = vsel %vm3504, %v3176, %v3357
    %v3516 = vsel %vm3504, %v3177, %v3359
    %v3517 = vsel %vm3504, %v3178, %v3361
    %v3518 = vsel %vm3504, %v3179, %v3363
    %v3519 = vsel %vm3504, %v3180, %v3365
    %v3520 = vsel %vm3504, %v3181, %v3367
    %v3521 = vsel %vm3504, %v3182, %v3369
    %v3522 = vsel %vm3504, %v3183, %v3371
    %v3523 = vsel %vm3504, %v3184, %v3373
    %v3524 = vsel %vm3504, %v3185, %v3375
    %v3525 = vsel %vm3504, %v3186, %v3377
    %v3526 = vsel %vm3504, %v3187, %v3379
    %v3527 = vsel %vm3504, %v3188, %v3381
    %v3528 = vsel %vm3504, %v3189, %v3383
    %v3529 = vsel %vm3504, %v3190, %v3385
    %v3530 = vsel %vm3504, %v3191, %v3387
    %v3531 = vsel %vm3504, %v3192, %v3389
    %v3532 = vsel %vm3504, %v3193, %v3391
    %v3533 = vsel %vm3504, %v3194, %v3393
    %v3534 = vsel %vm3504, %v3195, %v3395
    %v3535 = vsel %vm3504, %v3196, %v3397
    %v3536 = vsel %vm3504, %v3197, %v3399
    %v3537 = vsel %vm3504, %v3198, %v3401
    %v3538 = vsel %vm3504, %v3199, %v3403
    %v3539 = vsel %vm3504, %v3200, %v3405
    %v3540 = vsel %vm3504, %v3201, %v3407
    %v3541 = vsel %vm3504, %v3202, %v3409
    %v3542 = vsel %vm3504, %v3203, %v3411
    %v3543 = vsel %vm3504, %v3204, %v3413
    %v3544 = vsel %vm3504, %v3205, %v3415
    %v3545 = vsel %vm3504, %v3206, %v3417
    %v3546 = vsel %vm3504, %v3207, %v3419
    %v3547 = vsel %vm3504, %v3208, %v3421
    %v3548 = vsel %vm3504, %v3209, %v3423
    %v3549 = vsel %vm3504, %v3210, %v3425
    %v3550 = vsel %vm3504, %v3211, %v3427
    %v3551 = vsel %vm3504, %v3212, %v3429
    %v3552 = vsel %vm3504, %v3213, %v3431
    %v3553 = vsel %vm3504, %v3214, %v3433
    %v3554 = vsel %vm3504, %v3215, %v3435
    %v3555 = vsel %vm3504, %v3216, %v3437
    %v3556 = vsel %vm3504, %v3217, %v3439
    %v3557 = vsel %vm3504, %v3218, %v3441
    %v3558 = vsel %vm3504, %v3219, %v3443
    %v3559 = vsel %vm3504, %v3220, %v3445
    %v3560 = vsel %vm3504, %v3221, %v3447
    %vm3561 = vcmask 130048
    %v3562 = vsel %vm3561, %v3505, 0.0
    %v3563 = vsel %vm3561, %v3507, 0.0
    %v3564 = vadd.f32 %v3562, %v3563
    %v3565 = vsel %vm3561, %v3509, 0.0
    %v3566 = vadd.f32 %v3564, %v3565
    %v3567 = vsel %vm3561, %v3511, 0.0
    %v3568 = vadd.f32 %v3566, %v3567
    %v3569 = vsel %vm3561, %v3513, 0.0
    %v3570 = vadd.f32 %v3568, %v3569
    %v3571 = vsel %vm3561, %v3515, 0.0
    %v3572 = vadd.f32 %v3570, %v3571
    %v3573 = vsel %vm3561, %v3517, 0.0
    %v3574 = vadd.f32 %v3572, %v3573
    %v3575 = vsel %vm3561, %v3519, 0.0
    %v3576 = vadd.f32 %v3574, %v3575
    %v3577 = vsel %vm3561, %v3521, 0.0
    %v3578 = vadd.f32 %v3576, %v3577
    %v3579 = vsel %vm3561, %v3523, 0.0
    %v3580 = vadd.f32 %v3578, %v3579
    %v3581 = vsel %vm3561, %v3525, 0.0
    %v3582 = vadd.f32 %v3580, %v3581
    %v3583 = vsel %vm3561, %v3527, 0.0
    %v3584 = vadd.f32 %v3582, %v3583
    %v3585 = vsel %vm3561, %v3529, 0.0
    %v3586 = vadd.f32 %v3584, %v3585
    %v3587 = vsel %vm3561, %v3531, 0.0
    %v3588 = vadd.f32 %v3586, %v3587
    %vm3589 = vcmask 128000
    %v3590 = vsel %vm3589, %v3506, 0.0
    %v3591 = vsel %vm3589, %v3508, 0.0
    %v3592 = vadd.f32 %v3590, %v3591
    %v3593 = vsel %vm3589, %v3510, 0.0
    %v3594 = vadd.f32 %v3592, %v3593
    %v3595 = vsel %vm3589, %v3512, 0.0
    %v3596 = vadd.f32 %v3594, %v3595
    %v3597 = vsel %vm3589, %v3514, 0.0
    %v3598 = vadd.f32 %v3596, %v3597
    %v3599 = vsel %vm3589, %v3516, 0.0
    %v3600 = vadd.f32 %v3598, %v3599
    %v3601 = vsel %vm3589, %v3518, 0.0
    %v3602 = vadd.f32 %v3600, %v3601
    %v3603 = vsel %vm3589, %v3520, 0.0
    %v3604 = vadd.f32 %v3602, %v3603
    %v3605 = vsel %vm3589, %v3522, 0.0
    %v3606 = vadd.f32 %v3604, %v3605
    %v3607 = vsel %vm3589, %v3524, 0.0
    %v3608 = vadd.f32 %v3606, %v3607
    %v3609 = vsel %vm3589, %v3526, 0.0
    %v3610 = vadd.f32 %v3608, %v3609
    %v3611 = vsel %vm3589, %v3528, 0.0
    %v3612 = vadd.f32 %v3610, %v3611
    %v3613 = vsel %vm3589, %v3530, 0.0
    %v3614 = vadd.f32 %v3612, %v3613
    %v3615 = vsel %vm3589, %v3532, 0.0
    %v3616 = vadd.f32 %v3614, %v3615
    %v3617 = vsel %vm3561, %v3533, 0.0
    %v3618 = vsel %vm3561, %v3535, 0.0
    %v3619 = vadd.f32 %v3617, %v3618
    %v3620 = vsel %vm3561, %v3537, 0.0
    %v3621 = vadd.f32 %v3619, %v3620
    %v3622 = vsel %vm3561, %v3539, 0.0
    %v3623 = vadd.f32 %v3621, %v3622
    %v3624 = vsel %vm3561, %v3541, 0.0
    %v3625 = vadd.f32 %v3623, %v3624
    %v3626 = vsel %vm3561, %v3543, 0.0
    %v3627 = vadd.f32 %v3625, %v3626
    %v3628 = vsel %vm3561, %v3545, 0.0
    %v3629 = vadd.f32 %v3627, %v3628
    %v3630 = vsel %vm3561, %v3547, 0.0
    %v3631 = vadd.f32 %v3629, %v3630
    %v3632 = vsel %vm3561, %v3549, 0.0
    %v3633 = vadd.f32 %v3631, %v3632
    %v3634 = vsel %vm3561, %v3551, 0.0
    %v3635 = vadd.f32 %v3633, %v3634
    %v3636 = vsel %vm3561, %v3553, 0.0
    %v3637 = vadd.f32 %v3635, %v3636
    %v3638 = vsel %vm3561, %v3555, 0.0
    %v3639 = vadd.f32 %v3637, %v3638
    %v3640 = vsel %vm3561, %v3557, 0.0
    %v3641 = vadd.f32 %v3639, %v3640
    %v3642 = vsel %vm3561, %v3559, 0.0
    %v3643 = vadd.f32 %v3641, %v3642
    %v3644 = vsel %vm3589, %v3534, 0.0
    %v3645 = vsel %vm3589, %v3536, 0.0
    %v3646 = vadd.f32 %v3644, %v3645
    %v3647 = vsel %vm3589, %v3538, 0.0
    %v3648 = vadd.f32 %v3646, %v3647
    %v3649 = vsel %vm3589, %v3540, 0.0
    %v3650 = vadd.f32 %v3648, %v3649
    %v3651 = vsel %vm3589, %v3542, 0.0
    %v3652 = vadd.f32 %v3650, %v3651
    %v3653 = vsel %vm3589, %v3544, 0.0
    %v3654 = vadd.f32 %v3652, %v3653
    %v3655 = vsel %vm3589, %v3546, 0.0
    %v3656 = vadd.f32 %v3654, %v3655
    %v3657 = vsel %vm3589, %v3548, 0.0
    %v3658 = vadd.f32 %v3656, %v3657
    %v3659 = vsel %vm3589, %v3550, 0.0
    %v3660 = vadd.f32 %v3658, %v3659
    %v3661 = vsel %vm3589, %v3552, 0.0
    %v3662 = vadd.f32 %v3660, %v3661
    %v3663 = vsel %vm3589, %v3554, 0.0
    %v3664 = vadd.f32 %v3662, %v3663
    %v3665 = vsel %vm3589, %v3556, 0.0
    %v3666 = vadd.f32 %v3664, %v3665
    %v3667 = vsel %vm3589, %v3558, 0.0
    %v3668 = vadd.f32 %v3666, %v3667
    %v3669 = vsel %vm3589, %v3560, 0.0
    %v3670 = vadd.f32 %v3668, %v3669
    %v3671 = vsel %vm3561, %v3588, 0.0
    %v3672 = vsel %vm3589, %v3616, 0.0
    %v3673 = vadd.f32 %v3671, %v3672
    %v3674 = vrot.slane %v3673, 4
    %v3675 = vadd.f32 %v3673, %v3674
    %v3676 = vrot.slane %v3675, 2
    %v3677 = vadd.f32 %v3675, %v3676
    %v3678 = vrot.slane %v3677, 1
    %v3679 = vadd.f32 %v3677, %v3678
    %v3680 = vsel %vm3561, %v3643, 0.0
    %v3681 = vsel %vm3589, %v3670, 0.0
    %v3682 = vadd.f32 %v3680, %v3681
    %v3683 = vrot.slane %v3682, 4
    %v3684 = vadd.f32 %v3682, %v3683
    %v3685 = vrot.slane %v3684, 2
    %v3686 = vadd.f32 %v3684, %v3685
    %v3687 = vrot.slane %v3686, 1
    %v3688 = vadd.f32 %v3686, %v3687
    %v3689 = vsel %vm3561, %v3679, 0.0
    %v3690 = vsel %vm3561, %v3688, 0.0
    %v3691 = vadd.f32 %v3689, %v3690
    %v3692 = vrcp.pop 392.0
    %v3693 = vmul.f32 %v3691, %v3692
    %v3694 = vmul.f32 %v3693, %v3693
    %3696 = vrot.lane.b32.xlu0 %v3694, 8
    %v3697 = vpop.permute.xlu0 %3696
    %v3699 = vsub.f32 %v3693, %v3697
    %v3700 = vsub.f32 %v3166, %v3693
    %v3701 = vsub.f32 %v3167, %v3693
    %v3702 = vsub.f32 %v3168, %v3693
    %v3703 = vsub.f32 %v3169, %v3693
    %v3704 = vsub.f32 %v3170, %v3693
    %v3705 = vsub.f32 %v3171, %v3693
    %v3706 = vsub.f32 %v3172, %v3693
    %v3707 = vsub.f32 %v3173, %v3693
    %v3708 = vsub.f32 %v3174, %v3693
    %v3709 = vsub.f32 %v3175, %v3693
    %v3710 = vsub.f32 %v3176, %v3693
    %v3711 = vsub.f32 %v3177, %v3693
    %v3712 = vsub.f32 %v3178, %v3693
    %v3713 = vsub.f32 %v3179, %v3693
    %v3714 = vsub.f32 %v3180, %v3693
    %v3715 = vsub.f32 %v3181, %v3693
    %v3716 = vsub.f32 %v3182, %v3693
    %v3717 = vsub.f32 %v3183, %v3693
    %v3718 = vsub.f32 %v3184, %v3693
    %v3719 = vsub.f32 %v3185, %v3693
    %v3720 = vsub.f32 %v3186, %v3693
    %v3721 = vsub.f32 %v3187, %v3693
    %v3722 = vsub.f32 %v3188, %v3693
    %v3723 = vsub.f32 %v3189, %v3693
    %v3724 = vsub.f32 %v3190, %v3693
    %v3725 = vsub.f32 %v3191, %v3693
    %v3726 = vsub.f32 %v3192, %v3693
    %v3727 = vsub.f32 %v3193, %v3693
    %v3728 = vsub.f32 %v3194, %v3693
    %v3729 = vsub.f32 %v3195, %v3693
    %v3730 = vsub.f32 %v3196, %v3693
    %v3731 = vsub.f32 %v3197, %v3693
    %v3732 = vsub.f32 %v3198, %v3693
    %v3733 = vsub.f32 %v3199, %v3693
    %v3734 = vsub.f32 %v3200, %v3693
    %v3735 = vsub.f32 %v3201, %v3693
    %v3736 = vsub.f32 %v3202, %v3693
    %v3737 = vsub.f32 %v3203, %v3693
    %v3738 = vsub.f32 %v3204, %v3693
    %v3739 = vsub.f32 %v3205, %v3693
    %v3740 = vsub.f32 %v3206, %v3693
    %v3741 = vsub.f32 %v3207, %v3693
    %v3742 = vsub.f32 %v3208, %v3693
    %v3743 = vsub.f32 %v3209, %v3693
    %v3744 = vsub.f32 %v3210, %v3693
    %v3745 = vsub.f32 %v3211, %v3693
    %v3746 = vsub.f32 %v3212, %v3693
    %v3747 = vsub.f32 %v3213, %v3693
    %v3748 = vsub.f32 %v3214, %v3693
    %v3749 = vsub.f32 %v3215, %v3693
    %v3750 = vsub.f32 %v3216, %v3693
    %v3751 = vsub.f32 %v3217, %v3693
    %v3752 = vsub.f32 %v3218, %v3693
    %v3753 = vsub.f32 %v3219, %v3693
    %v3754 = vsub.f32 %v3220, %v3693
    %v3755 = vsub.f32 %v3221, %v3693
    %v3756 = vadd.f32 %v3699, 1e-05
    %v3757 = vrsqrt.pop %v3756
    %v3758 = vlaneseq
    %v3759 = vshrl.u32 %v3758, 7
    %v3760 = vsub.s32 0, %v3759
    %v3761 = vrot.slane %v3757, %v3760
    %3763 = vrot.lane.b32.xlu0 %v3761, 120
    %v3764 = vpop.permute.xlu0 %3763
    %v3766 = vmul.f32 %v3700, %v3764
    %v3767 = vmul.f32 %v3701, %v3764
    %v3768 = vmul.f32 %v3702, %v3764
    %v3769 = vmul.f32 %v3703, %v3764
    %v3770 = vmul.f32 %v3704, %v3764
    %v3771 = vmul.f32 %v3705, %v3764
    %v3772 = vmul.f32 %v3706, %v3764
    %v3773 = vmul.f32 %v3707, %v3764
    %v3774 = vmul.f32 %v3708, %v3764
    %v3775 = vmul.f32 %v3709, %v3764
    %v3776 = vmul.f32 %v3710, %v3764
    %v3777 = vmul.f32 %v3711, %v3764
    %v3778 = vmul.f32 %v3712, %v3764
    %v3779 = vmul.f32 %v3713, %v3764
    %v3780 = vmul.f32 %v3714, %v3764
    %v3781 = vmul.f32 %v3715, %v3764
    %v3782 = vmul.f32 %v3716, %v3764
    %v3783 = vmul.f32 %v3717, %v3764
    %v3784 = vmul.f32 %v3718, %v3764
    %v3785 = vmul.f32 %v3719, %v3764
    %v3786 = vmul.f32 %v3720, %v3764
    %v3787 = vmul.f32 %v3721, %v3764
    %v3788 = vmul.f32 %v3722, %v3764
    %v3789 = vmul.f32 %v3723, %v3764
    %v3790 = vmul.f32 %v3724, %v3764
    %v3791 = vmul.f32 %v3725, %v3764
    %v3792 = vmul.f32 %v3726, %v3764
    %v3793 = vmul.f32 %v3727, %v3764
    %v3794 = vmul.f32 %v3728, %v3764
    %v3795 = vmul.f32 %v3729, %v3764
    %v3796 = vmul.f32 %v3730, %v3764
    %v3797 = vmul.f32 %v3731, %v3764
    %v3798 = vmul.f32 %v3732, %v3764
    %v3799 = vmul.f32 %v3733, %v3764
    %v3800 = vmul.f32 %v3734, %v3764
    %v3801 = vmul.f32 %v3735, %v3764
    %v3802 = vmul.f32 %v3736, %v3764
    %v3803 = vmul.f32 %v3737, %v3764
    %v3804 = vmul.f32 %v3738, %v3764
    %v3805 = vmul.f32 %v3739, %v3764
    %v3806 = vmul.f32 %v3740, %v3764
    %v3807 = vmul.f32 %v3741, %v3764
    %v3808 = vmul.f32 %v3742, %v3764
    %v3809 = vmul.f32 %v3743, %v3764
    %v3810 = vmul.f32 %v3744, %v3764
    %v3811 = vmul.f32 %v3745, %v3764
    %v3812 = vmul.f32 %v3746, %v3764
    %v3813 = vmul.f32 %v3747, %v3764
    %v3814 = vmul.f32 %v3748, %v3764
    %v3815 = vmul.f32 %v3749, %v3764
    %v3816 = vmul.f32 %v3750, %v3764
    %v3817 = vmul.f32 %v3751, %v3764
    %v3818 = vmul.f32 %v3752, %v3764
    %v3819 = vmul.f32 %v3753, %v3764
    %v3820 = vmul.f32 %v3754, %v3764
    %v3821 = vmul.f32 %v3755, %v3764
    %v3823 = vlaneseq
    %v3824 = vshrl.u32 %v3823, 7
    %v3825 = vsub.s32 0, %v3824
    %v3826 = vrot.slane %v3222, %v3825
    %v3828 = vmul.f32 %v3766, %v3826
    %v3829 = vmul.f32 %v3767, %v3826
    %v3830 = vmul.f32 %v3768, %v3826
    %v3831 = vmul.f32 %v3769, %v3826
    %v3832 = vmul.f32 %v3770, %v3826
    %v3833 = vmul.f32 %v3771, %v3826
    %v3834 = vmul.f32 %v3772, %v3826
    %v3835 = vmul.f32 %v3773, %v3826
    %v3836 = vmul.f32 %v3774, %v3826
    %v3837 = vmul.f32 %v3775, %v3826
    %v3838 = vmul.f32 %v3776, %v3826
    %v3839 = vmul.f32 %v3777, %v3826
    %v3840 = vmul.f32 %v3778, %v3826
    %v3841 = vmul.f32 %v3779, %v3826
    %v3842 = vmul.f32 %v3780, %v3826
    %v3843 = vmul.f32 %v3781, %v3826
    %v3844 = vmul.f32 %v3782, %v3826
    %v3845 = vmul.f32 %v3783, %v3826
    %v3846 = vmul.f32 %v3784, %v3826
    %v3847 = vmul.f32 %v3785, %v3826
    %v3848 = vmul.f32 %v3786, %v3826
    %v3849 = vmul.f32 %v3787, %v3826
    %v3850 = vmul.f32 %v3788, %v3826
    %v3851 = vmul.f32 %v3789, %v3826
    %v3852 = vmul.f32 %v3790, %v3826
    %v3853 = vmul.f32 %v3791, %v3826
    %v3854 = vmul.f32 %v3792, %v3826
    %v3855 = vmul.f32 %v3793, %v3826
    %v3856 = vmul.f32 %v3794, %v3826
    %v3857 = vmul.f32 %v3795, %v3826
    %v3858 = vmul.f32 %v3796, %v3826
    %v3859 = vmul.f32 %v3797, %v3826
    %v3860 = vmul.f32 %v3798, %v3826
    %v3861 = vmul.f32 %v3799, %v3826
    %v3862 = vmul.f32 %v3800, %v3826
    %v3863 = vmul.f32 %v3801, %v3826
    %v3864 = vmul.f32 %v3802, %v3826
    %v3865 = vmul.f32 %v3803, %v3826
    %v3866 = vmul.f32 %v3804, %v3826
    %v3867 = vmul.f32 %v3805, %v3826
    %v3868 = vmul.f32 %v3806, %v3826
    %v3869 = vmul.f32 %v3807, %v3826
    %v3870 = vmul.f32 %v3808, %v3826
    %v3871 = vmul.f32 %v3809, %v3826
    %v3872 = vmul.f32 %v3810, %v3826
    %v3873 = vmul.f32 %v3811, %v3826
    %v3874 = vmul.f32 %v3812, %v3826
    %v3875 = vmul.f32 %v3813, %v3826
    %v3876 = vmul.f32 %v3814, %v3826
    %v3877 = vmul.f32 %v3815, %v3826
    %v3878 = vmul.f32 %v3816, %v3826
    %v3879 = vmul.f32 %v3817, %v3826
    %v3880 = vmul.f32 %v3818, %v3826
    %v3881 = vmul.f32 %v3819, %v3826
    %v3882 = vmul.f32 %v3820, %v3826
    %v3883 = vmul.f32 %v3821, %v3826
    %v3885 = vlaneseq
    %v3886 = vshrl.u32 %v3885, 7
    %v3887 = vsub.s32 0, %v3886
    %v3888 = vrot.slane %v3223, %v3887
    %v3890 = vadd.f32 %v3828, %v3888
    %v3891 = vadd.f32 %v3829, %v3888
    %v3892 = vadd.f32 %v3830, %v3888
    %v3893 = vadd.f32 %v3831, %v3888
    %v3894 = vadd.f32 %v3832, %v3888
    %v3895 = vadd.f32 %v3833, %v3888
    %v3896 = vadd.f32 %v3834, %v3888
    %v3897 = vadd.f32 %v3835, %v3888
    %v3898 = vadd.f32 %v3836, %v3888
    %v3899 = vadd.f32 %v3837, %v3888
    %v3900 = vadd.f32 %v3838, %v3888
    %v3901 = vadd.f32 %v3839, %v3888
    %v3902 = vadd.f32 %v3840, %v3888
    %v3903 = vadd.f32 %v3841, %v3888
    %v3904 = vadd.f32 %v3842, %v3888
    %v3905 = vadd.f32 %v3843, %v3888
    %v3906 = vadd.f32 %v3844, %v3888
    %v3907 = vadd.f32 %v3845, %v3888
    %v3908 = vadd.f32 %v3846, %v3888
    %v3909 = vadd.f32 %v3847, %v3888
    %v3910 = vadd.f32 %v3848, %v3888
    %v3911 = vadd.f32 %v3849, %v3888
    %v3912 = vadd.f32 %v3850, %v3888
    %v3913 = vadd.f32 %v3851, %v3888
    %v3914 = vadd.f32 %v3852, %v3888
    %v3915 = vadd.f32 %v3853, %v3888
    %v3916 = vadd.f32 %v3854, %v3888
    %v3917 = vadd.f32 %v3855, %v3888
    %v3918 = vadd.f32 %v3856, %v3888
    %v3919 = vadd.f32 %v3857, %v3888
    %v3920 = vadd.f32 %v3858, %v3888
    %v3921 = vadd.f32 %v3859, %v3888
    %v3922 = vadd.f32 %v3860, %v3888
    %v3923 = vadd.f32 %v3861, %v3888
    %v3924 = vadd.f32 %v3862, %v3888
    %v3925 = vadd.f32 %v3863, %v3888
    %v3926 = vadd.f32 %v3864, %v3888
    %v3927 = vadd.f32 %v3865, %v3888
    %v3928 = vadd.f32 %v3866, %v3888
    %v3929 = vadd.f32 %v3867, %v3888
    %v3930 = vadd.f32 %v3868, %v3888
    %v3931 = vadd.f32 %v3869, %v3888
    %v3932 = vadd.f32 %v3870, %v3888
    %v3933 = vadd.f32 %v3871, %v3888
    %v3934 = vadd.f32 %v3872, %v3888
    %v3935 = vadd.f32 %v3873, %v3888
    %v3936 = vadd.f32 %v3874, %v3888
    %v3937 = vadd.f32 %v3875, %v3888
    %v3938 = vadd.f32 %v3876, %v3888
    %v3939 = vadd.f32 %v3877, %v3888
    %v3940 = vadd.f32 %v3878, %v3888
    %v3941 = vadd.f32 %v3879, %v3888
    %v3942 = vadd.f32 %v3880, %v3888
    %v3943 = vadd.f32 %v3881, %v3888
    %v3944 = vadd.f32 %v3882, %v3888
    %v3945 = vadd.f32 %v3883, %v3888
    %v3946 = vmax.f32 %v3890, %v3892
    %v3947 = vmax.f32 %v3891, %v3893
    %v3948 = vmax.f32 %v3894, %v3896
    %v3949 = vmax.f32 %v3895, %v3897
    %v3950 = vmax.f32 %v3898, %v3900
    %v3951 = vmax.f32 %v3899, %v3901
    %v3952 = vmax.f32 %v3902, %v3904
    %v3953 = vmax.f32 %v3903, %v3905
    %v3954 = vmax.f32 %v3906, %v3908
    %v3955 = vmax.f32 %v3907, %v3909
    %v3956 = vmax.f32 %v3910, %v3912
    %v3957 = vmax.f32 %v3911, %v3913
    %v3958 = vmax.f32 %v3914, %v3916
    %v3959 = vmax.f32 %v3915, %v3917
    %v3960 = vmax.f32 %v3918, %v3920
    %v3961 = vmax.f32 %v3919, %v3921
    %v3962 = vmax.f32 %v3922, %v3924
    %v3963 = vmax.f32 %v3923, %v3925
    %v3964 = vmax.f32 %v3926, %v3928
    %v3965 = vmax.f32 %v3927, %v3929
    %v3966 = vmax.f32 %v3930, %v3932
    %v3967 = vmax.f32 %v3931, %v3933
    %v3968 = vmax.f32 %v3934, %v3936
    %v3969 = vmax.f32 %v3935, %v3937
    %v3970 = vmax.f32 %v3938, %v3940
    %v3971 = vmax.f32 %v3939, %v3941
    %v3972 = vmax.f32 %v3942, %v3944
    %v3973 = vmax.f32 %v3943, %v3945
    %3974 = vst.msk [vmem:[#allocation2] sm:$0xff] %vm3504, %v3946
    %vm3975 = vcmask 62464
    %3976 = vst.msk [vmem:[#allocation2 + $0x8] sm:$0x3f] %vm3975, %v3947
    %3977 = vst.msk [vmem:[#allocation2 + $0x10] sm:$0xff] %vm3504, %v3948
    %3978 = vst.msk [vmem:[#allocation2 + $0x18] sm:$0x3f] %vm3975, %v3949
    %3979 = vst.msk [vmem:[#allocation2 + $0x20] sm:$0xff] %vm3504, %v3950
    %3980 = vst.msk [vmem:[#allocation2 + $0x28] sm:$0x3f] %vm3975, %v3951
    %3981 = vst.msk [vmem:[#allocation2 + $0x30] sm:$0xff] %vm3504, %v3952
    %3982 = vst.msk [vmem:[#allocation2 + $0x38] sm:$0x3f] %vm3975, %v3953
    %3983 = vst.msk [vmem:[#allocation2 + $0x40] sm:$0xff] %vm3504, %v3954
    %3984 = vst.msk [vmem:[#allocation2 + $0x48] sm:$0x3f] %vm3975, %v3955
    %3985 = vst.msk [vmem:[#allocation2 + $0x50] sm:$0xff] %vm3504, %v3956
    %3986 = vst.msk [vmem:[#allocation2 + $0x58] sm:$0x3f] %vm3975, %v3957
    %3987 = vst.msk [vmem:[#allocation2 + $0x60] sm:$0xff] %vm3504, %v3958
    %3988 = vst.msk [vmem:[#allocation2 + $0x68] sm:$0x3f] %vm3975, %v3959
    %3989 = vst.msk [vmem:[#allocation2 + $0x70] sm:$0xff] %vm3504, %v3960
    %3990 = vst.msk [vmem:[#allocation2 + $0x78] sm:$0x3f] %vm3975, %v3961
    %3991 = vst.msk [vmem:[#allocation2 + $0x80] sm:$0xff] %vm3504, %v3962
    %3992 = vst.msk [vmem:[#allocation2 + $0x88] sm:$0x3f] %vm3975, %v3963
    %3993 = vst.msk [vmem:[#allocation2 + $0x90] sm:$0xff] %vm3504, %v3964
    %3994 = vst.msk [vmem:[#allocation2 + $0x98] sm:$0x3f] %vm3975, %v3965
    %3995 = vst.msk [vmem:[#allocation2 + $0xa0] sm:$0xff] %vm3504, %v3966
    %3996 = vst.msk [vmem:[#allocation2 + $0xa8] sm:$0x3f] %vm3975, %v3967
    %3997 = vst.msk [vmem:[#allocation2 + $0xb0] sm:$0xff] %vm3504, %v3968
    %3998 = vst.msk [vmem:[#allocation2 + $0xb8] sm:$0x3f] %vm3975, %v3969
    %3999 = vst.msk [vmem:[#allocation2 + $0xc0] sm:$0xff] %vm3504, %v3970
    %4000 = vst.msk [vmem:[#allocation2 + $0xc8] sm:$0x3f] %vm3975, %v3971
    %4001 = vst.msk [vmem:[#allocation2 + $0xd0] sm:$0xff] %vm3504, %v3972
    %4002 = vst.msk [vmem:[#allocation2 + $0xd8] sm:$0x3f] %vm3975, %v3973
    %v4003 = vld [vmem:[#allocation2] ss:$2 sm:$0x7f]
    %s4004 = scalar_lea.vmem [#allocation2], 16
    %v4005 = vld [vmem:[%s4004] ss:$2 sm:$0x7f]
    %s4006 = scalar_lea.vmem [#allocation2], 32
    %v4007 = vld [vmem:[%s4006] ss:$2 sm:$0x7f]
    %s4008 = scalar_lea.vmem [#allocation2], 48
    %v4009 = vld [vmem:[%s4008] ss:$2 sm:$0x7f]
    %s4010 = scalar_lea.vmem [#allocation2], 64
    %v4011 = vld [vmem:[%s4010] ss:$2 sm:$0x7f]
    %s4012 = scalar_lea.vmem [#allocation2], 80
    %v4013 = vld [vmem:[%s4012] ss:$2 sm:$0x7f]
    %s4014 = scalar_lea.vmem [#allocation2], 96
    %v4015 = vld [vmem:[%s4014] ss:$2 sm:$0x7f]
    %s4016 = scalar_lea.vmem [#allocation2], 112
    %v4017 = vld [vmem:[%s4016] ss:$2 sm:$0x7f]
    %s4018 = scalar_lea.vmem [#allocation2], 128
    %v4019 = vld [vmem:[%s4018] ss:$2 sm:$0x7f]
    %s4020 = scalar_lea.vmem [#allocation2], 144
    %v4021 = vld [vmem:[%s4020] ss:$2 sm:$0x7f]
    %s4022 = scalar_lea.vmem [#allocation2], 160
    %v4023 = vld [vmem:[%s4022] ss:$2 sm:$0x7f]
    %s4024 = scalar_lea.vmem [#allocation2], 176
    %v4025 = vld [vmem:[%s4024] ss:$2 sm:$0x7f]
    %s4026 = scalar_lea.vmem [#allocation2], 192
    %v4027 = vld [vmem:[%s4026] ss:$2 sm:$0x7f]
    %s4028 = scalar_lea.vmem [#allocation2], 208
    %v4029 = vld [vmem:[%s4028] ss:$2 sm:$0x7f]
    %s4030 = scalar_lea.vmem [#allocation2], 1
    %v4031 = vld [vmem:[%s4030] ss:$2 sm:$0x7f]
    %s4032 = scalar_lea.vmem [#allocation2], 17
    %v4033 = vld [vmem:[%s4032] ss:$2 sm:$0x7f]
    %s4034 = scalar_lea.vmem [#allocation2], 33
    %v4035 = vld [vmem:[%s4034] ss:$2 sm:$0x7f]
    %s4036 = scalar_lea.vmem [#allocation2], 49
    %v4037 = vld [vmem:[%s4036] ss:$2 sm:$0x7f]
    %s4038 = scalar_lea.vmem [#allocation2], 65
    %v4039 = vld [vmem:[%s4038] ss:$2 sm:$0x7f]
    %s4040 = scalar_lea.vmem [#allocation2], 81
    %v4041 = vld [vmem:[%s4040] ss:$2 sm:$0x7f]
    %s4042 = scalar_lea.vmem [#allocation2], 97
    %v4043 = vld [vmem:[%s4042] ss:$2 sm:$0x7f]
    %s4044 = scalar_lea.vmem [#allocation2], 113
    %v4045 = vld [vmem:[%s4044] ss:$2 sm:$0x7f]
    %s4046 = scalar_lea.vmem [#allocation2], 129
    %v4047 = vld [vmem:[%s4046] ss:$2 sm:$0x7f]
    %s4048 = scalar_lea.vmem [#allocation2], 145
    %v4049 = vld [vmem:[%s4048] ss:$2 sm:$0x7f]
    %s4050 = scalar_lea.vmem [#allocation2], 161
    %v4051 = vld [vmem:[%s4050] ss:$2 sm:$0x7f]
    %s4052 = scalar_lea.vmem [#allocation2], 177
    %v4053 = vld [vmem:[%s4052] ss:$2 sm:$0x7f]
    %s4054 = scalar_lea.vmem [#allocation2], 193
    %v4055 = vld [vmem:[%s4054] ss:$2 sm:$0x7f]
    %s4056 = scalar_lea.vmem [#allocation2], 209
    %v4057 = vld [vmem:[%s4056] ss:$2 sm:$0x7f]
    %v4058 = vmax.f32 %v4003, %v4031
    %v4059 = vmax.f32 %v4005, %v4033
    %v4060 = vmax.f32 %v4007, %v4035
    %v4061 = vmax.f32 %v4009, %v4037
    %v4062 = vmax.f32 %v4011, %v4039
    %v4063 = vmax.f32 %v4013, %v4041
    %v4064 = vmax.f32 %v4015, %v4043
    %v4065 = vmax.f32 %v4017, %v4045
    %v4066 = vmax.f32 %v4019, %v4047
    %v4067 = vmax.f32 %v4021, %v4049
    %v4068 = vmax.f32 %v4023, %v4051
    %v4069 = vmax.f32 %v4025, %v4053
    %v4070 = vmax.f32 %v4027, %v4055
    %v4071 = vmax.f32 %v4029, %v4057
    %v4082 = vrot.slane %v4058, 1
    %v4083 = vrot.slane %v4059, 1
    %v4084 = vrot.slane %v4060, 1
    %v4085 = vrot.slane %v4061, 1
    %v4086 = vrot.slane %v4062, 1
    %v4087 = vrot.slane %v4065, 1
    %v4088 = vrot.slane %v4066, 1
    %v4089 = vrot.slane %v4067, 1
    %v4090 = vrot.slane %v4068, 1
    %v4091 = vrot.slane %v4069, 1
    %4092 = vrot.lane.b32.xlu0 %v4082, 8
    %v4093 = vpop.permute.xlu0 %4092
    %4094 = vrot.lane.b32.xlu0 %v4083, 8
    %v4095 = vpop.permute.xlu0 %4094
    %4096 = vrot.lane.b32.xlu0 %v4084, 8
    %v4097 = vpop.permute.xlu0 %4096
    %4098 = vrot.lane.b32.xlu0 %v4085, 8
    %v4099 = vpop.permute.xlu0 %4098
    %4100 = vrot.lane.b32.xlu0 %v4086, 8
    %v4101 = vpop.permute.xlu0 %4100
    %4102 = vrot.lane.b32.xlu0 %v4087, 8
    %v4103 = vpop.permute.xlu0 %4102
    %4104 = vrot.lane.b32.xlu0 %v4088, 8
    %v4105 = vpop.permute.xlu0 %4104
    %4106 = vrot.lane.b32.xlu0 %v4089, 8
    %v4107 = vpop.permute.xlu0 %4106
    %4108 = vrot.lane.b32.xlu0 %v4090, 8
    %v4109 = vpop.permute.xlu0 %4108
    %4110 = vrot.lane.b32.xlu0 %v4091, 8
    %v4111 = vpop.permute.xlu0 %4110
    %v4122 = vrot.slane %v4058, 2
    %v4123 = vrot.slane %v4059, 2
    %v4124 = vrot.slane %v4060, 2
    %v4125 = vrot.slane %v4061, 2
    %v4126 = vrot.slane %v4062, 2
    %v4127 = vrot.slane %v4065, 2
    %v4128 = vrot.slane %v4066, 2
    %v4129 = vrot.slane %v4067, 2
    %v4130 = vrot.slane %v4068, 2
    %v4131 = vrot.slane %v4069, 2
    %4132 = vrot.lane.b32.xlu0 %v4122, 16
    %v4133 = vpop.permute.xlu0 %4132
    %4134 = vrot.lane.b32.xlu0 %v4123, 16
    %v4135 = vpop.permute.xlu0 %4134
    %4136 = vrot.lane.b32.xlu0 %v4124, 16
    %v4137 = vpop.permute.xlu0 %4136
    %4138 = vrot.lane.b32.xlu0 %v4125, 16
    %v4139 = vpop.permute.xlu0 %4138
    %4140 = vrot.lane.b32.xlu0 %v4126, 16
    %v4141 = vpop.permute.xlu0 %4140
    %4142 = vrot.lane.b32.xlu0 %v4127, 16
    %v4143 = vpop.permute.xlu0 %4142
    %4144 = vrot.lane.b32.xlu0 %v4128, 16
    %v4145 = vpop.permute.xlu0 %4144
    %4146 = vrot.lane.b32.xlu0 %v4129, 16
    %v4147 = vpop.permute.xlu0 %4146
    %4148 = vrot.lane.b32.xlu0 %v4130, 16
    %v4149 = vpop.permute.xlu0 %4148
    %4150 = vrot.lane.b32.xlu0 %v4131, 16
    %v4151 = vpop.permute.xlu0 %4150
    %4164 = vrot.lane.b32.xlu0 %v4059, 24
    %v4165 = vpop.permute.xlu0 %4164
    %4166 = vrot.lane.b32.xlu0 %v4060, 24
    %v4167 = vpop.permute.xlu0 %4166
    %4168 = vrot.lane.b32.xlu0 %v4061, 24
    %v4169 = vpop.permute.xlu0 %4168
    %4170 = vrot.lane.b32.xlu0 %v4062, 24
    %v4171 = vpop.permute.xlu0 %4170
    %4172 = vrot.lane.b32.xlu0 %v4063, 24
    %v4173 = vpop.permute.xlu0 %4172
    %4174 = vrot.lane.b32.xlu0 %v4066, 24
    %v4175 = vpop.permute.xlu0 %4174
    %4176 = vrot.lane.b32.xlu0 %v4067, 24
    %v4177 = vpop.permute.xlu0 %4176
    %4178 = vrot.lane.b32.xlu0 %v4068, 24
    %v4179 = vpop.permute.xlu0 %4178
    %4180 = vrot.lane.b32.xlu0 %v4069, 24
    %v4181 = vpop.permute.xlu0 %4180
    %4182 = vrot.lane.b32.xlu0 %v4070, 24
    %v4183 = vpop.permute.xlu0 %4182
    %v4194 = vrot.slane %v4063, 1
    %v4195 = vrot.slane %v4070, 1
    %4196 = vrot.lane.b32.xlu0 %v4083, 32
    %v4197 = vpop.permute.xlu0 %4196
    %4198 = vrot.lane.b32.xlu0 %v4084, 32
    %v4199 = vpop.permute.xlu0 %4198
    %4200 = vrot.lane.b32.xlu0 %v4085, 32
    %v4201 = vpop.permute.xlu0 %4200
    %4202 = vrot.lane.b32.xlu0 %v4086, 32
    %v4203 = vpop.permute.xlu0 %4202
    %4204 = vrot.lane.b32.xlu0 %v4194, 32
    %v4205 = vpop.permute.xlu0 %4204
    %4206 = vrot.lane.b32.xlu0 %v4088, 32
    %v4207 = vpop.permute.xlu0 %4206
    %4208 = vrot.lane.b32.xlu0 %v4089, 32
    %v4209 = vpop.permute.xlu0 %4208
    %4210 = vrot.lane.b32.xlu0 %v4090, 32
    %v4211 = vpop.permute.xlu0 %4210
    %4212 = vrot.lane.b32.xlu0 %v4091, 32
    %v4213 = vpop.permute.xlu0 %4212
    %4214 = vrot.lane.b32.xlu0 %v4195, 32
    %v4215 = vpop.permute.xlu0 %4214
    %v4226 = vrot.slane %v4063, 2
    %v4227 = vrot.slane %v4070, 2
    %4228 = vrot.lane.b32.xlu0 %v4123, 40
    %v4229 = vpop.permute.xlu0 %4228
    %4230 = vrot.lane.b32.xlu0 %v4124, 40
    %v4231 = vpop.permute.xlu0 %4230
    %4232 = vrot.lane.b32.xlu0 %v4125, 40
    %v4233 = vpop.permute.xlu0 %4232
    %4234 = vrot.lane.b32.xlu0 %v4126, 40
    %v4235 = vpop.permute.xlu0 %4234
    %4236 = vrot.lane.b32.xlu0 %v4226, 40
    %v4237 = vpop.permute.xlu0 %4236
    %4238 = vrot.lane.b32.xlu0 %v4128, 40
    %v4239 = vpop.permute.xlu0 %4238
    %4240 = vrot.lane.b32.xlu0 %v4129, 40
    %v4241 = vpop.permute.xlu0 %4240
    %4242 = vrot.lane.b32.xlu0 %v4130, 40
    %v4243 = vpop.permute.xlu0 %4242
    %4244 = vrot.lane.b32.xlu0 %v4131, 40
    %v4245 = vpop.permute.xlu0 %4244
    %4246 = vrot.lane.b32.xlu0 %v4227, 40
    %v4247 = vpop.permute.xlu0 %4246
    %4260 = vrot.lane.b32.xlu0 %v4060, 48
    %v4261 = vpop.permute.xlu0 %4260
    %4262 = vrot.lane.b32.xlu0 %v4061, 48
    %v4263 = vpop.permute.xlu0 %4262
    %4264 = vrot.lane.b32.xlu0 %v4062, 48
    %v4265 = vpop.permute.xlu0 %4264
    %4266 = vrot.lane.b32.xlu0 %v4063, 48
    %v4267 = vpop.permute.xlu0 %4266
    %4268 = vrot.lane.b32.xlu0 %v4064, 48
    %v4269 = vpop.permute.xlu0 %4268
    %4270 = vrot.lane.b32.xlu0 %v4067, 48
    %v4271 = vpop.permute.xlu0 %4270
    %4272 = vrot.lane.b32.xlu0 %v4068, 48
    %v4273 = vpop.permute.xlu0 %4272
    %4274 = vrot.lane.b32.xlu0 %v4069, 48
    %v4275 = vpop.permute.xlu0 %4274
    %4276 = vrot.lane.b32.xlu0 %v4070, 48
    %v4277 = vpop.permute.xlu0 %4276
    %4278 = vrot.lane.b32.xlu0 %v4071, 48
    %v4279 = vpop.permute.xlu0 %4278
    %v4290 = vrot.slane %v4064, 1
    %v4291 = vrot.slane %v4071, 1
    %4292 = vrot.lane.b32.xlu0 %v4084, 56
    %v4293 = vpop.permute.xlu0 %4292
    %4294 = vrot.lane.b32.xlu0 %v4085, 56
    %v4295 = vpop.permute.xlu0 %4294
    %4296 = vrot.lane.b32.xlu0 %v4086, 56
    %v4297 = vpop.permute.xlu0 %4296
    %4298 = vrot.lane.b32.xlu0 %v4194, 56
    %v4299 = vpop.permute.xlu0 %4298
    %4300 = vrot.lane.b32.xlu0 %v4290, 56
    %v4301 = vpop.permute.xlu0 %4300
    %4302 = vrot.lane.b32.xlu0 %v4089, 56
    %v4303 = vpop.permute.xlu0 %4302
    %4304 = vrot.lane.b32.xlu0 %v4090, 56
    %v4305 = vpop.permute.xlu0 %4304
    %4306 = vrot.lane.b32.xlu0 %v4091, 56
    %v4307 = vpop.permute.xlu0 %4306
    %4308 = vrot.lane.b32.xlu0 %v4195, 56
    %v4309 = vpop.permute.xlu0 %4308
    %4310 = vrot.lane.b32.xlu0 %v4291, 56
    %v4311 = vpop.permute.xlu0 %4310
    %v4322 = vrot.slane %v4064, 2
    %v4323 = vrot.slane %v4071, 2
    %4324 = vrot.lane.b32.xlu0 %v4124, 64
    %v4325 = vpop.permute.xlu0 %4324
    %4326 = vrot.lane.b32.xlu0 %v4125, 64
    %v4327 = vpop.permute.xlu0 %4326
    %4328 = vrot.lane.b32.xlu0 %v4126, 64
    %v4329 = vpop.permute.xlu0 %4328
    %4330 = vrot.lane.b32.xlu0 %v4226, 64
    %v4331 = vpop.permute.xlu0 %4330
    %4332 = vrot.lane.b32.xlu0 %v4322, 64
    %v4333 = vpop.permute.xlu0 %4332
    %4334 = vrot.lane.b32.xlu0 %v4129, 64
    %v4335 = vpop.permute.xlu0 %4334
    %4336 = vrot.lane.b32.xlu0 %v4130, 64
    %v4337 = vpop.permute.xlu0 %4336
    %4338 = vrot.lane.b32.xlu0 %v4131, 64
    %v4339 = vpop.permute.xlu0 %4338
    %4340 = vrot.lane.b32.xlu0 %v4227, 64
    %v4341 = vpop.permute.xlu0 %4340
    %4342 = vrot.lane.b32.xlu0 %v4323, 64
    %v4343 = vpop.permute.xlu0 %4342
    %v4354 = vsel %vm3504, %v4058, %v4093
    %v4355 = vsel %vm3504, %v4059, %v4095
    %v4356 = vsel %vm3504, %v4060, %v4097
    %v4357 = vsel %vm3504, %v4061, %v4099
    %v4358 = vsel %vm3504, %v4062, %v4101
    %v4359 = vsel %vm3504, %v4065, %v4103
    %v4360 = vsel %vm3504, %v4066, %v4105
    %v4361 = vsel %vm3504, %v4067, %v4107
    %v4362 = vsel %vm3504, %v4068, %v4109
    %v4363 = vsel %vm3504, %v4069, %v4111
    %v4364 = vsel %vm3561, %v4354, %v4133
    %v4365 = vsel %vm3561, %v4355, %v4135
    %v4366 = vsel %vm3561, %v4356, %v4137
    %v4367 = vsel %vm3561, %v4357, %v4139
    %v4368 = vsel %vm3561, %v4358, %v4141
    %v4369 = vsel %vm3561, %v4359, %v4143
    %v4370 = vsel %vm3561, %v4360, %v4145
    %v4371 = vsel %vm3561, %v4361, %v4147
    %v4372 = vsel %vm3561, %v4362, %v4149
    %v4373 = vsel %vm3561, %v4363, %v4151
    %vm4374 = vcmask 195584
    %v4375 = vsel %vm4374, %v4364, %v4165
    %v4376 = vsel %vm4374, %v4365, %v4167
    %v4377 = vsel %vm4374, %v4366, %v4169
    %v4378 = vsel %vm4374, %v4367, %v4171
    %v4379 = vsel %vm4374, %v4368, %v4173
    %v4380 = vsel %vm4374, %v4369, %v4175
    %v4381 = vsel %vm4374, %v4370, %v4177
    %v4382 = vsel %vm4374, %v4371, %v4179
    %v4383 = vsel %vm4374, %v4372, %v4181
    %v4384 = vsel %vm4374, %v4373, %v4183
    %vm4385 = vcmask 261120
    %v4386 = vsel %vm4385, %v4375, %v4197
    %v4387 = vsel %vm4385, %v4376, %v4199
    %v4388 = vsel %vm4385, %v4377, %v4201
    %v4389 = vsel %vm4385, %v4378, %v4203
    %v4390 = vsel %vm4385, %v4379, %v4205
    %v4391 = vsel %vm4385, %v4380, %v4207
    %v4392 = vsel %vm4385, %v4381, %v4209
    %v4393 = vsel %vm4385, %v4382, %v4211
    %v4394 = vsel %vm4385, %v4383, %v4213
    %v4395 = vsel %vm4385, %v4384, %v4215
    %vm4396 = vcmask 326656
    %v4397 = vsel %vm4396, %v4386, %v4229
    %v4398 = vsel %vm4396, %v4387, %v4231
    %v4399 = vsel %vm4396, %v4388, %v4233
    %v4400 = vsel %vm4396, %v4389, %v4235
    %v4401 = vsel %vm4396, %v4390, %v4237
    %v4402 = vsel %vm4396, %v4391, %v4239
    %v4403 = vsel %vm4396, %v4392, %v4241
    %v4404 = vsel %vm4396, %v4393, %v4243
    %v4405 = vsel %vm4396, %v4394, %v4245
    %v4406 = vsel %vm4396, %v4395, %v4247
    %vm4407 = vcmask 392192
    %v4408 = vsel %vm4407, %v4397, %v4261
    %v4409 = vsel %vm4407, %v4398, %v4263
    %v4410 = vsel %vm4407, %v4399, %v4265
    %v4411 = vsel %vm4407, %v4400, %v4267
    %v4412 = vsel %vm4407, %v4401, %v4269
    %v4413 = vsel %vm4407, %v4402, %v4271
    %v4414 = vsel %vm4407, %v4403, %v4273
    %v4415 = vsel %vm4407, %v4404, %v4275
    %v4416 = vsel %vm4407, %v4405, %v4277
    %v4417 = vsel %vm4407, %v4406, %v4279
    %vm4418 = vcmask 457728
    %v4419 = vsel %vm4418, %v4408, %v4293
    %v4420 = vsel %vm4418, %v4409, %v4295
    %v4421 = vsel %vm4418, %v4410, %v4297
    %v4422 = vsel %vm4418, %v4411, %v4299
    %v4423 = vsel %vm4418, %v4412, %v4301
    %v4424 = vsel %vm4418, %v4413, %v4303
    %v4425 = vsel %vm4418, %v4414, %v4305
    %v4426 = vsel %vm4418, %v4415, %v4307
    %v4427 = vsel %vm4418, %v4416, %v4309
    %v4428 = vsel %vm4418, %v4417, %v4311
    %vm4429 = vcmask 523264
    %v4430 = vsel %vm4429, %v4419, %v4325
    %v4431 = vsel %vm4429, %v4420, %v4327
    %v4432 = vsel %vm4429, %v4421, %v4329
    %v4433 = vsel %vm4429, %v4422, %v4331
    %v4434 = vsel %vm4429, %v4423, %v4333
    %v4435 = vsel %vm4429, %v4424, %v4335
    %v4436 = vsel %vm4429, %v4425, %v4337
    %v4437 = vsel %vm4429, %v4426, %v4339
    %v4438 = vsel %vm4429, %v4427, %v4341
    %v4439 = vsel %vm4429, %v4428, %v4343
    %v4440 = vld [vmem:[%s3] sm:$0xff]
    %v4441 = vld [vmem:[%s3 + $0x8] sm:$0xff]
    %v4442 = vld [vmem:[%s3 + $0x10] sm:$0xff]
    %v4443 = vld [vmem:[%s3 + $0x18] sm:$0xff]
    %v4444 = vld [vmem:[%s3 + $0x20] sm:$0xff]
    %v4445 = vld [vmem:[%s3 + $0x28] sm:$0xff]
    %v4446 = vld [vmem:[%s3 + $0x30] sm:$0xff]
    %v4447 = vld [vmem:[%s3 + $0x38] sm:$0xff]
    %v4448 = vld [vmem:[%s3 + $0x40] sm:$0xff]
    %vm4449 = vcmask 588800
    %v4451 = vsel %vm4449, %v4430, 0
    %4453 = vmatprep.subr.mxu0 0.0
    %4454 = vmatpush1.msra.mxu0 %v4440
    %4455 = vmatprep.subr.mxu0 0.0
    %4456 = vmatpush1.msra.mxu0 %v4441
    %4457 = vmatprep.subr.mxu0 0.0
    %4458 = vmatpush1.msra.mxu0 %v4442
    %4459 = vmatprep.subr.mxu0 0.0
    %4460 = vmatpush1.msra.mxu0 %v4443
    %4461 = vmatprep.subr.mxu0 0.0
    %4462 = vmatpush1.msra.mxu0 %v4444
    %4463 = vmatprep.subr.mxu0 0.0
    %4464 = vmatpush1.msra.mxu0 %v4445
    %4465 = vmatprep.subr.mxu0 0.0
    %4466 = vmatpush1.msra.mxu0 %v4446
    %4467 = vmatprep.subr.mxu0 0.0
    %4468 = vmatpush1.msra.mxu0 %v4447
    %4469 = vmatprep.subr.mxu0 0.0
    %4470 = vmatpush1.msra.mxu0 %v4448
    %4471 = vmatprep.subr.mxu0 0.0
    %4472 = vmatpush1.msra.mxu0 0.0
    %4473 = vmatprep.subr.mxu0 0.0
    %4474 = vmatpush1.msra.mxu0 0.0
    %4475 = vmatprep.subr.mxu0 0.0
    %4476 = vmatpush1.msra.mxu0 0.0
    %4477 = vmatprep.subr.mxu0 0.0
    %4478 = vmatpush1.msra.mxu0 0.0
    %4479 = vmatprep.subr.mxu0 0.0
    %4480 = vmatpush1.msra.mxu0 0.0
    %4481 = vmatprep.subr.mxu0 0.0
    %4482 = vmatpush1.msra.mxu0 0.0
    %4483 = vmatprep.subr.mxu0 0.0
    %4484 = vmatpush1.msra.mxu0 0.0
    %4485 = vmatprep.subr.mxu0 0.0
    %4486 = vmatpush1.msra.mxu0 0.0
    %4487 = vmatprep.subr.mxu0 0.0
    %4488 = vmatpush1.msra.mxu0 0.0
    %4489 = vmatprep.subr.mxu0 0.0
    %4490 = vmatpush1.msra.mxu0 0.0
    %4491 = vmatprep.subr.mxu0 0.0
    %4492 = vmatpush1.msra.mxu0 0.0
    %4493 = vmatprep.subr.mxu0 0.0
    %4494 = vmatpush1.msra.mxu0 0.0
    %4495 = vmatprep.subr.mxu0 0.0
    %4496 = vmatpush1.msra.mxu0 0.0
    %4497 = vmatprep.subr.mxu0 0.0
    %4498 = vmatpush1.msra.mxu0 0.0
    %4499 = vmatprep.subr.mxu0 0.0
    %4500 = vmatpush1.msra.mxu0 0.0
    %4501 = vmatprep.subr.mxu0 0.0
    %4502 = vmatpush1.msra.mxu0 0.0
    %4503 = vmatprep.subr.mxu0 0.0
    %4504 = vmatpush1.msra.mxu0 0.0
    %4505 = vmatprep.subr.mxu0 0.0
    %4506 = vmatpush1.msra.mxu0 0.0
    %4507 = vmatprep.subr.mxu0 0.0
    %4508 = vmatpush1.msra.mxu0 0.0
    %4509 = vmatprep.subr.mxu0 0.0
    %4510 = vmatpush1.msra.mxu0 0.0
    %4511 = vmatprep.subr.mxu0 0.0
    %4512 = vmatpush1.msra.mxu0 0.0
    %4513 = vmatprep.subr.mxu0 0.0
    %4514 = vmatpush1.msra.mxu0 0.0
    %4515 = vmatprep.subr.mxu0 0.0
    %4516 = vmatpush1.msra.mxu0 0.0
    %4517 = vmatprep.mubr.f32.mxu0 0.0
    %4518 = vmatmul.mubr.f32.gmra.mrb[0].mxu0 %v4451
    %v4519 = vpop.f32.mrb[0].mxu0
    %v4520 = vadd.f32 0.0, %v4519
    %v4521 = vpop.f32.mrb[0].mxu0
    %4522 = vdwg.mxu0
    %v4524 = vsel %vm4449, %v4431, 0
    %4526 = vmatprep.subr.mxu0 0.0
    %4527 = vmatpush1.msra.mxu0 %v4440
    %4528 = vmatprep.subr.mxu0 0.0
    %4529 = vmatpush1.msra.mxu0 %v4441
    %4530 = vmatprep.subr.mxu0 0.0
    %4531 = vmatpush1.msra.mxu0 %v4442
    %4532 = vmatprep.subr.mxu0 0.0
    %4533 = vmatpush1.msra.mxu0 %v4443
    %4534 = vmatprep.subr.mxu0 0.0
    %4535 = vmatpush1.msra.mxu0 %v4444
    %4536 = vmatprep.subr.mxu0 0.0
    %4537 = vmatpush1.msra.mxu0 %v4445
    %4538 = vmatprep.subr.mxu0 0.0
    %4539 = vmatpush1.msra.mxu0 %v4446
    %4540 = vmatprep.subr.mxu0 0.0
    %4541 = vmatpush1.msra.mxu0 %v4447
    %4542 = vmatprep.subr.mxu0 0.0
    %4543 = vmatpush1.msra.mxu0 %v4448
    %4544 = vmatprep.subr.mxu0 0.0
    %4545 = vmatpush1.msra.mxu0 0.0
    %4546 = vmatprep.subr.mxu0 0.0
    %4547 = vmatpush1.msra.mxu0 0.0
    %4548 = vmatprep.subr.mxu0 0.0
    %4549 = vmatpush1.msra.mxu0 0.0
    %4550 = vmatprep.subr.mxu0 0.0
    %4551 = vmatpush1.msra.mxu0 0.0
    %4552 = vmatprep.subr.mxu0 0.0
    %4553 = vmatpush1.msra.mxu0 0.0
    %4554 = vmatprep.subr.mxu0 0.0
    %4555 = vmatpush1.msra.mxu0 0.0
    %4556 = vmatprep.subr.mxu0 0.0
    %4557 = vmatpush1.msra.mxu0 0.0
    %4558 = vmatprep.subr.mxu0 0.0
    %4559 = vmatpush1.msra.mxu0 0.0
    %4560 = vmatprep.subr.mxu0 0.0
    %4561 = vmatpush1.msra.mxu0 0.0
    %4562 = vmatprep.subr.mxu0 0.0
    %4563 = vmatpush1.msra.mxu0 0.0
    %4564 = vmatprep.subr.mxu0 0.0
    %4565 = vmatpush1.msra.mxu0 0.0
    %4566 = vmatprep.subr.mxu0 0.0
    %4567 = vmatpush1.msra.mxu0 0.0
    %4568 = vmatprep.subr.mxu0 0.0
    %4569 = vmatpush1.msra.mxu0 0.0
    %4570 = vmatprep.subr.mxu0 0.0
    %4571 = vmatpush1.msra.mxu0 0.0
    %4572 = vmatprep.subr.mxu0 0.0
    %4573 = vmatpush1.msra.mxu0 0.0
    %4574 = vmatprep.subr.mxu0 0.0
    %4575 = vmatpush1.msra.mxu0 0.0
    %4576 = vmatprep.subr.mxu0 0.0
    %4577 = vmatpush1.msra.mxu0 0.0
    %4578 = vmatprep.subr.mxu0 0.0
    %4579 = vmatpush1.msra.mxu0 0.0
    %4580 = vmatprep.subr.mxu0 0.0
    %4581 = vmatpush1.msra.mxu0 0.0
    %4582 = vmatprep.subr.mxu0 0.0
    %4583 = vmatpush1.msra.mxu0 0.0
    %4584 = vmatprep.subr.mxu0 0.0
    %4585 = vmatpush1.msra.mxu0 0.0
    %4586 = vmatprep.subr.mxu0 0.0
    %4587 = vmatpush1.msra.mxu0 0.0
    %4588 = vmatprep.subr.mxu0 0.0
    %4589 = vmatpush1.msra.mxu0 0.0
    %4590 = vmatprep.mubr.f32.mxu0 0.0
    %4591 = vmatmul.mubr.f32.gmra.mrb[0].mxu0 %v4524
    %v4592 = vpop.f32.mrb[0].mxu0
    %v4593 = vadd.f32 0.0, %v4592
    %v4594 = vpop.f32.mrb[0].mxu0
    %4595 = vdwg.mxu0
    %v4597 = vsel %vm4449, %v4432, 0
    %4599 = vmatprep.subr.mxu0 0.0
    %4600 = vmatpush1.msra.mxu0 %v4440
    %4601 = vmatprep.subr.mxu0 0.0
    %4602 = vmatpush1.msra.mxu0 %v4441
    %4603 = vmatprep.subr.mxu0 0.0
    %4604 = vmatpush1.msra.mxu0 %v4442
    %4605 = vmatprep.subr.mxu0 0.0
    %4606 = vmatpush1.msra.mxu0 %v4443
    %4607 = vmatprep.subr.mxu0 0.0
    %4608 = vmatpush1.msra.mxu0 %v4444
    %4609 = vmatprep.subr.mxu0 0.0
    %4610 = vmatpush1.msra.mxu0 %v4445
    %4611 = vmatprep.subr.mxu0 0.0
    %4612 = vmatpush1.msra.mxu0 %v4446
    %4613 = vmatprep.subr.mxu0 0.0
    %4614 = vmatpush1.msra.mxu0 %v4447
    %4615 = vmatprep.subr.mxu0 0.0
    %4616 = vmatpush1.msra.mxu0 %v4448
    %4617 = vmatprep.subr.mxu0 0.0
    %4618 = vmatpush1.msra.mxu0 0.0
    %4619 = vmatprep.subr.mxu0 0.0
    %4620 = vmatpush1.msra.mxu0 0.0
    %4621 = vmatprep.subr.mxu0 0.0
    %4622 = vmatpush1.msra.mxu0 0.0
    %4623 = vmatprep.subr.mxu0 0.0
    %4624 = vmatpush1.msra.mxu0 0.0
    %4625 = vmatprep.subr.mxu0 0.0
    %4626 = vmatpush1.msra.mxu0 0.0
    %4627 = vmatprep.subr.mxu0 0.0
    %4628 = vmatpush1.msra.mxu0 0.0
    %4629 = vmatprep.subr.mxu0 0.0
    %4630 = vmatpush1.msra.mxu0 0.0
    %4631 = vmatprep.subr.mxu0 0.0
    %4632 = vmatpush1.msra.mxu0 0.0
    %4633 = vmatprep.subr.mxu0 0.0
    %4634 = vmatpush1.msra.mxu0 0.0
    %4635 = vmatprep.subr.mxu0 0.0
    %4636 = vmatpush1.msra.mxu0 0.0
    %4637 = vmatprep.subr.mxu0 0.0
    %4638 = vmatpush1.msra.mxu0 0.0
    %4639 = vmatprep.subr.mxu0 0.0
    %4640 = vmatpush1.msra.mxu0 0.0
    %4641 = vmatprep.subr.mxu0 0.0
    %4642 = vmatpush1.msra.mxu0 0.0
    %4643 = vmatprep.subr.mxu0 0.0
    %4644 = vmatpush1.msra.mxu0 0.0
    %4645 = vmatprep.subr.mxu0 0.0
    %4646 = vmatpush1.msra.mxu0 0.0
    %4647 = vmatprep.subr.mxu0 0.0
    %4648 = vmatpush1.msra.mxu0 0.0
    %4649 = vmatprep.subr.mxu0 0.0
    %4650 = vmatpush1.msra.mxu0 0.0
    %4651 = vmatprep.subr.mxu0 0.0
    %4652 = vmatpush1.msra.mxu0 0.0
    %4653 = vmatprep.subr.mxu0 0.0
    %4654 = vmatpush1.msra.mxu0 0.0
    %4655 = vmatprep.subr.mxu0 0.0
    %4656 = vmatpush1.msra.mxu0 0.0
    %4657 = vmatprep.subr.mxu0 0.0
    %4658 = vmatpush1.msra.mxu0 0.0
    %4659 = vmatprep.subr.mxu0 0.0
    %4660 = vmatpush1.msra.mxu0 0.0
    %4661 = vmatprep.subr.mxu0 0.0
    %4662 = vmatpush1.msra.mxu0 0.0
    %4663 = vmatprep.mubr.f32.mxu0 0.0
    %4664 = vmatmul.mubr.f32.gmra.mrb[0].mxu0 %v4597
    %v4665 = vpop.f32.mrb[0].mxu0
    %v4666 = vadd.f32 0.0, %v4665
    %v4667 = vpop.f32.mrb[0].mxu0
    %4668 = vdwg.mxu0
    %v4670 = vsel %vm4449, %v4433, 0
    %4672 = vmatprep.subr.mxu0 0.0
    %4673 = vmatpush1.msra.mxu0 %v4440
    %4674 = vmatprep.subr.mxu0 0.0
    %4675 = vmatpush1.msra.mxu0 %v4441
    %4676 = vmatprep.subr.mxu0 0.0
    %4677 = vmatpush1.msra.mxu0 %v4442
    %4678 = vmatprep.subr.mxu0 0.0
    %4679 = vmatpush1.msra.mxu0 %v4443
    %4680 = vmatprep.subr.mxu0 0.0
    %4681 = vmatpush1.msra.mxu0 %v4444
    %4682 = vmatprep.subr.mxu0 0.0
    %4683 = vmatpush1.msra.mxu0 %v4445
    %4684 = vmatprep.subr.mxu0 0.0
    %4685 = vmatpush1.msra.mxu0 %v4446
    %4686 = vmatprep.subr.mxu0 0.0
    %4687 = vmatpush1.msra.mxu0 %v4447
    %4688 = vmatprep.subr.mxu0 0.0
    %4689 = vmatpush1.msra.mxu0 %v4448
    %4690 = vmatprep.subr.mxu0 0.0
    %4691 = vmatpush1.msra.mxu0 0.0
    %4692 = vmatprep.subr.mxu0 0.0
    %4693 = vmatpush1.msra.mxu0 0.0
    %4694 = vmatprep.subr.mxu0 0.0
    %4695 = vmatpush1.msra.mxu0 0.0
    %4696 = vmatprep.subr.mxu0 0.0
    %4697 = vmatpush1.msra.mxu0 0.0
    %4698 = vmatprep.subr.mxu0 0.0
    %4699 = vmatpush1.msra.mxu0 0.0
    %4700 = vmatprep.subr.mxu0 0.0
    %4701 = vmatpush1.msra.mxu0 0.0
    %4702 = vmatprep.subr.mxu0 0.0
    %4703 = vmatpush1.msra.mxu0 0.0
    %4704 = vmatprep.subr.mxu0 0.0
    %4705 = vmatpush1.msra.mxu0 0.0
    %4706 = vmatprep.subr.mxu0 0.0
    %4707 = vmatpush1.msra.mxu0 0.0
    %4708 = vmatprep.subr.mxu0 0.0
    %4709 = vmatpush1.msra.mxu0 0.0
    %4710 = vmatprep.subr.mxu0 0.0
    %4711 = vmatpush1.msra.mxu0 0.0
    %4712 = vmatprep.subr.mxu0 0.0
    %4713 = vmatpush1.msra.mxu0 0.0
    %4714 = vmatprep.subr.mxu0 0.0
    %4715 = vmatpush1.msra.mxu0 0.0
    %4716 = vmatprep.subr.mxu0 0.0
    %4717 = vmatpush1.msra.mxu0 0.0
    %4718 = vmatprep.subr.mxu0 0.0
    %4719 = vmatpush1.msra.mxu0 0.0
    %4720 = vmatprep.subr.mxu0 0.0
    %4721 = vmatpush1.msra.mxu0 0.0
    %4722 = vmatprep.subr.mxu0 0.0
    %4723 = vmatpush1.msra.mxu0 0.0
    %4724 = vmatprep.subr.mxu0 0.0
    %4725 = vmatpush1.msra.mxu0 0.0
    %4726 = vmatprep.subr.mxu0 0.0
    %4727 = vmatpush1.msra.mxu0 0.0
    %4728 = vmatprep.subr.mxu0 0.0
    %4729 = vmatpush1.msra.mxu0 0.0
    %4730 = vmatprep.subr.mxu0 0.0
    %4731 = vmatpush1.msra.mxu0 0.0
    %4732 = vmatprep.subr.mxu0 0.0
    %4733 = vmatpush1.msra.mxu0 0.0
    %4734 = vmatprep.subr.mxu0 0.0
    %4735 = vmatpush1.msra.mxu0 0.0
    %4736 = vmatprep.mubr.f32.mxu0 0.0
    %4737 = vmatmul.mubr.f32.gmra.mrb[0].mxu0 %v4670
    %v4738 = vpop.f32.mrb[0].mxu0
    %v4739 = vadd.f32 0.0, %v4738
    %v4740 = vpop.f32.mrb[0].mxu0
    %4741 = vdwg.mxu0
    %v4743 = vsel %vm4449, %v4434, 0
    %4745 = vmatprep.subr.mxu0 0.0
    %4746 = vmatpush1.msra.mxu0 %v4440
    %4747 = vmatprep.subr.mxu0 0.0
    %4748 = vmatpush1.msra.mxu0 %v4441
    %4749 = vmatprep.subr.mxu0 0.0
    %4750 = vmatpush1.msra.mxu0 %v4442
    %4751 = vmatprep.subr.mxu0 0.0
    %4752 = vmatpush1.msra.mxu0 %v4443
    %4753 = vmatprep.subr.mxu0 0.0
    %4754 = vmatpush1.msra.mxu0 %v4444
    %4755 = vmatprep.subr.mxu0 0.0
    %4756 = vmatpush1.msra.mxu0 %v4445
    %4757 = vmatprep.subr.mxu0 0.0
    %4758 = vmatpush1.msra.mxu0 %v4446
    %4759 = vmatprep.subr.mxu0 0.0
    %4760 = vmatpush1.msra.mxu0 %v4447
    %4761 = vmatprep.subr.mxu0 0.0
    %4762 = vmatpush1.msra.mxu0 %v4448
    %4763 = vmatprep.subr.mxu0 0.0
    %4764 = vmatpush1.msra.mxu0 0.0
    %4765 = vmatprep.subr.mxu0 0.0
    %4766 = vmatpush1.msra.mxu0 0.0
    %4767 = vmatprep.subr.mxu0 0.0
    %4768 = vmatpush1.msra.mxu0 0.0
    %4769 = vmatprep.subr.mxu0 0.0
    %4770 = vmatpush1.msra.mxu0 0.0
    %4771 = vmatprep.subr.mxu0 0.0
    %4772 = vmatpush1.msra.mxu0 0.0
    %4773 = vmatprep.subr.mxu0 0.0
    %4774 = vmatpush1.msra.mxu0 0.0
    %4775 = vmatprep.subr.mxu0 0.0
    %4776 = vmatpush1.msra.mxu0 0.0
    %4777 = vmatprep.subr.mxu0 0.0
    %4778 = vmatpush1.msra.mxu0 0.0
    %4779 = vmatprep.subr.mxu0 0.0
    %4780 = vmatpush1.msra.mxu0 0.0
    %4781 = vmatprep.subr.mxu0 0.0
    %4782 = vmatpush1.msra.mxu0 0.0
    %4783 = vmatprep.subr.mxu0 0.0
    %4784 = vmatpush1.msra.mxu0 0.0
    %4785 = vmatprep.subr.mxu0 0.0
    %4786 = vmatpush1.msra.mxu0 0.0
    %4787 = vmatprep.subr.mxu0 0.0
    %4788 = vmatpush1.msra.mxu0 0.0
    %4789 = vmatprep.subr.mxu0 0.0
    %4790 = vmatpush1.msra.mxu0 0.0
    %4791 = vmatprep.subr.mxu0 0.0
    %4792 = vmatpush1.msra.mxu0 0.0
    %4793 = vmatprep.subr.mxu0 0.0
    %4794 = vmatpush1.msra.mxu0 0.0
    %4795 = vmatprep.subr.mxu0 0.0
    %4796 = vmatpush1.msra.mxu0 0.0
    %4797 = vmatprep.subr.mxu0 0.0
    %4798 = vmatpush1.msra.mxu0 0.0
    %4799 = vmatprep.subr.mxu0 0.0
    %4800 = vmatpush1.msra.mxu0 0.0
    %4801 = vmatprep.subr.mxu0 0.0
    %4802 = vmatpush1.msra.mxu0 0.0
    %4803 = vmatprep.subr.mxu0 0.0
    %4804 = vmatpush1.msra.mxu0 0.0
    %4805 = vmatprep.subr.mxu0 0.0
    %4806 = vmatpush1.msra.mxu0 0.0
    %4807 = vmatprep.subr.mxu0 0.0
    %4808 = vmatpush1.msra.mxu0 0.0
    %4809 = vmatprep.mubr.f32.mxu0 0.0
    %4810 = vmatmul.mubr.f32.gmra.mrb[0].mxu0 %v4743
    %v4811 = vpop.f32.mrb[0].mxu0
    %v4812 = vadd.f32 0.0, %v4811
    %v4813 = vpop.f32.mrb[0].mxu0
    %4814 = vdwg.mxu0
    %v4816 = vsel %vm4449, %v4435, 0
    %4818 = vmatprep.subr.mxu0 0.0
    %4819 = vmatpush1.msra.mxu0 %v4440
    %4820 = vmatprep.subr.mxu0 0.0
    %4821 = vmatpush1.msra.mxu0 %v4441
    %4822 = vmatprep.subr.mxu0 0.0
    %4823 = vmatpush1.msra.mxu0 %v4442
    %4824 = vmatprep.subr.mxu0 0.0
    %4825 = vmatpush1.msra.mxu0 %v4443
    %4826 = vmatprep.subr.mxu0 0.0
    %4827 = vmatpush1.msra.mxu0 %v4444
    %4828 = vmatprep.subr.mxu0 0.0
    %4829 = vmatpush1.msra.mxu0 %v4445
    %4830 = vmatprep.subr.mxu0 0.0
    %4831 = vmatpush1.msra.mxu0 %v4446
    %4832 = vmatprep.subr.mxu0 0.0
    %4833 = vmatpush1.msra.mxu0 %v4447
    %4834 = vmatprep.subr.mxu0 0.0
    %4835 = vmatpush1.msra.mxu0 %v4448
    %4836 = vmatprep.subr.mxu0 0.0
    %4837 = vmatpush1.msra.mxu0 0.0
    %4838 = vmatprep.subr.mxu0 0.0
    %4839 = vmatpush1.msra.mxu0 0.0
    %4840 = vmatprep.subr.mxu0 0.0
    %4841 = vmatpush1.msra.mxu0 0.0
    %4842 = vmatprep.subr.mxu0 0.0
    %4843 = vmatpush1.msra.mxu0 0.0
    %4844 = vmatprep.subr.mxu0 0.0
    %4845 = vmatpush1.msra.mxu0 0.0
    %4846 = vmatprep.subr.mxu0 0.0
    %4847 = vmatpush1.msra.mxu0 0.0
    %4848 = vmatprep.subr.mxu0 0.0
    %4849 = vmatpush1.msra.mxu0 0.0
    %4850 = vmatprep.subr.mxu0 0.0
    %4851 = vmatpush1.msra.mxu0 0.0
    %4852 = vmatprep.subr.mxu0 0.0
    %4853 = vmatpush1.msra.mxu0 0.0
    %4854 = vmatprep.subr.mxu0 0.0
    %4855 = vmatpush1.msra.mxu0 0.0
    %4856 = vmatprep.subr.mxu0 0.0
    %4857 = vmatpush1.msra.mxu0 0.0
    %4858 = vmatprep.subr.mxu0 0.0
    %4859 = vmatpush1.msra.mxu0 0.0
    %4860 = vmatprep.subr.mxu0 0.0
    %4861 = vmatpush1.msra.mxu0 0.0
    %4862 = vmatprep.subr.mxu0 0.0
    %4863 = vmatpush1.msra.mxu0 0.0
    %4864 = vmatprep.subr.mxu0 0.0
    %4865 = vmatpush1.msra.mxu0 0.0
    %4866 = vmatprep.subr.mxu0 0.0
    %4867 = vmatpush1.msra.mxu0 0.0
    %4868 = vmatprep.subr.mxu0 0.0
    %4869 = vmatpush1.msra.mxu0 0.0
    %4870 = vmatprep.subr.mxu0 0.0
    %4871 = vmatpush1.msra.mxu0 0.0
    %4872 = vmatprep.subr.mxu0 0.0
    %4873 = vmatpush1.msra.mxu0 0.0
    %4874 = vmatprep.subr.mxu0 0.0
    %4875 = vmatpush1.msra.mxu0 0.0
    %4876 = vmatprep.subr.mxu0 0.0
    %4877 = vmatpush1.msra.mxu0 0.0
    %4878 = vmatprep.subr.mxu0 0.0
    %4879 = vmatpush1.msra.mxu0 0.0
    %4880 = vmatprep.subr.mxu0 0.0
    %4881 = vmatpush1.msra.mxu0 0.0
    %4882 = vmatprep.mubr.f32.mxu0 0.0
    %4883 = vmatmul.mubr.f32.gmra.mrb[0].mxu0 %v4816
    %v4884 = vpop.f32.mrb[0].mxu0
    %v4885 = vadd.f32 0.0, %v4884
    %v4886 = vpop.f32.mrb[0].mxu0
    %4887 = vdwg.mxu0
    %v4889 = vsel %vm4449, %v4436, 0
    %4891 = vmatprep.subr.mxu0 0.0
    %4892 = vmatpush1.msra.mxu0 %v4440
    %4893 = vmatprep.subr.mxu0 0.0
    %4894 = vmatpush1.msra.mxu0 %v4441
    %4895 = vmatprep.subr.mxu0 0.0
    %4896 = vmatpush1.msra.mxu0 %v4442
    %4897 = vmatprep.subr.mxu0 0.0
    %4898 = vmatpush1.msra.mxu0 %v4443
    %4899 = vmatprep.subr.mxu0 0.0
    %4900 = vmatpush1.msra.mxu0 %v4444
    %4901 = vmatprep.subr.mxu0 0.0
    %4902 = vmatpush1.msra.mxu0 %v4445
    %4903 = vmatprep.subr.mxu0 0.0
    %4904 = vmatpush1.msra.mxu0 %v4446
    %4905 = vmatprep.subr.mxu0 0.0
    %4906 = vmatpush1.msra.mxu0 %v4447
    %4907 = vmatprep.subr.mxu0 0.0
    %4908 = vmatpush1.msra.mxu0 %v4448
    %4909 = vmatprep.subr.mxu0 0.0
    %4910 = vmatpush1.msra.mxu0 0.0
    %4911 = vmatprep.subr.mxu0 0.0
    %4912 = vmatpush1.msra.mxu0 0.0
    %4913 = vmatprep.subr.mxu0 0.0
    %4914 = vmatpush1.msra.mxu0 0.0
    %4915 = vmatprep.subr.mxu0 0.0
    %4916 = vmatpush1.msra.mxu0 0.0
    %4917 = vmatprep.subr.mxu0 0.0
    %4918 = vmatpush1.msra.mxu0 0.0
    %4919 = vmatprep.subr.mxu0 0.0
    %4920 = vmatpush1.msra.mxu0 0.0
    %4921 = vmatprep.subr.mxu0 0.0
    %4922 = vmatpush1.msra.mxu0 0.0
    %4923 = vmatprep.subr.mxu0 0.0
    %4924 = vmatpush1.msra.mxu0 0.0
    %4925 = vmatprep.subr.mxu0 0.0
    %4926 = vmatpush1.msra.mxu0 0.0
    %4927 = vmatprep.subr.mxu0 0.0
    %4928 = vmatpush1.msra.mxu0 0.0
    %4929 = vmatprep.subr.mxu0 0.0
    %4930 = vmatpush1.msra.mxu0 0.0
    %4931 = vmatprep.subr.mxu0 0.0
    %4932 = vmatpush1.msra.mxu0 0.0
    %4933 = vmatprep.subr.mxu0 0.0
    %4934 = vmatpush1.msra.mxu0 0.0
    %4935 = vmatprep.subr.mxu0 0.0
    %4936 = vmatpush1.msra.mxu0 0.0
    %4937 = vmatprep.subr.mxu0 0.0
    %4938 = vmatpush1.msra.mxu0 0.0
    %4939 = vmatprep.subr.mxu0 0.0
    %4940 = vmatpush1.msra.mxu0 0.0
    %4941 = vmatprep.subr.mxu0 0.0
    %4942 = vmatpush1.msra.mxu0 0.0
    %4943 = vmatprep.subr.mxu0 0.0
    %4944 = vmatpush1.msra.mxu0 0.0
    %4945 = vmatprep.subr.mxu0 0.0
    %4946 = vmatpush1.msra.mxu0 0.0
    %4947 = vmatprep.subr.mxu0 0.0
    %4948 = vmatpush1.msra.mxu0 0.0
    %4949 = vmatprep.subr.mxu0 0.0
    %4950 = vmatpush1.msra.mxu0 0.0
    %4951 = vmatprep.subr.mxu0 0.0
    %4952 = vmatpush1.msra.mxu0 0.0
    %4953 = vmatprep.subr.mxu0 0.0
    %4954 = vmatpush1.msra.mxu0 0.0
    %4955 = vmatprep.mubr.f32.mxu0 0.0
    %4956 = vmatmul.mubr.f32.gmra.mrb[0].mxu0 %v4889
    %v4957 = vpop.f32.mrb[0].mxu0
    %v4958 = vadd.f32 0.0, %v4957
    %v4959 = vpop.f32.mrb[0].mxu0
    %4960 = vdwg.mxu0
    %v4962 = vsel %vm4449, %v4437, 0
    %4964 = vmatprep.subr.mxu0 0.0
    %4965 = vmatpush1.msra.mxu0 %v4440
    %4966 = vmatprep.subr.mxu0 0.0
    %4967 = vmatpush1.msra.mxu0 %v4441
    %4968 = vmatprep.subr.mxu0 0.0
    %4969 = vmatpush1.msra.mxu0 %v4442
    %4970 = vmatprep.subr.mxu0 0.0
    %4971 = vmatpush1.msra.mxu0 %v4443
    %4972 = vmatprep.subr.mxu0 0.0
    %4973 = vmatpush1.msra.mxu0 %v4444
    %4974 = vmatprep.subr.mxu0 0.0
    %4975 = vmatpush1.msra.mxu0 %v4445
    %4976 = vmatprep.subr.mxu0 0.0
    %4977 = vmatpush1.msra.mxu0 %v4446
    %4978 = vmatprep.subr.mxu0 0.0
    %4979 = vmatpush1.msra.mxu0 %v4447
    %4980 = vmatprep.subr.mxu0 0.0
    %4981 = vmatpush1.msra.mxu0 %v4448
    %4982 = vmatprep.subr.mxu0 0.0
    %4983 = vmatpush1.msra.mxu0 0.0
    %4984 = vmatprep.subr.mxu0 0.0
    %4985 = vmatpush1.msra.mxu0 0.0
    %4986 = vmatprep.subr.mxu0 0.0
    %4987 = vmatpush1.msra.mxu0 0.0
    %4988 = vmatprep.subr.mxu0 0.0
    %4989 = vmatpush1.msra.mxu0 0.0
    %4990 = vmatprep.subr.mxu0 0.0
    %4991 = vmatpush1.msra.mxu0 0.0
    %4992 = vmatprep.subr.mxu0 0.0
    %4993 = vmatpush1.msra.mxu0 0.0
    %4994 = vmatprep.subr.mxu0 0.0
    %4995 = vmatpush1.msra.mxu0 0.0
    %4996 = vmatprep.subr.mxu0 0.0
    %4997 = vmatpush1.msra.mxu0 0.0
    %4998 = vmatprep.subr.mxu0 0.0
    %4999 = vmatpush1.msra.mxu0 0.0
    %5000 = vmatprep.subr.mxu0 0.0
    %5001 = vmatpush1.msra.mxu0 0.0
    %5002 = vmatprep.subr.mxu0 0.0
    %5003 = vmatpush1.msra.mxu0 0.0
    %5004 = vmatprep.subr.mxu0 0.0
    %5005 = vmatpush1.msra.mxu0 0.0
    %5006 = vmatprep.subr.mxu0 0.0
    %5007 = vmatpush1.msra.mxu0 0.0
    %5008 = vmatprep.subr.mxu0 0.0
    %5009 = vmatpush1.msra.mxu0 0.0
    %5010 = vmatprep.subr.mxu0 0.0
    %5011 = vmatpush1.msra.mxu0 0.0
    %5012 = vmatprep.subr.mxu0 0.0
    %5013 = vmatpush1.msra.mxu0 0.0
    %5014 = vmatprep.subr.mxu0 0.0
    %5015 = vmatpush1.msra.mxu0 0.0
    %5016 = vmatprep.subr.mxu0 0.0
    %5017 = vmatpush1.msra.mxu0 0.0
    %5018 = vmatprep.subr.mxu0 0.0
    %5019 = vmatpush1.msra.mxu0 0.0
    %5020 = vmatprep.subr.mxu0 0.0
    %5021 = vmatpush1.msra.mxu0 0.0
    %5022 = vmatprep.subr.mxu0 0.0
    %5023 = vmatpush1.msra.mxu0 0.0
    %5024 = vmatprep.subr.mxu0 0.0
    %5025 = vmatpush1.msra.mxu0 0.0
    %5026 = vmatprep.subr.mxu0 0.0
    %5027 = vmatpush1.msra.mxu0 0.0
    %5028 = vmatprep.mubr.f32.mxu0 0.0
    %5029 = vmatmul.mubr.f32.gmra.mrb[0].mxu0 %v4962
    %v5030 = vpop.f32.mrb[0].mxu0
    %v5031 = vadd.f32 0.0, %v5030
    %v5032 = vpop.f32.mrb[0].mxu0
    %5033 = vdwg.mxu0
    %v5035 = vsel %vm4449, %v4438, 0
    %5037 = vmatprep.subr.mxu0 0.0
    %5038 = vmatpush1.msra.mxu0 %v4440
    %5039 = vmatprep.subr.mxu0 0.0
    %5040 = vmatpush1.msra.mxu0 %v4441
    %5041 = vmatprep.subr.mxu0 0.0
    %5042 = vmatpush1.msra.mxu0 %v4442
    %5043 = vmatprep.subr.mxu0 0.0
    %5044 = vmatpush1.msra.mxu0 %v4443
    %5045 = vmatprep.subr.mxu0 0.0
    %5046 = vmatpush1.msra.mxu0 %v4444
    %5047 = vmatprep.subr.mxu0 0.0
    %5048 = vmatpush1.msra.mxu0 %v4445
    %5049 = vmatprep.subr.mxu0 0.0
    %5050 = vmatpush1.msra.mxu0 %v4446
    %5051 = vmatprep.subr.mxu0 0.0
    %5052 = vmatpush1.msra.mxu0 %v4447
    %5053 = vmatprep.subr.mxu0 0.0
    %5054 = vmatpush1.msra.mxu0 %v4448
    %5055 = vmatprep.subr.mxu0 0.0
    %5056 = vmatpush1.msra.mxu0 0.0
    %5057 = vmatprep.subr.mxu0 0.0
    %5058 = vmatpush1.msra.mxu0 0.0
    %5059 = vmatprep.subr.mxu0 0.0
    %5060 = vmatpush1.msra.mxu0 0.0
    %5061 = vmatprep.subr.mxu0 0.0
    %5062 = vmatpush1.msra.mxu0 0.0
    %5063 = vmatprep.subr.mxu0 0.0
    %5064 = vmatpush1.msra.mxu0 0.0
    %5065 = vmatprep.subr.mxu0 0.0
    %5066 = vmatpush1.msra.mxu0 0.0
    %5067 = vmatprep.subr.mxu0 0.0
    %5068 = vmatpush1.msra.mxu0 0.0
    %5069 = vmatprep.subr.mxu0 0.0
    %5070 = vmatpush1.msra.mxu0 0.0
    %5071 = vmatprep.subr.mxu0 0.0
    %5072 = vmatpush1.msra.mxu0 0.0
    %5073 = vmatprep.subr.mxu0 0.0
    %5074 = vmatpush1.msra.mxu0 0.0
    %5075 = vmatprep.subr.mxu0 0.0
    %5076 = vmatpush1.msra.mxu0 0.0
    %5077 = vmatprep.subr.mxu0 0.0
    %5078 = vmatpush1.msra.mxu0 0.0
    %5079 = vmatprep.subr.mxu0 0.0
    %5080 = vmatpush1.msra.mxu0 0.0
    %5081 = vmatprep.subr.mxu0 0.0
    %5082 = vmatpush1.msra.mxu0 0.0
    %5083 = vmatprep.subr.mxu0 0.0
    %5084 = vmatpush1.msra.mxu0 0.0
    %5085 = vmatprep.subr.mxu0 0.0
    %5086 = vmatpush1.msra.mxu0 0.0
    %5087 = vmatprep.subr.mxu0 0.0
    %5088 = vmatpush1.msra.mxu0 0.0
    %5089 = vmatprep.subr.mxu0 0.0
    %5090 = vmatpush1.msra.mxu0 0.0
    %5091 = vmatprep.subr.mxu0 0.0
    %5092 = vmatpush1.msra.mxu0 0.0
    %5093 = vmatprep.subr.mxu0 0.0
    %5094 = vmatpush1.msra.mxu0 0.0
    %5095 = vmatprep.subr.mxu0 0.0
    %5096 = vmatpush1.msra.mxu0 0.0
    %5097 = vmatprep.subr.mxu0 0.0
    %5098 = vmatpush1.msra.mxu0 0.0
    %5099 = vmatprep.subr.mxu0 0.0
    %5100 = vmatpush1.msra.mxu0 0.0
    %5101 = vmatprep.mubr.f32.mxu0 0.0
    %5102 = vmatmul.mubr.f32.gmra.mrb[0].mxu0 %v5035
    %v5103 = vpop.f32.mrb[0].mxu0
    %v5104 = vadd.f32 0.0, %v5103
    %v5105 = vpop.f32.mrb[0].mxu0
    %5106 = vdwg.mxu0
    %v5108 = vsel %vm4449, %v4439, 0
    %5110 = vmatprep.subr.mxu0 0.0
    %5111 = vmatpush1.msra.mxu0 %v4440
    %5112 = vmatprep.subr.mxu0 0.0
    %5113 = vmatpush1.msra.mxu0 %v4441
    %5114 = vmatprep.subr.mxu0 0.0
    %5115 = vmatpush1.msra.mxu0 %v4442
    %5116 = vmatprep.subr.mxu0 0.0
    %5117 = vmatpush1.msra.mxu0 %v4443
    %5118 = vmatprep.subr.mxu0 0.0
    %5119 = vmatpush1.msra.mxu0 %v4444
    %5120 = vmatprep.subr.mxu0 0.0
    %5121 = vmatpush1.msra.mxu0 %v4445
    %5122 = vmatprep.subr.mxu0 0.0
    %5123 = vmatpush1.msra.mxu0 %v4446
    %5124 = vmatprep.subr.mxu0 0.0
    %5125 = vmatpush1.msra.mxu0 %v4447
    %5126 = vmatprep.subr.mxu0 0.0
    %5127 = vmatpush1.msra.mxu0 %v4448
    %5128 = vmatprep.subr.mxu0 0.0
    %5129 = vmatpush1.msra.mxu0 0.0
    %5130 = vmatprep.subr.mxu0 0.0
    %5131 = vmatpush1.msra.mxu0 0.0
    %5132 = vmatprep.subr.mxu0 0.0
    %5133 = vmatpush1.msra.mxu0 0.0
    %5134 = vmatprep.subr.mxu0 0.0
    %5135 = vmatpush1.msra.mxu0 0.0
    %5136 = vmatprep.subr.mxu0 0.0
    %5137 = vmatpush1.msra.mxu0 0.0
    %5138 = vmatprep.subr.mxu0 0.0
    %5139 = vmatpush1.msra.mxu0 0.0
    %5140 = vmatprep.subr.mxu0 0.0
    %5141 = vmatpush1.msra.mxu0 0.0
    %5142 = vmatprep.subr.mxu0 0.0
    %5143 = vmatpush1.msra.mxu0 0.0
    %5144 = vmatprep.subr.mxu0 0.0
    %5145 = vmatpush1.msra.mxu0 0.0
    %5146 = vmatprep.subr.mxu0 0.0
    %5147 = vmatpush1.msra.mxu0 0.0
    %5148 = vmatprep.subr.mxu0 0.0
    %5149 = vmatpush1.msra.mxu0 0.0
    %5150 = vmatprep.subr.mxu0 0.0
    %5151 = vmatpush1.msra.mxu0 0.0
    %5152 = vmatprep.subr.mxu0 0.0
    %5153 = vmatpush1.msra.mxu0 0.0
    %5154 = vmatprep.subr.mxu0 0.0
    %5155 = vmatpush1.msra.mxu0 0.0
    %5156 = vmatprep.subr.mxu0 0.0
    %5157 = vmatpush1.msra.mxu0 0.0
    %5158 = vmatprep.subr.mxu0 0.0
    %5159 = vmatpush1.msra.mxu0 0.0
    %5160 = vmatprep.subr.mxu0 0.0
    %5161 = vmatpush1.msra.mxu0 0.0
    %5162 = vmatprep.subr.mxu0 0.0
    %5163 = vmatpush1.msra.mxu0 0.0
    %5164 = vmatprep.subr.mxu0 0.0
    %5165 = vmatpush1.msra.mxu0 0.0
    %5166 = vmatprep.subr.mxu0 0.0
    %5167 = vmatpush1.msra.mxu0 0.0
    %5168 = vmatprep.subr.mxu0 0.0
    %5169 = vmatpush1.msra.mxu0 0.0
    %5170 = vmatprep.subr.mxu0 0.0
    %5171 = vmatpush1.msra.mxu0 0.0
    %5172 = vmatprep.subr.mxu0 0.0
    %5173 = vmatpush1.msra.mxu0 0.0
    %5174 = vmatprep.mubr.f32.mxu0 0.0
    %5175 = vmatmul.mubr.f32.gmra.mrb[0].mxu0 %v5108
    %v5176 = vpop.f32.mrb[0].mxu0
    %v5177 = vadd.f32 0.0, %v5176
    %v5178 = vpop.f32.mrb[0].mxu0
    %5179 = vdwg.mxu0
    %v5180 = vld [vmem:[%s4] sm:$0x1]
    %v5182 = vlaneseq
    %v5183 = vshrl.u32 %v5182, 7
    %v5184 = vsub.s32 0, %v5183
    %v5185 = vrot.slane %v5180, %v5184
    %v5187 = vadd.f32 %v4520, %v5185
    %v5188 = vadd.f32 %v4593, %v5185
    %v5189 = vadd.f32 %v4666, %v5185
    %v5190 = vadd.f32 %v4739, %v5185
    %v5191 = vadd.f32 %v4812, %v5185
    %v5192 = vadd.f32 %v4885, %v5185
    %v5193 = vadd.f32 %v4958, %v5185
    %v5194 = vadd.f32 %v5031, %v5185
    %v5195 = vadd.f32 %v5104, %v5185
    %v5196 = vadd.f32 %v5177, %v5185
    %vm5197 = vcmp.ge.f32.partialorder %v5187, 0.0
    %vm5198 = vcmp.ge.f32.partialorder %v5188, 0.0
    %vm5199 = vcmp.ge.f32.partialorder %v5189, 0.0
    %vm5200 = vcmp.ge.f32.partialorder %v5190, 0.0
    %vm5201 = vcmp.ge.f32.partialorder %v5191, 0.0
    %vm5202 = vcmp.ge.f32.partialorder %v5192, 0.0
    %vm5203 = vcmp.ge.f32.partialorder %v5193, 0.0
    %vm5204 = vcmp.ge.f32.partialorder %v5194, 0.0
    %vm5205 = vcmp.ge.f32.partialorder %v5195, 0.0
    %vm5206 = vcmp.ge.f32.partialorder %v5196, 0.0
    %v5207 = vmul.f32 %v5187, 0.1
    %v5208 = vmul.f32 %v5188, 0.1
    %v5209 = vmul.f32 %v5189, 0.1
    %v5210 = vmul.f32 %v5190, 0.1
    %v5211 = vmul.f32 %v5191, 0.1
    %v5212 = vmul.f32 %v5192, 0.1
    %v5213 = vmul.f32 %v5193, 0.1
    %v5214 = vmul.f32 %v5194, 0.1
    %v5215 = vmul.f32 %v5195, 0.1
    %v5216 = vmul.f32 %v5196, 0.1
    %v5217 = vsel %vm5197, %v5187, %v5207
    %v5218 = vsel %vm5198, %v5188, %v5208
    %v5219 = vsel %vm5199, %v5189, %v5209
    %v5220 = vsel %vm5200, %v5190, %v5210
    %v5221 = vsel %vm5201, %v5191, %v5211
    %v5222 = vsel %vm5202, %v5192, %v5212
    %v5223 = vsel %vm5203, %v5193, %v5213
    %v5224 = vsel %vm5204, %v5194, %v5214
    %v5225 = vsel %vm5205, %v5195, %v5215
    %v5226 = vsel %vm5206, %v5196, %v5216
    %v5227 = vld [vmem:[%s9] sm:$0x1]
    %v5228 = vld [vmem:[%s10] sm:$0x1]
    %v5229 = vmul.f32 %v5217, %v5217
    %v5230 = vmul.f32 %v5218, %v5218
    %v5231 = vmul.f32 %v5219, %v5219
    %v5232 = vmul.f32 %v5220, %v5220
    %v5233 = vmul.f32 %v5221, %v5221
    %v5234 = vmul.f32 %v5222, %v5222
    %v5235 = vmul.f32 %v5223, %v5223
    %v5236 = vmul.f32 %v5224, %v5224
    %v5237 = vmul.f32 %v5225, %v5225
    %v5238 = vmul.f32 %v5226, %v5226
    %5249 = vrot.lane.b32.xlu0 %v5229, 8
    %v5250 = vpop.permute.xlu0 %5249
    %5251 = vrot.lane.b32.xlu0 %v5230, 8
    %v5252 = vpop.permute.xlu0 %5251
    %5253 = vrot.lane.b32.xlu0 %v5231, 8
    %v5254 = vpop.permute.xlu0 %5253
    %5255 = vrot.lane.b32.xlu0 %v5232, 8
    %v5256 = vpop.permute.xlu0 %5255
    %5257 = vrot.lane.b32.xlu0 %v5233, 8
    %v5258 = vpop.permute.xlu0 %5257
    %5259 = vrot.lane.b32.xlu0 %v5234, 8
    %v5260 = vpop.permute.xlu0 %5259
    %5261 = vrot.lane.b32.xlu0 %v5235, 8
    %v5262 = vpop.permute.xlu0 %5261
    %5263 = vrot.lane.b32.xlu0 %v5236, 8
    %v5264 = vpop.permute.xlu0 %5263
    %5265 = vrot.lane.b32.xlu0 %v5237, 8
    %v5266 = vpop.permute.xlu0 %5265
    %5267 = vrot.lane.b32.xlu0 %v5238, 8
    %v5268 = vpop.permute.xlu0 %5267
    %v5279 = vsel %vm3504, %v5217, %v5250
    %v5280 = vsel %vm3504, %v5218, %v5252
    %v5281 = vsel %vm3504, %v5219, %v5254
    %v5282 = vsel %vm3504, %v5220, %v5256
    %v5283 = vsel %vm3504, %v5221, %v5258
    %v5284 = vsel %vm3504, %v5222, %v5260
    %v5285 = vsel %vm3504, %v5223, %v5262
    %v5286 = vsel %vm3504, %v5224, %v5264
    %v5287 = vsel %vm3504, %v5225, %v5266
    %v5288 = vsel %vm3504, %v5226, %v5268
    %vm5289 = vcmask 126976
    %v5290 = vsel %vm5289, %v5279, 0.0
    %v5291 = vsel %vm5289, %v5280, 0.0
    %v5292 = vadd.f32 %v5290, %v5291
    %v5293 = vsel %vm5289, %v5281, 0.0
    %v5294 = vadd.f32 %v5292, %v5293
    %v5295 = vsel %vm5289, %v5282, 0.0
    %v5296 = vadd.f32 %v5294, %v5295
    %v5297 = vsel %vm5289, %v5283, 0.0
    %v5298 = vadd.f32 %v5296, %v5297
    %v5299 = vsel %vm5289, %v5284, 0.0
    %v5300 = vsel %vm5289, %v5285, 0.0
    %v5301 = vadd.f32 %v5299, %v5300
    %v5302 = vsel %vm5289, %v5286, 0.0
    %v5303 = vadd.f32 %v5301, %v5302
    %v5304 = vsel %vm5289, %v5287, 0.0
    %v5305 = vadd.f32 %v5303, %v5304
    %v5306 = vsel %vm5289, %v5288, 0.0
    %v5307 = vadd.f32 %v5305, %v5306
    %v5308 = vsel %vm5289, %v5298, 0.0
    %v5309 = vrot.slane %v5308, 4
    %v5310 = vadd.f32 %v5308, %v5309
    %v5311 = vrot.slane %v5310, 2
    %v5312 = vadd.f32 %v5310, %v5311
    %v5313 = vrot.slane %v5312, 1
    %v5314 = vadd.f32 %v5312, %v5313
    %v5315 = vsel %vm5289, %v5307, 0.0
    %v5316 = vrot.slane %v5315, 4
    %v5317 = vadd.f32 %v5315, %v5316
    %v5318 = vrot.slane %v5317, 2
    %v5319 = vadd.f32 %v5317, %v5318
    %v5320 = vrot.slane %v5319, 1
    %v5321 = vadd.f32 %v5319, %v5320
    %v5322 = vsel %vm3561, %v5314, 0.0
    %v5323 = vsel %vm3561, %v5321, 0.0
    %v5324 = vadd.f32 %v5322, %v5323
    %v5325 = vrcp.pop 50.0
    %v5326 = vmul.f32 %v5324, %v5325
    %v5327 = vmul.f32 %v5326, %v5326
    %5329 = vrot.lane.b32.xlu0 %v5327, 8
    %v5330 = vpop.permute.xlu0 %5329
    %v5332 = vsub.f32 %v5326, %v5330
    %v5333 = vsub.f32 %v5217, %v5326
    %v5334 = vsub.f32 %v5218, %v5326
    %v5335 = vsub.f32 %v5219, %v5326
    %v5336 = vsub.f32 %v5220, %v5326
    %v5337 = vsub.f32 %v5222, %v5326
    %v5338 = vsub.f32 %v5223, %v5326
    %v5339 = vsub.f32 %v5224, %v5326
    %v5340 = vsub.f32 %v5225, %v5326
    %v5341 = vadd.f32 %v5332, 1e-05
    %v5342 = vrsqrt.pop %v5341
    %v5343 = vlaneseq
    %v5344 = vshrl.u32 %v5343, 7
    %v5345 = vsub.s32 0, %v5344
    %v5346 = vrot.slane %v5342, %v5345
    %5348 = vrot.lane.b32.xlu0 %v5346, 120
    %v5349 = vpop.permute.xlu0 %5348
    %v5351 = vmul.f32 %v5333, %v5349
    %v5352 = vmul.f32 %v5334, %v5349
    %v5353 = vmul.f32 %v5335, %v5349
    %v5354 = vmul.f32 %v5336, %v5349
    %v5355 = vmul.f32 %v5337, %v5349
    %v5356 = vmul.f32 %v5338, %v5349
    %v5357 = vmul.f32 %v5339, %v5349
    %v5358 = vmul.f32 %v5340, %v5349
    %v5360 = vlaneseq
    %v5361 = vshrl.u32 %v5360, 7
    %v5362 = vsub.s32 0, %v5361
    %v5363 = vrot.slane %v5227, %v5362
    %v5365 = vmul.f32 %v5351, %v5363
    %v5366 = vmul.f32 %v5352, %v5363
    %v5367 = vmul.f32 %v5353, %v5363
    %v5368 = vmul.f32 %v5354, %v5363
    %v5369 = vmul.f32 %v5355, %v5363
    %v5370 = vmul.f32 %v5356, %v5363
    %v5371 = vmul.f32 %v5357, %v5363
    %v5372 = vmul.f32 %v5358, %v5363
    %v5374 = vlaneseq
    %v5375 = vshrl.u32 %v5374, 7
    %v5376 = vsub.s32 0, %v5375
    %v5377 = vrot.slane %v5228, %v5376
    %v5379 = vadd.f32 %v5365, %v5377
    %v5380 = vadd.f32 %v5366, %v5377
    %v5381 = vadd.f32 %v5367, %v5377
    %v5382 = vadd.f32 %v5368, %v5377
    %v5383 = vadd.f32 %v5369, %v5377
    %v5384 = vadd.f32 %v5370, %v5377
    %v5385 = vadd.f32 %v5371, %v5377
    %v5386 = vadd.f32 %v5372, %v5377
    %v5387 = vmax.f32 %v5379, %v5380
    %v5388 = vmax.f32 %v5381, %v5382
    %v5389 = vmax.f32 %v5383, %v5384
    %v5390 = vmax.f32 %v5385, %v5386
    %vm5391 = vcmask 61440
    %5392 = vst.msk [vmem:[#allocation3] sm:$0x1f] %vm5391, %v5387
    %5393 = vst.msk [vmem:[#allocation3 + $0x8] sm:$0x1f] %vm5391, %v5388
    %5394 = vst.msk [vmem:[#allocation3 + $0x10] sm:$0x1f] %vm5391, %v5389
    %5395 = vst.msk [vmem:[#allocation3 + $0x18] sm:$0x1f] %vm5391, %v5390
    %v5396 = vld [vmem:[#allocation3] ss:$2 sm:$0x3]
    %s5397 = scalar_lea.vmem [#allocation3], 8
    %v5398 = vld [vmem:[%s5397] ss:$2 sm:$0x3]
    %s5399 = scalar_lea.vmem [#allocation3], 16
    %v5400 = vld [vmem:[%s5399] ss:$2 sm:$0x3]
    %s5401 = scalar_lea.vmem [#allocation3], 24
    %v5402 = vld [vmem:[%s5401] ss:$2 sm:$0x3]
    %s5403 = scalar_lea.vmem [#allocation3], 1
    %v5404 = vld [vmem:[%s5403] ss:$2 sm:$0x3]
    %s5405 = scalar_lea.vmem [#allocation3], 9
    %v5406 = vld [vmem:[%s5405] ss:$2 sm:$0x3]
    %s5407 = scalar_lea.vmem [#allocation3], 17
    %v5408 = vld [vmem:[%s5407] ss:$2 sm:$0x3]
    %s5409 = scalar_lea.vmem [#allocation3], 25
    %v5410 = vld [vmem:[%s5409] ss:$2 sm:$0x3]
    %v5411 = vmax.f32 %v5396, %v5404
    %v5412 = vmax.f32 %v5398, %v5406
    %v5413 = vmax.f32 %v5400, %v5408
    %v5414 = vmax.f32 %v5402, %v5410
    %v5417 = vrot.slane %v5413, 7
    %vm5418 = vcmask 1041409
    %v5419 = vsel %vm5418, %v5417, %v5411
    %v5421 = vrot.slane %v5411, 1
    %v5422 = vsel %vm5418, %v5413, %v5421
    %5423 = vrot.lane.b32.xlu0 %v5422, 8
    %v5424 = vpop.permute.xlu0 %5423
    %v5428 = vrot.slane %v5414, 7
    %v5429 = vsel %vm5418, %v5428, %v5412
    %5430 = vrot.lane.b32.xlu0 %v5429, 16
    %v5431 = vpop.permute.xlu0 %5430
    %v5433 = vrot.slane %v5412, 1
    %v5434 = vsel %vm5418, %v5414, %v5433
    %5435 = vrot.lane.b32.xlu0 %v5434, 24
    %v5436 = vpop.permute.xlu0 %5435
    %v5438 = vsel %vm3504, %v5419, %v5424
    %v5439 = vsel %vm3561, %v5438, %v5431
    %v5440 = vsel %vm4374, %v5439, %v5436
    %v5441 = vld [vmem:[%s5] sm:$0xff]
    %v5442 = vld [vmem:[%s5 + $0x8] sm:$0xff]
    %v5443 = vld [vmem:[%s5 + $0x10] sm:$0xff]
    %v5444 = vld [vmem:[%s5 + $0x18] sm:$0xff]
    %v5445 = vld [vmem:[%s6] sm:$0x1]
    %v5447 = vlaneseq
    %v5448 = vshrl.u32 %v5447, 7
    %v5449 = vsub.s32 0, %v5448
    %v5450 = vrot.slane %v5445, %v5449
    %v5453 = vsel %vm4385, %v5440, 0
    %5455 = vmatprep.subr.mxu0 0.0
    %5456 = vmatpush1.msra.mxu0 %v5441
    %5457 = vmatprep.subr.mxu0 0.0
    %5458 = vmatpush1.msra.mxu0 %v5442
    %5459 = vmatprep.subr.mxu0 0.0
    %5460 = vmatpush1.msra.mxu0 %v5443
    %5461 = vmatprep.subr.mxu0 0.0
    %5462 = vmatpush1.msra.mxu0 %v5444
    %5463 = vmatprep.subr.mxu0 0.0
    %5464 = vmatpush1.msra.mxu0 0.0
    %5465 = vmatprep.subr.mxu0 0.0
    %5466 = vmatpush1.msra.mxu0 0.0
    %5467 = vmatprep.subr.mxu0 0.0
    %5468 = vmatpush1.msra.mxu0 0.0
    %5469 = vmatprep.subr.mxu0 0.0
    %5470 = vmatpush1.msra.mxu0 0.0
    %5471 = vmatprep.subr.mxu0 0.0
    %5472 = vmatpush1.msra.mxu0 0.0
    %5473 = vmatprep.subr.mxu0 0.0
    %5474 = vmatpush1.msra.mxu0 0.0
    %5475 = vmatprep.subr.mxu0 0.0
    %5476 = vmatpush1.msra.mxu0 0.0
    %5477 = vmatprep.subr.mxu0 0.0
    %5478 = vmatpush1.msra.mxu0 0.0
    %5479 = vmatprep.subr.mxu0 0.0
    %5480 = vmatpush1.msra.mxu0 0.0
    %5481 = vmatprep.subr.mxu0 0.0
    %5482 = vmatpush1.msra.mxu0 0.0
    %5483 = vmatprep.subr.mxu0 0.0
    %5484 = vmatpush1.msra.mxu0 0.0
    %5485 = vmatprep.subr.mxu0 0.0
    %5486 = vmatpush1.msra.mxu0 0.0
    %5487 = vmatprep.subr.mxu0 0.0
    %5488 = vmatpush1.msra.mxu0 0.0
    %5489 = vmatprep.subr.mxu0 0.0
    %5490 = vmatpush1.msra.mxu0 0.0
    %5491 = vmatprep.subr.mxu0 0.0
    %5492 = vmatpush1.msra.mxu0 0.0
    %5493 = vmatprep.subr.mxu0 0.0
    %5494 = vmatpush1.msra.mxu0 0.0
    %5495 = vmatprep.subr.mxu0 0.0
    %5496 = vmatpush1.msra.mxu0 0.0
    %5497 = vmatprep.subr.mxu0 0.0
    %5498 = vmatpush1.msra.mxu0 0.0
    %5499 = vmatprep.subr.mxu0 0.0
    %5500 = vmatpush1.msra.mxu0 0.0
    %5501 = vmatprep.subr.mxu0 0.0
    %5502 = vmatpush1.msra.mxu0 0.0
    %5503 = vmatprep.subr.mxu0 0.0
    %5504 = vmatpush1.msra.mxu0 0.0
    %5505 = vmatprep.subr.mxu0 0.0
    %5506 = vmatpush1.msra.mxu0 0.0
    %5507 = vmatprep.subr.mxu0 0.0
    %5508 = vmatpush1.msra.mxu0 0.0
    %5509 = vmatprep.subr.mxu0 0.0
    %5510 = vmatpush1.msra.mxu0 0.0
    %5511 = vmatprep.subr.mxu0 0.0
    %5512 = vmatpush1.msra.mxu0 0.0
    %5513 = vmatprep.subr.mxu0 0.0
    %5514 = vmatpush1.msra.mxu0 0.0
    %5515 = vmatprep.subr.mxu0 0.0
    %5516 = vmatpush1.msra.mxu0 0.0
    %5517 = vmatprep.subr.mxu0 0.0
    %5518 = vmatpush1.msra.mxu0 0.0
    %5519 = vmatprep.mubr.f32.mxu0 0.0
    %5520 = vmatmul.mubr.f32.gmra.mrb[0].mxu0 %v5453
    %v5521 = vpop.f32.mrb[0].mxu0
    %v5522 = vadd.f32 %v5450, %v5521
    %v5523 = vpop.f32.mrb[0].mxu0
    %5524 = vdwg.mxu0
    %vm5525 = vcmask 74752
    %v5526 = vsel %vm5525, %v5522, 0.0
    %v5527 = vrot.slane %v5526, 4
    %v5528 = vadd.f32 %v5526, %v5527
    %v5529 = vrot.slane %v5528, 2
    %v5530 = vadd.f32 %v5528, %v5529
    %v5531 = vrot.slane %v5530, 1
    %v5532 = vadd.f32 %v5530, %v5531
    %v5533 = vrcp.pop 2.0
    %v5534 = vmul.f32 %v5532, %v5533
    %v5535 = vmul.f32 %v5522, %v5522
    %v5536 = vsel %vm5525, %v5535, 0.0
    %v5537 = vrot.slane %v5536, 4
    %v5538 = vadd.f32 %v5536, %v5537
    %v5539 = vrot.slane %v5538, 2
    %v5540 = vadd.f32 %v5538, %v5539
    %v5541 = vrot.slane %v5540, 1
    %v5542 = vadd.f32 %v5540, %v5541
    %v5543 = vmul.f32 %v5542, %v5533
    %v5544 = vmul.f32 %v5534, %v5534
    %v5545 = vsub.f32 %v5543, %v5544
    %v5546 = vsub.f32 %v5522, %v5534
    %v5547 = vadd.f32 %v5545, 1e-05
    %v5548 = vrsqrt.pop %v5547
    %v5549 = vmul.f32 %v5546, %v5548
    %v5550 = vld [vmem:[%s11] sm:$0x1]
    %v5552 = vlaneseq
    %v5553 = vshrl.u32 %v5552, 7
    %v5554 = vsub.s32 0, %v5553
    %v5555 = vrot.slane %v5550, %v5554
    %v5557 = vmul.f32 %v5549, %v5555
    %v5558 = vld [vmem:[%s12] sm:$0x1]
    %v5560 = vlaneseq
    %v5561 = vshrl.u32 %v5560, 7
    %v5562 = vsub.s32 0, %v5561
    %v5563 = vrot.slane %v5558, %v5562
    %v5565 = vadd.f32 %v5557, %v5563
    %v5566 = vsel %vm5525, %v5565, -inf
    %5567 = vmax.xlane.f32.xlu0 %v5566
    %v5568 = vpop.xlane.xlu0 %5567
    %v5569 = vsub.f32 %v5565, %v5568
    %v5570 = vmul.f32 %v5569, 1.442695
    %v5571 = vpow.pop %v5570
    %v5572 = vsel %vm5525, %v5571, 0.0
    %5573 = vadd.xlane.f32.xlu0 %v5572
    %v5574 = vpop.xlane.xlu0 %5573
    %v5575 = vlog2.pop %v5574
    %v5576 = vmul.f32 %v5575, 0.6931472
    %v5577 = vsub.f32 %v5569, %v5576
    %5578 = vst.msk [vmem:[#allocation4] sm:$0x3] %vm5525, %v5577
    // Predicated region
    $region54: #{tpu_custom_call.1} parent=1 // pred_check
      _
    $region55: #{tpu_custom_call.1} parent=1 // pred_check_branch
      %5580 = sbr.rel (0) target = $region57
    $region56: #{tpu_custom_call.1} parent=1 // pred_region
      %s5582 = ssub.s32 32, 32
      %5583 = vsyncadd [#allocation5], %s5582
      %s5585 = sshll.u32 [#allocation4], 4
      %s5586 = int_to_ptr.vmem [resolvable:$true] %s5585
      %5588 = dma.vmem_to_hbm [thread:$0]  %s5586, 32, %s13, [#allocation5]
    $region57: #{tpu_custom_call.1} parent=1 // pred_fallthru
      _
    // Predicated region
    $region58: #{tpu_custom_call.1} parent=1 // pred_check
      _
    $region59: #{tpu_custom_call.1} parent=1 // pred_check_branch
      %5590 = sbr.rel (0) target = $region61
    $region60: #{tpu_custom_call.1} parent=1 // pred_region
      %5591 = dma.done [#allocation5], 32
    $region61: #{tpu_custom_call.1} parent=1 // pred_fallthru
      _
    %5592 = vsyncpa [#allocation5], 1

</llo_original>
